<compile_context>
chip_gen: v7x
topology: tpu7x:2x2x1
jax: 0.10.0
libtpu: 0.0.40
codegen_flags: <defaults>
</compile_context>

<pallas_src>
import functools

import jax
import jax.numpy as jnp
from jax.experimental import pallas as pl
from jax.experimental.pallas import tpu as pltpu

BN_EPS = 0.8  # nn.BatchNorm1d(out_channel, 0.8) -> eps = 0.8


def _packed_vec_layout(feature_dims, out_size):
    """Static (offset, size) of each bias/gamma/beta segment in the packed row.

    Packing order: b0, (b1, g1, be1), (b2, g2, be2), (b3, g3, be3), b4.
    With feature dims (128, 256, 512, 1024) every offset is a multiple of 128,
    so in-kernel slices are lane-aligned.
    """
    d0, d1, d2, d3 = feature_dims
    layout = {}
    cur = 0
    for name, size in (
        ("b0", d0),
        ("b1", d1), ("g1", d1), ("be1", d1),
        ("b2", d2), ("g2", d2), ("be2", d2),
        ("b3", d3), ("g3", d3), ("be3", d3),
        ("b4", out_size),
    ):
        layout[name] = (cur, size)
        cur += size
    return layout, cur


def _generator_kernel(x_ref, w0_ref, w1_ref, w2_ref, w3_ref, w4_ref, vec_ref,
                      out_ref, *, layout):
    def vec(name):
        off, size = layout[name]
        return vec_ref[:, off:off + size]  # static, 128-lane-aligned slice

    def matmul(h, w_ref):
        # bf16 x bf16 on the MXU, f32 accumulation.
        return jnp.dot(h.astype(jnp.bfloat16), w_ref[...],
                       preferred_element_type=jnp.float32)

    # input_layer: Linear + ReLU
    h = jnp.maximum(matmul(x_ref[...], w0_ref) + vec("b0"), 0.0)

    def bn_block(h, w_ref, b_name, g_name, be_name):
        # Linear
        z = matmul(h, w_ref) + vec(b_name)
        # BatchNorm1d, training mode: batch mean, biased batch variance,
        # single-pass variance E[z^2] - mean^2 (safe with eps = 0.8).
        mean = jnp.mean(z, axis=0, keepdims=True)
        mean_sq = jnp.mean(z * z, axis=0, keepdims=True)
        var = mean_sq - mean * mean
        zn = (z - mean) * jax.lax.rsqrt(var + BN_EPS)
        zn = zn * vec(g_name) + vec(be_name)
        # ReLU
        return jnp.maximum(zn, 0.0)

    h = bn_block(h, w1_ref, "b1", "g1", "be1")
    h = bn_block(h, w2_ref, "b2", "g2", "be2")
    h = bn_block(h, w3_ref, "b3", "g3", "be3")

    # output_layer: Linear + Tanh
    out_ref[...] = jnp.tanh(matmul(h, w4_ref) + vec("b4"))


def generator_forward(x, weights, packed_vec):
    """x: (B, nz) f32. weights: 5 bf16 matrices (in, out). packed_vec: (1, S) f32."""
    batch, _ = x.shape
    out_size = weights[-1].shape[-1]
    feature_dims = tuple(int(w.shape[-1]) for w in weights[:-1])  # (128,256,512,1024)
    layout, total = _packed_vec_layout(feature_dims, out_size)
    assert packed_vec.shape == (1, total), (packed_vec.shape, total)

    kernel = functools.partial(_generator_kernel, layout=layout)

    def full_spec(arr):
        # Whole-array block (block shape == full array), single grid step.
        nd = arr.ndim
        return pl.BlockSpec(arr.shape, lambda i, _nd=nd: (0,) * _nd)

    inputs = [x, *weights, packed_vec]
    in_specs = [full_spec(a) for a in inputs]
    out_spec = pl.BlockSpec((batch, out_size), lambda i: (0, 0))

    # Advisory cost hint for XLA's scheduler: memory-bound, few FLOPs.
    flops = 2 * batch * sum(int(w.shape[0]) * int(w.shape[1]) for w in weights)
    bytes_accessed = (
        sum(w.size * w.dtype.itemsize for w in weights)   # bf16 weights
        + packed_vec.size * 4                              # packed bias/gamma/beta
        + x.size * 4                                       # input
        + batch * out_size * 4                             # output
    )
    transcendentals = batch * out_size + sum(feature_dims[1:])  # tanh + rsqrt

    return pl.pallas_call(
        kernel,
        out_shape=jax.ShapeDtypeStruct((batch, out_size), jnp.float32),
        grid_spec=pltpu.PrefetchScalarGridSpec(
            num_scalar_prefetch=0,
            grid=(1,),
            in_specs=in_specs,
            out_specs=out_spec,
        ),
        compiler_params=pltpu.CompilerParams(
            dimension_semantics=("arbitrary",),
            # <= 48 MiB: safe on v7x (64 MiB physical VMEM) and all other gens;
            # actual footprint here is < 8 MiB even double-buffered.
            vmem_limit_bytes=48 << 20,
        ),
        cost_estimate=pl.CostEstimate(
            flops=flops,
            transcendentals=transcendentals,
            bytes_accessed=bytes_accessed,
        ),
    )(*inputs)


def init_params(key, nz, out_size):
    """Deterministic synthetic parameters (f32, shapes match the PyTorch module)."""
    dims = [(nz, 128), (128, 256), (256, 512), (512, 1024), (1024, out_size)]
    params = []
    keys = jax.random.split(key, len(dims) * 2)
    k = 0
    for li, (din, dout) in enumerate(dims):
        scale = 1.0 / jnp.sqrt(jnp.float32(din))
        w = jax.random.uniform(keys[k], (din, dout), jnp.float32, -scale, scale)
        k += 1
        b = jax.random.uniform(keys[k], (1, dout), jnp.float32, -scale, scale)
        k += 1
        params.extend([w, b])
        if li in (1, 2, 3):  # layers with BatchNorm1d: gamma=1, beta=0
            params.append(jnp.ones((1, dout), jnp.float32))   # gamma
            params.append(jnp.zeros((1, dout), jnp.float32))  # beta
    return params


def prepare_params(params):
    """One-time preprocessing: weights -> bf16, small vectors -> one packed f32 row."""
    (w0, b0,
     w1, b1, g1, be1,
     w2, b2, g2, be2,
     w3, b3, g3, be3,
     w4, b4) = params
    weights = tuple(w.astype(jnp.bfloat16) for w in (w0, w1, w2, w3, w4))
    packed_vec = jnp.concatenate(
        [b0, b1, g1, be1, b2, g2, be2, b3, g3, be3, b4], axis=1
    ).astype(jnp.float32)
    return weights, packed_vec


if __name__ == "__main__":
    nz = 32
    image_size = (1, 32, 32)
    out_size = image_size[0] * image_size[1] * image_size[2]  # 1024
    batch = 8

    key = jax.random.PRNGKey(0)
    k_params, k_x = jax.random.split(key)
    params = init_params(k_params, nz, out_size)
    weights, packed_vec = prepare_params(params)
    x = jax.random.normal(k_x, (batch, nz), dtype=jnp.float32)

    out = generator_forward(x, weights, packed_vec)
    out = jax.block_until_ready(out)

    assert out.shape == (batch, out_size), out.shape
    assert out.dtype == jnp.float32
    assert bool(jnp.all(jnp.isfinite(out)))
    assert bool(jnp.all(jnp.abs(out) <= 1.0))  # tanh output range

    print("KERNEL_OK")
</pallas_src>

<mosaic_0001>
module attributes {stable_mosaic.version = 11 : i64} {
  func.func @_generator_kernel(%arg0: i32, %arg1: memref<8x32xf32, #tpu.memory_space<vmem>>, %arg2: memref<32x128xbf16, #tpu.memory_space<vmem>>, %arg3: memref<128x256xbf16, #tpu.memory_space<vmem>>, %arg4: memref<256x512xbf16, #tpu.memory_space<vmem>>, %arg5: memref<512x1024xbf16, #tpu.memory_space<vmem>>, %arg6: memref<1024x1024xbf16, #tpu.memory_space<vmem>>, %arg7: memref<1x6528xf32, #tpu.memory_space<vmem>>, %arg8: memref<8x1024xf32, #tpu.memory_space<vmem>>) attributes {dimension_semantics = [#tpu.dimension_semantics<arbitrary>], iteration_bounds = array<i64: 1>, scalar_prefetch = 0 : i64, scratch_operands = 0 : i64, tpu.core_type = #tpu.core_type<tc>, window_params = [{pipeline_mode = #tpu.pipeline_mode<synchronous>, transform_indices = @transform_0, window_bounds = array<i64: 8, 32>}, {pipeline_mode = #tpu.pipeline_mode<synchronous>, transform_indices = @transform_1, window_bounds = array<i64: 32, 128>}, {pipeline_mode = #tpu.pipeline_mode<synchronous>, transform_indices = @transform_2, window_bounds = array<i64: 128, 256>}, {pipeline_mode = #tpu.pipeline_mode<synchronous>, transform_indices = @transform_3, window_bounds = array<i64: 256, 512>}, {pipeline_mode = #tpu.pipeline_mode<synchronous>, transform_indices = @transform_4, window_bounds = array<i64: 512, 1024>}, {pipeline_mode = #tpu.pipeline_mode<synchronous>, transform_indices = @transform_5, window_bounds = array<i64: 1024, 1024>}, {pipeline_mode = #tpu.pipeline_mode<synchronous>, transform_indices = @transform_6, window_bounds = array<i64: 1, 6528>}, {pipeline_mode = #tpu.pipeline_mode<synchronous>, transform_indices = @transform_7, window_bounds = array<i64: 8, 1024>}]} {
    %c0 = arith.constant 0 : index
    %c0_0 = arith.constant 0 : index
    %0 = vector.load %arg1[%c0, %c0_0] : memref<8x32xf32, #tpu.memory_space<vmem>>, vector<8x32xf32>
    %1 = arith.truncf %0 : vector<8x32xf32> to vector<8x32xbf16>
    %c0_1 = arith.constant 0 : index
    %c0_2 = arith.constant 0 : index
    %2 = vector.load %arg2[%c0_1, %c0_2] : memref<32x128xbf16, #tpu.memory_space<vmem>>, vector<32x128xbf16>
    %cst = arith.constant dense<0.000000e+00> : vector<8x128xf32>
    %3 = tpu.matmul %1, %2, %cst {dimension_numbers = #tpu.dot_dimension_numbers<[1], [0], [0], [1], [0, 0, 1, 1], [], []>} : vector<8x32xbf16>, vector<32x128xbf16>, vector<8x128xf32> -> vector<8x128xf32>
    %c0_3 = arith.constant 0 : index
    %c0_4 = arith.constant 0 : index
    %4 = vector.load %arg7[%c0_3, %c0_4] : memref<1x6528xf32, #tpu.memory_space<vmem>>, vector<1x128xf32>
    %5 = vector.broadcast %4 : vector<1x128xf32> to vector<8x128xf32>
    %6 = arith.addf %3, %5 : vector<8x128xf32>
    %cst_5 = arith.constant 0.000000e+00 : f32
    %7 = vector.broadcast %cst_5 : f32 to vector<8x128xf32>
    %8 = arith.maximumf %6, %7 : vector<8x128xf32>
    %9 = arith.truncf %8 : vector<8x128xf32> to vector<8x128xbf16>
    %c0_6 = arith.constant 0 : index
    %c0_7 = arith.constant 0 : index
    %10 = vector.load %arg3[%c0_6, %c0_7] : memref<128x256xbf16, #tpu.memory_space<vmem>>, vector<128x256xbf16>
    %cst_8 = arith.constant dense<0.000000e+00> : vector<8x256xf32>
    %11 = tpu.matmul %9, %10, %cst_8 {dimension_numbers = #tpu.dot_dimension_numbers<[1], [0], [0], [1], [0, 0, 1, 1], [], []>} : vector<8x128xbf16>, vector<128x256xbf16>, vector<8x256xf32> -> vector<8x256xf32>
    %c0_9 = arith.constant 0 : index
    %c128 = arith.constant 128 : index
    %12 = vector.load %arg7[%c0_9, %c128] : memref<1x6528xf32, #tpu.memory_space<vmem>>, vector<1x256xf32>
    %13 = vector.broadcast %12 : vector<1x256xf32> to vector<8x256xf32>
    %14 = arith.addf %11, %13 : vector<8x256xf32>
    %cst_10 = arith.constant dense<0.000000e+00> : vector<256xf32>
    %15 = vector.multi_reduction <add>, %14, %cst_10 [0] : vector<8x256xf32> to vector<256xf32>
    %16 = vector.shape_cast %15 : vector<256xf32> to vector<1x256xf32>
    %cst_11 = arith.constant 8.000000e+00 : f32
    %17 = vector.broadcast %cst_11 : f32 to vector<1x256xf32>
    %18 = arith.divf %16, %17 : vector<1x256xf32>
    %19 = arith.mulf %14, %14 : vector<8x256xf32>
    %cst_12 = arith.constant dense<0.000000e+00> : vector<256xf32>
    %20 = vector.multi_reduction <add>, %19, %cst_12 [0] : vector<8x256xf32> to vector<256xf32>
    %21 = vector.shape_cast %20 : vector<256xf32> to vector<1x256xf32>
    %cst_13 = arith.constant 8.000000e+00 : f32
    %22 = vector.broadcast %cst_13 : f32 to vector<1x256xf32>
    %23 = arith.divf %21, %22 : vector<1x256xf32>
    %24 = arith.mulf %18, %18 : vector<1x256xf32>
    %25 = arith.subf %23, %24 : vector<1x256xf32>
    %26 = vector.broadcast %18 : vector<1x256xf32> to vector<8x256xf32>
    %27 = arith.subf %14, %26 : vector<8x256xf32>
    %cst_14 = arith.constant 8.000000e-01 : f32
    %28 = vector.broadcast %cst_14 : f32 to vector<1x256xf32>
    %29 = arith.addf %25, %28 : vector<1x256xf32>
    %30 = math.rsqrt %29 : vector<1x256xf32>
    %31 = vector.broadcast %30 : vector<1x256xf32> to vector<8x256xf32>
    %32 = arith.mulf %27, %31 : vector<8x256xf32>
    %c0_15 = arith.constant 0 : index
    %c384 = arith.constant 384 : index
    %33 = vector.load %arg7[%c0_15, %c384] : memref<1x6528xf32, #tpu.memory_space<vmem>>, vector<1x256xf32>
    %34 = vector.broadcast %33 : vector<1x256xf32> to vector<8x256xf32>
    %35 = arith.mulf %32, %34 : vector<8x256xf32>
    %c0_16 = arith.constant 0 : index
    %c640 = arith.constant 640 : index
    %36 = vector.load %arg7[%c0_16, %c640] : memref<1x6528xf32, #tpu.memory_space<vmem>>, vector<1x256xf32>
    %37 = vector.broadcast %36 : vector<1x256xf32> to vector<8x256xf32>
    %38 = arith.addf %35, %37 : vector<8x256xf32>
    %cst_17 = arith.constant 0.000000e+00 : f32
    %39 = vector.broadcast %cst_17 : f32 to vector<8x256xf32>
    %40 = arith.maximumf %38, %39 : vector<8x256xf32>
    %41 = arith.truncf %40 : vector<8x256xf32> to vector<8x256xbf16>
    %c0_18 = arith.constant 0 : index
    %c0_19 = arith.constant 0 : index
    %42 = vector.load %arg4[%c0_18, %c0_19] : memref<256x512xbf16, #tpu.memory_space<vmem>>, vector<256x512xbf16>
    %cst_20 = arith.constant dense<0.000000e+00> : vector<8x512xf32>
    %43 = tpu.matmul %41, %42, %cst_20 {dimension_numbers = #tpu.dot_dimension_numbers<[1], [0], [0], [1], [0, 0, 1, 1], [], []>} : vector<8x256xbf16>, vector<256x512xbf16>, vector<8x512xf32> -> vector<8x512xf32>
    %c0_21 = arith.constant 0 : index
    %c896 = arith.constant 896 : index
    %44 = vector.load %arg7[%c0_21, %c896] : memref<1x6528xf32, #tpu.memory_space<vmem>>, vector<1x512xf32>
    %45 = vector.broadcast %44 : vector<1x512xf32> to vector<8x512xf32>
    %46 = arith.addf %43, %45 : vector<8x512xf32>
    %cst_22 = arith.constant dense<0.000000e+00> : vector<512xf32>
    %47 = vector.multi_reduction <add>, %46, %cst_22 [0] : vector<8x512xf32> to vector<512xf32>
    %48 = vector.shape_cast %47 : vector<512xf32> to vector<1x512xf32>
    %cst_23 = arith.constant 8.000000e+00 : f32
    %49 = vector.broadcast %cst_23 : f32 to vector<1x512xf32>
    %50 = arith.divf %48, %49 : vector<1x512xf32>
    %51 = arith.mulf %46, %46 : vector<8x512xf32>
    %cst_24 = arith.constant dense<0.000000e+00> : vector<512xf32>
    %52 = vector.multi_reduction <add>, %51, %cst_24 [0] : vector<8x512xf32> to vector<512xf32>
    %53 = vector.shape_cast %52 : vector<512xf32> to vector<1x512xf32>
    %cst_25 = arith.constant 8.000000e+00 : f32
    %54 = vector.broadcast %cst_25 : f32 to vector<1x512xf32>
    %55 = arith.divf %53, %54 : vector<1x512xf32>
    %56 = arith.mulf %50, %50 : vector<1x512xf32>
    %57 = arith.subf %55, %56 : vector<1x512xf32>
    %58 = vector.broadcast %50 : vector<1x512xf32> to vector<8x512xf32>
    %59 = arith.subf %46, %58 : vector<8x512xf32>
    %cst_26 = arith.constant 8.000000e-01 : f32
    %60 = vector.broadcast %cst_26 : f32 to vector<1x512xf32>
    %61 = arith.addf %57, %60 : vector<1x512xf32>
    %62 = math.rsqrt %61 : vector<1x512xf32>
    %63 = vector.broadcast %62 : vector<1x512xf32> to vector<8x512xf32>
    %64 = arith.mulf %59, %63 : vector<8x512xf32>
    %c0_27 = arith.constant 0 : index
    %c1408 = arith.constant 1408 : index
    %65 = vector.load %arg7[%c0_27, %c1408] : memref<1x6528xf32, #tpu.memory_space<vmem>>, vector<1x512xf32>
    %66 = vector.broadcast %65 : vector<1x512xf32> to vector<8x512xf32>
    %67 = arith.mulf %64, %66 : vector<8x512xf32>
    %c0_28 = arith.constant 0 : index
    %c1920 = arith.constant 1920 : index
    %68 = vector.load %arg7[%c0_28, %c1920] : memref<1x6528xf32, #tpu.memory_space<vmem>>, vector<1x512xf32>
    %69 = vector.broadcast %68 : vector<1x512xf32> to vector<8x512xf32>
    %70 = arith.addf %67, %69 : vector<8x512xf32>
    %cst_29 = arith.constant 0.000000e+00 : f32
    %71 = vector.broadcast %cst_29 : f32 to vector<8x512xf32>
    %72 = arith.maximumf %70, %71 : vector<8x512xf32>
    %73 = arith.truncf %72 : vector<8x512xf32> to vector<8x512xbf16>
    %c0_30 = arith.constant 0 : index
    %c0_31 = arith.constant 0 : index
    %74 = vector.load %arg5[%c0_30, %c0_31] : memref<512x1024xbf16, #tpu.memory_space<vmem>>, vector<512x1024xbf16>
    %cst_32 = arith.constant dense<0.000000e+00> : vector<8x1024xf32>
    %75 = tpu.matmul %73, %74, %cst_32 {dimension_numbers = #tpu.dot_dimension_numbers<[1], [0], [0], [1], [0, 0, 1, 1], [], []>} : vector<8x512xbf16>, vector<512x1024xbf16>, vector<8x1024xf32> -> vector<8x1024xf32>
    %c0_33 = arith.constant 0 : index
    %c2432 = arith.constant 2432 : index
    %76 = vector.load %arg7[%c0_33, %c2432] : memref<1x6528xf32, #tpu.memory_space<vmem>>, vector<1x1024xf32>
    %77 = vector.broadcast %76 : vector<1x1024xf32> to vector<8x1024xf32>
    %78 = arith.addf %75, %77 : vector<8x1024xf32>
    %cst_34 = arith.constant dense<0.000000e+00> : vector<1024xf32>
    %79 = vector.multi_reduction <add>, %78, %cst_34 [0] : vector<8x1024xf32> to vector<1024xf32>
    %80 = vector.shape_cast %79 : vector<1024xf32> to vector<1x1024xf32>
    %cst_35 = arith.constant 8.000000e+00 : f32
    %81 = vector.broadcast %cst_35 : f32 to vector<1x1024xf32>
    %82 = arith.divf %80, %81 : vector<1x1024xf32>
    %83 = arith.mulf %78, %78 : vector<8x1024xf32>
    %cst_36 = arith.constant dense<0.000000e+00> : vector<1024xf32>
    %84 = vector.multi_reduction <add>, %83, %cst_36 [0] : vector<8x1024xf32> to vector<1024xf32>
    %85 = vector.shape_cast %84 : vector<1024xf32> to vector<1x1024xf32>
    %cst_37 = arith.constant 8.000000e+00 : f32
    %86 = vector.broadcast %cst_37 : f32 to vector<1x1024xf32>
    %87 = arith.divf %85, %86 : vector<1x1024xf32>
    %88 = arith.mulf %82, %82 : vector<1x1024xf32>
    %89 = arith.subf %87, %88 : vector<1x1024xf32>
    %90 = vector.broadcast %82 : vector<1x1024xf32> to vector<8x1024xf32>
    %91 = arith.subf %78, %90 : vector<8x1024xf32>
    %cst_38 = arith.constant 8.000000e-01 : f32
    %92 = vector.broadcast %cst_38 : f32 to vector<1x1024xf32>
    %93 = arith.addf %89, %92 : vector<1x1024xf32>
    %94 = math.rsqrt %93 : vector<1x1024xf32>
    %95 = vector.broadcast %94 : vector<1x1024xf32> to vector<8x1024xf32>
    %96 = arith.mulf %91, %95 : vector<8x1024xf32>
    %c0_39 = arith.constant 0 : index
    %c3456 = arith.constant 3456 : index
    %97 = vector.load %arg7[%c0_39, %c3456] : memref<1x6528xf32, #tpu.memory_space<vmem>>, vector<1x1024xf32>
    %98 = vector.broadcast %97 : vector<1x1024xf32> to vector<8x1024xf32>
    %99 = arith.mulf %96, %98 : vector<8x1024xf32>
    %c0_40 = arith.constant 0 : index
    %c4480 = arith.constant 4480 : index
    %100 = vector.load %arg7[%c0_40, %c4480] : memref<1x6528xf32, #tpu.memory_space<vmem>>, vector<1x1024xf32>
    %101 = vector.broadcast %100 : vector<1x1024xf32> to vector<8x1024xf32>
    %102 = arith.addf %99, %101 : vector<8x1024xf32>
    %cst_41 = arith.constant 0.000000e+00 : f32
    %103 = vector.broadcast %cst_41 : f32 to vector<8x1024xf32>
    %104 = arith.maximumf %102, %103 : vector<8x1024xf32>
    %105 = arith.truncf %104 : vector<8x1024xf32> to vector<8x1024xbf16>
    %c0_42 = arith.constant 0 : index
    %c0_43 = arith.constant 0 : index
    %106 = vector.load %arg6[%c0_42, %c0_43] : memref<1024x1024xbf16, #tpu.memory_space<vmem>>, vector<1024x1024xbf16>
    %cst_44 = arith.constant dense<0.000000e+00> : vector<8x1024xf32>
    %107 = tpu.matmul %105, %106, %cst_44 {dimension_numbers = #tpu.dot_dimension_numbers<[1], [0], [0], [1], [0, 0, 1, 1], [], []>} : vector<8x1024xbf16>, vector<1024x1024xbf16>, vector<8x1024xf32> -> vector<8x1024xf32>
    %c0_45 = arith.constant 0 : index
    %c5504 = arith.constant 5504 : index
    %108 = vector.load %arg7[%c0_45, %c5504] : memref<1x6528xf32, #tpu.memory_space<vmem>>, vector<1x1024xf32>
    %109 = vector.broadcast %108 : vector<1x1024xf32> to vector<8x1024xf32>
    %110 = arith.addf %107, %109 : vector<8x1024xf32>
    %111 = math.tanh %110 : vector<8x1024xf32>
    %c0_46 = arith.constant 0 : index
    %c0_47 = arith.constant 0 : index
    %112 = vector.load %arg8[%c0_46, %c0_47] : memref<8x1024xf32, #tpu.memory_space<vmem>>, vector<8x1024xf32>
    tpu.vector_store %arg8[%c0_46, %c0_47], %111 {strides = array<i32>} : memref<8x1024xf32, #tpu.memory_space<vmem>>, vector<8x1024xf32>,
    return
  }
  func.func @transform_0(%arg0: i32) -> (i32, i32) {
    %c0_i32 = arith.constant 0 : i32
    %c0_i32_0 = arith.constant 0 : i32
    %c0_i32_1 = arith.constant 0 : i32
    return %c0_i32, %c0_i32_0 : i32, i32
  }
  func.func @transform_1(%arg0: i32) -> (i32, i32) {
    %c0_i32 = arith.constant 0 : i32
    %c0_i32_0 = arith.constant 0 : i32
    %c0_i32_1 = arith.constant 0 : i32
    return %c0_i32, %c0_i32_0 : i32, i32
  }
  func.func @transform_2(%arg0: i32) -> (i32, i32) {
    %c0_i32 = arith.constant 0 : i32
    %c0_i32_0 = arith.constant 0 : i32
    %c0_i32_1 = arith.constant 0 : i32
    return %c0_i32, %c0_i32_0 : i32, i32
  }
  func.func @transform_3(%arg0: i32) -> (i32, i32) {
    %c0_i32 = arith.constant 0 : i32
    %c0_i32_0 = arith.constant 0 : i32
    %c0_i32_1 = arith.constant 0 : i32
    return %c0_i32, %c0_i32_0 : i32, i32
  }
  func.func @transform_4(%arg0: i32) -> (i32, i32) {
    %c0_i32 = arith.constant 0 : i32
    %c0_i32_0 = arith.constant 0 : i32
    %c0_i32_1 = arith.constant 0 : i32
    return %c0_i32, %c0_i32_0 : i32, i32
  }
  func.func @transform_5(%arg0: i32) -> (i32, i32) {
    %c0_i32 = arith.constant 0 : i32
    %c0_i32_0 = arith.constant 0 : i32
    %c0_i32_1 = arith.constant 0 : i32
    return %c0_i32, %c0_i32_0 : i32, i32
  }
  func.func @transform_6(%arg0: i32) -> (i32, i32) {
    %c0_i32 = arith.constant 0 : i32
    %c0_i32_0 = arith.constant 0 : i32
    %c0_i32_1 = arith.constant 0 : i32
    return %c0_i32, %c0_i32_0 : i32, i32
  }
  func.func @transform_7(%arg0: i32) -> (i32, i32) {
    %c0_i32 = arith.constant 0 : i32
    %c0_i32_0 = arith.constant 0 : i32
    %c0_i32_1 = arith.constant 0 : i32
    return %c0_i32, %c0_i32_0 : i32, i32
  }
}

</mosaic_0001>

<llo_original>
// kernel: tpu_custom_call.1
$region0: #{tpu_custom_call.1}
  #allocation0 [shape = 'u32[]', space=smem, size = 0x4, offset = 0x4, fixed_abs, tag = 'smem constant byte address 0x4 - core index']
  #allocation1 [shape = 'u32[144,128]{1,0:T(1,128)}', space=vmem, size = 0x12000, scoped, tag = 'internal scratch']
  %s0 = inlined_call_operand.hbm [shape: f32[8,32], index: 0, kind: input, shape index: {}]
  %s1 = inlined_call_operand.hbm [shape: bf16[32,128], index: 1, kind: input, shape index: {}]
  %s2 = inlined_call_operand.hbm [shape: bf16[128,256], index: 2, kind: input, shape index: {}]
  %s3 = inlined_call_operand.hbm [shape: bf16[256,512], index: 3, kind: input, shape index: {}]
  %s4 = inlined_call_operand.hbm [shape: bf16[512,1024], index: 4, kind: input, shape index: {}]
  %s5 = inlined_call_operand.hbm [shape: bf16[1024,1024], index: 5, kind: input, shape index: {}]
  %s6 = inlined_call_operand.hbm [shape: f32[1,6528], index: 6, kind: input, shape index: {}]
  %s7 = inlined_call_operand.hbm [shape: f32[8,1024], index: 7, kind: output, shape index: {}]
  %s8 = sld [smem:[#allocation0]]
  $region66: #{tpu_custom_call.1} parent=0
    _
  %s10 = ssub.s32 1, %s8
  %s11 = scalar_select 0, %s10, %s8
  $region1: #{tpu_custom_call.1} parent=0
    #allocation2 [shape = 'u8[4096]{0}', space=vmem, size = 0x1000, scoped, tag = 'input window, operand 0, single buffered']
    #allocation3 [shape = 's32[1]{0}', space=sflag, size = 0x4, scoped, tag = 'scoped memory for tpu_custom_call.1']
    #allocation4 [shape = 's32[1]{0}', space=sflag, size = 0x4, scoped, tag = 'scoped memory for tpu_custom_call.1']
    #allocation5 [shape = 'u8[8192]{0}', space=vmem, size = 0x2000, scoped, tag = 'input window, operand 1, single buffered']
    #allocation6 [shape = 's32[1]{0}', space=sflag, size = 0x4, scoped, tag = 'scoped memory for tpu_custom_call.1']
    #allocation7 [shape = 'u8[65536]{0}', space=vmem, size = 0x10000, scoped, tag = 'input window, operand 2, single buffered']
    #allocation8 [shape = 'u8[262144]{0}', space=vmem, size = 0x40000, scoped, tag = 'input window, operand 3, single buffered']
    #allocation9 [shape = 's32[1]{0}', space=sflag, size = 0x4, scoped, tag = 'scoped memory for tpu_custom_call.1']
    #allocation10 [shape = 'u8[1048576]{0}', space=vmem, size = 0x100000, scoped, tag = 'input window, operand 4, single buffered']
    #allocation11 [shape = 'u8[2097152]{0}', space=vmem, size = 0x200000, scoped, tag = 'input window, operand 5, single buffered']
    #allocation12 [shape = 's32[1]{0}', space=sflag, size = 0x4, scoped, tag = 'scoped memory for tpu_custom_call.1']
    #allocation13 [shape = 'u8[26112]{0}', space=vmem, size = 0x6800, scoped, tag = 'input window, operand 6, single buffered']
    #allocation14 [shape = 'u8[32768]{0}', space=vmem, size = 0x8000, scoped, tag = 'output window, operand 0, single buffered']
    %12 = vsyncpa [#allocation3], 0
    %13 = vsyncpa [#allocation6], 0
    %14 = vsyncpa [#allocation9], 0
    %15 = vsyncpa [#allocation12], 0
    %16 = vsyncpa [#allocation4], 0
    // Predicated region
    $region2: #{tpu_custom_call.1} parent=1 // pred_check
      _
    $region3: #{tpu_custom_call.1} parent=1 // pred_check_branch
      %18 = sbr.rel (0) target = $region5
    $region4: #{tpu_custom_call.1} parent=1 // pred_region
      %s20 = ssub.s32 128, 128
      %21 = vsyncadd [#allocation3], %s20
      %s23 = sshll.u32 [#allocation2], 4
      %s24 = int_to_ptr.vmem [resolvable:$true] %s23
      %26 = dma.hbm_to_vmem [thread:$0]  %s0, 128, %s24, [#allocation3]
    $region5: #{tpu_custom_call.1} parent=1 // pred_fallthru
      _
    // Predicated region
    $region6: #{tpu_custom_call.1} parent=1 // pred_check
      _
    $region7: #{tpu_custom_call.1} parent=1 // pred_check_branch
      %28 = sbr.rel (0) target = $region9
    $region8: #{tpu_custom_call.1} parent=1 // pred_region
      %s30 = ssub.s32 256, 256
      %31 = vsyncadd [#allocation6], %s30
      %s32 = sshll.u32 [#allocation5], 4
      %s33 = int_to_ptr.vmem [resolvable:$true] %s32
      %38 = dma.hbm_to_vmem [thread:$0]  %s1, 256, %s33, [#allocation6], 64, 64, 4
    $region9: #{tpu_custom_call.1} parent=1 // pred_fallthru
      _
    // Predicated region
    $region10: #{tpu_custom_call.1} parent=1 // pred_check
      _
    $region11: #{tpu_custom_call.1} parent=1 // pred_check_branch
      %40 = sbr.rel (0) target = $region13
    $region12: #{tpu_custom_call.1} parent=1 // pred_region
      %s42 = ssub.s32 2048, 2048
      %43 = vsyncadd [#allocation6], %s42
      %s44 = sshll.u32 [#allocation7], 4
      %s45 = int_to_ptr.vmem [resolvable:$true] %s44
      %50 = dma.hbm_to_vmem [thread:$0]  %s2, 2048, %s45, [#allocation6], 128, 128, 8
    $region13: #{tpu_custom_call.1} parent=1 // pred_fallthru
      _
    // Predicated region
    $region14: #{tpu_custom_call.1} parent=1 // pred_check
      _
    $region15: #{tpu_custom_call.1} parent=1 // pred_check_branch
      %52 = sbr.rel (0) target = $region17
    $region16: #{tpu_custom_call.1} parent=1 // pred_region
      %s54 = ssub.s32 8192, 8192
      %55 = vsyncadd [#allocation9], %s54
      %s56 = sshll.u32 [#allocation8], 4
      %s57 = int_to_ptr.vmem [resolvable:$true] %s56
      %62 = dma.hbm_to_vmem [thread:$0]  %s3, 8192, %s57, [#allocation9], 256, 256, 16
    $region17: #{tpu_custom_call.1} parent=1 // pred_fallthru
      _
    // Predicated region
    $region18: #{tpu_custom_call.1} parent=1 // pred_check
      _
    $region19: #{tpu_custom_call.1} parent=1 // pred_check_branch
      %64 = sbr.rel (0) target = $region21
    $region20: #{tpu_custom_call.1} parent=1 // pred_region
      %s66 = ssub.s32 32768, 32768
      %67 = vsyncadd [#allocation9], %s66
      %s68 = sshll.u32 [#allocation10], 4
      %s69 = int_to_ptr.vmem [resolvable:$true] %s68
      %74 = dma.hbm_to_vmem [thread:$0]  %s4, 32768, %s69, [#allocation9], 512, 512, 32
    $region21: #{tpu_custom_call.1} parent=1 // pred_fallthru
      _
    // Predicated region
    $region22: #{tpu_custom_call.1} parent=1 // pred_check
      _
    $region23: #{tpu_custom_call.1} parent=1 // pred_check_branch
      %76 = sbr.rel (0) target = $region25
    $region24: #{tpu_custom_call.1} parent=1 // pred_region
      %s78 = ssub.s32 65536, 65536
      %79 = vsyncadd [#allocation12], %s78
      %s80 = sshll.u32 [#allocation11], 4
      %s81 = int_to_ptr.vmem [resolvable:$true] %s80
      %86 = dma.hbm_to_vmem [thread:$0]  %s5, 65536, %s81, [#allocation12], 512, 512, 32
    $region25: #{tpu_custom_call.1} parent=1 // pred_fallthru
      _
    // Predicated region
    $region26: #{tpu_custom_call.1} parent=1 // pred_check
      _
    $region27: #{tpu_custom_call.1} parent=1 // pred_check_branch
      %88 = sbr.rel (0) target = $region29
    $region28: #{tpu_custom_call.1} parent=1 // pred_region
      %s90 = ssub.s32 816, 816
      %91 = vsyncadd [#allocation12], %s90
      %s93 = sshll.u32 [#allocation13], 4
      %s94 = int_to_ptr.vmem [resolvable:$true] %s93
      %96 = dma.hbm_to_vmem [thread:$0]  %s6, 816, %s94, [#allocation12]
    $region29: #{tpu_custom_call.1} parent=1 // pred_fallthru
      _
    // Predicated region
    $region30: #{tpu_custom_call.1} parent=1 // pred_check
      _
    $region31: #{tpu_custom_call.1} parent=1 // pred_check_branch
      %98 = sbr.rel (0) target = $region33
    $region32: #{tpu_custom_call.1} parent=1 // pred_region
      %99 = dma.done [#allocation3], 128
    $region33: #{tpu_custom_call.1} parent=1 // pred_fallthru
      _
    // Predicated region
    $region34: #{tpu_custom_call.1} parent=1 // pred_check
      _
    $region35: #{tpu_custom_call.1} parent=1 // pred_check_branch
      %101 = sbr.rel (0) target = $region37
    $region36: #{tpu_custom_call.1} parent=1 // pred_region
      %102 = dma.done [#allocation6], 256
    $region37: #{tpu_custom_call.1} parent=1 // pred_fallthru
      _
    // Predicated region
    $region38: #{tpu_custom_call.1} parent=1 // pred_check
      _
    $region39: #{tpu_custom_call.1} parent=1 // pred_check_branch
      %104 = sbr.rel (0) target = $region41
    $region40: #{tpu_custom_call.1} parent=1 // pred_region
      %105 = dma.done [#allocation6], 2048
    $region41: #{tpu_custom_call.1} parent=1 // pred_fallthru
      _
    // Predicated region
    $region42: #{tpu_custom_call.1} parent=1 // pred_check
      _
    $region43: #{tpu_custom_call.1} parent=1 // pred_check_branch
      %107 = sbr.rel (0) target = $region45
    $region44: #{tpu_custom_call.1} parent=1 // pred_region
      %108 = dma.done [#allocation9], 8192
    $region45: #{tpu_custom_call.1} parent=1 // pred_fallthru
      _
    // Predicated region
    $region46: #{tpu_custom_call.1} parent=1 // pred_check
      _
    $region47: #{tpu_custom_call.1} parent=1 // pred_check_branch
      %110 = sbr.rel (0) target = $region49
    $region48: #{tpu_custom_call.1} parent=1 // pred_region
      %111 = dma.done [#allocation9], 32768
    $region49: #{tpu_custom_call.1} parent=1 // pred_fallthru
      _
    // Predicated region
    $region50: #{tpu_custom_call.1} parent=1 // pred_check
      _
    $region51: #{tpu_custom_call.1} parent=1 // pred_check_branch
      %113 = sbr.rel (0) target = $region53
    $region52: #{tpu_custom_call.1} parent=1 // pred_region
      %114 = dma.done [#allocation12], 65536
    $region53: #{tpu_custom_call.1} parent=1 // pred_fallthru
      _
    // Predicated region
    $region54: #{tpu_custom_call.1} parent=1 // pred_check
      _
    $region55: #{tpu_custom_call.1} parent=1 // pred_check_branch
      %116 = sbr.rel (0) target = $region57
    $region56: #{tpu_custom_call.1} parent=1 // pred_region
      %117 = dma.done [#allocation12], 816
    $region57: #{tpu_custom_call.1} parent=1 // pred_fallthru
      _
    %v119 = vld [vmem:[#allocation2] sm:$0xff]
    %v120 = vpack.c.bf16 %v119, %v119
    %v121 = vld [vmem:[#allocation5] sm:$0xf]
    %v122 = vld [vmem:[#allocation5 + $0x4] sm:$0xf]
    %v123 = vld [vmem:[#allocation5 + $0x8] sm:$0xf]
    %v124 = vld [vmem:[#allocation5 + $0xc] sm:$0xf]
    %v125 = vld [vmem:[#allocation13] sm:$0x1]
    %v127 = vlaneseq
    %v128 = vshrl.u32 %v127, 7
    %v129 = vsub.s32 0, %v128
    %v130 = vrot.slane %v125, %v129
    %v136 = vunpack.c.l.b16 %v121
    %v137 = vunpack.c.l.b16 %v122
    %v138 = vunpack.c.l.b16 %v123
    %v139 = vunpack.c.l.b16 %v124
    %v140 = vpack.c.b16 %v137, %v136
    %v141 = vpack.c.b16 %v139, %v138
    %vm144 = vcmask 261120
    %v146 = vsel %vm144, %v120, 0
    %148 = vmatprep.subr.bf16.mxu0 0
    %149 = vmatpush1.bf16.msra.mxu0 %v140
    %150 = vmatprep.subr.bf16.mxu0 0
    %151 = vmatpush1.bf16.msra.mxu0 %v141
    %152 = vmatprep.subr.bf16.mxu0 0
    %153 = vmatpush1.bf16.msra.mxu0 0
    %154 = vmatprep.subr.bf16.mxu0 0
    %155 = vmatpush1.bf16.msra.mxu0 0
    %156 = vmatprep.subr.bf16.mxu0 0
    %157 = vmatpush1.bf16.msra.mxu0 0
    %158 = vmatprep.subr.bf16.mxu0 0
    %159 = vmatpush1.bf16.msra.mxu0 0
    %160 = vmatprep.subr.bf16.mxu0 0
    %161 = vmatpush1.bf16.msra.mxu0 0
    %162 = vmatprep.subr.bf16.mxu0 0
    %163 = vmatpush1.bf16.msra.mxu0 0
    %164 = vmatprep.subr.bf16.mxu0 0
    %165 = vmatpush1.bf16.msra.mxu0 0
    %166 = vmatprep.subr.bf16.mxu0 0
    %167 = vmatpush1.bf16.msra.mxu0 0
    %168 = vmatprep.subr.bf16.mxu0 0
    %169 = vmatpush1.bf16.msra.mxu0 0
    %170 = vmatprep.subr.bf16.mxu0 0
    %171 = vmatpush1.bf16.msra.mxu0 0
    %172 = vmatprep.subr.bf16.mxu0 0
    %173 = vmatpush1.bf16.msra.mxu0 0
    %174 = vmatprep.subr.bf16.mxu0 0
    %175 = vmatpush1.bf16.msra.mxu0 0
    %176 = vmatprep.subr.bf16.mxu0 0
    %177 = vmatpush1.bf16.msra.mxu0 0
    %178 = vmatprep.subr.bf16.mxu0 0
    %179 = vmatpush1.bf16.msra.mxu0 0
    %180 = vmatprep.mubr.bf16.mxu0 0
    %181 = vmatmul.mubr.bf16.gmra.mrb[0].mxu0 %v146
    %v182 = vpop.f32.mrb[0].mxu0
    %v183 = vadd.f32 %v130, %v182
    %v184 = vpop.f32.mrb[0].mxu0
    %v185 = vpop.f32.mrb[0].mxu0
    %v186 = vpop.f32.mrb[0].mxu0
    %187 = vdwg.mxu0
    %v188 = vmax.f32 %v183, 0.0
    %v189 = vpack.c.bf16 %v188, %v188
    %v190 = vld [vmem:[#allocation7] sm:$0xff]
    %v191 = vld [vmem:[#allocation7 + $0x8] sm:$0xff]
    %v192 = vld [vmem:[#allocation7 + $0x10] sm:$0xff]
    %v193 = vld [vmem:[#allocation7 + $0x18] sm:$0xff]
    %v194 = vld [vmem:[#allocation7 + $0x20] sm:$0xff]
    %v195 = vld [vmem:[#allocation7 + $0x28] sm:$0xff]
    %v196 = vld [vmem:[#allocation7 + $0x30] sm:$0xff]
    %v197 = vld [vmem:[#allocation7 + $0x38] sm:$0xff]
    %v198 = vld [vmem:[#allocation7 + $0x40] sm:$0xff]
    %v199 = vld [vmem:[#allocation7 + $0x48] sm:$0xff]
    %v200 = vld [vmem:[#allocation7 + $0x50] sm:$0xff]
    %v201 = vld [vmem:[#allocation7 + $0x58] sm:$0xff]
    %v202 = vld [vmem:[#allocation7 + $0x60] sm:$0xff]
    %v203 = vld [vmem:[#allocation7 + $0x68] sm:$0xff]
    %v204 = vld [vmem:[#allocation7 + $0x70] sm:$0xff]
    %v205 = vld [vmem:[#allocation7 + $0x78] sm:$0xff]
    %v206 = vld [vmem:[#allocation13 + $0x1] sm:$0x3]
    %v208 = vlaneseq
    %v209 = vshrl.u32 %v208, 7
    %v210 = vsub.s32 0, %v209
    %v211 = vrot.slane %v206, %v210
    %v212 = vlaneseq
    %v213 = vshrl.u32 %v212, 7
    %v214 = vsub.s32 1, %v213
    %v215 = vrot.slane %v206, %v214
    %v234 = vunpack.c.l.b16 %v190
    %v235 = vunpack.c.h.b16 %v190
    %v236 = vunpack.c.l.b16 %v191
    %v237 = vunpack.c.h.b16 %v191
    %v238 = vunpack.c.l.b16 %v192
    %v239 = vunpack.c.h.b16 %v192
    %v240 = vunpack.c.l.b16 %v193
    %v241 = vunpack.c.h.b16 %v193
    %v242 = vunpack.c.l.b16 %v194
    %v243 = vunpack.c.h.b16 %v194
    %v244 = vunpack.c.l.b16 %v195
    %v245 = vunpack.c.h.b16 %v195
    %v246 = vunpack.c.l.b16 %v196
    %v247 = vunpack.c.h.b16 %v196
    %v248 = vunpack.c.l.b16 %v197
    %v249 = vunpack.c.h.b16 %v197
    %v250 = vunpack.c.l.b16 %v198
    %v251 = vunpack.c.h.b16 %v198
    %v252 = vunpack.c.l.b16 %v199
    %v253 = vunpack.c.h.b16 %v199
    %v254 = vunpack.c.l.b16 %v200
    %v255 = vunpack.c.h.b16 %v200
    %v256 = vunpack.c.l.b16 %v201
    %v257 = vunpack.c.h.b16 %v201
    %v258 = vunpack.c.l.b16 %v202
    %v259 = vunpack.c.h.b16 %v202
    %v260 = vunpack.c.l.b16 %v203
    %v261 = vunpack.c.h.b16 %v203
    %v262 = vunpack.c.l.b16 %v204
    %v263 = vunpack.c.h.b16 %v204
    %v264 = vunpack.c.l.b16 %v205
    %v265 = vunpack.c.h.b16 %v205
    %v266 = vpack.c.b16 %v236, %v234
    %v267 = vpack.c.b16 %v237, %v235
    %v268 = vpack.c.b16 %v240, %v238
    %v269 = vpack.c.b16 %v241, %v239
    %v270 = vpack.c.b16 %v244, %v242
    %v271 = vpack.c.b16 %v245, %v243
    %v272 = vpack.c.b16 %v248, %v246
    %v273 = vpack.c.b16 %v249, %v247
    %v274 = vpack.c.b16 %v252, %v250
    %v275 = vpack.c.b16 %v253, %v251
    %v276 = vpack.c.b16 %v256, %v254
    %v277 = vpack.c.b16 %v257, %v255
    %v278 = vpack.c.b16 %v260, %v258
    %v279 = vpack.c.b16 %v261, %v259
    %v280 = vpack.c.b16 %v264, %v262
    %v281 = vpack.c.b16 %v265, %v263
    %298 = vmatprep.subr.bf16.mxu0 %v267
    %299 = vmatpush1.bf16.msra.mxu0 %v266
    %300 = vmatprep.subr.bf16.mxu0 %v269
    %301 = vmatpush1.bf16.msra.mxu0 %v268
    %302 = vmatprep.subr.bf16.mxu0 %v271
    %303 = vmatpush1.bf16.msra.mxu0 %v270
    %304 = vmatprep.subr.bf16.mxu0 %v273
    %305 = vmatpush1.bf16.msra.mxu0 %v272
    %306 = vmatprep.subr.bf16.mxu0 %v275
    %307 = vmatpush1.bf16.msra.mxu0 %v274
    %308 = vmatprep.subr.bf16.mxu0 %v277
    %309 = vmatpush1.bf16.msra.mxu0 %v276
    %310 = vmatprep.subr.bf16.mxu0 %v279
    %311 = vmatpush1.bf16.msra.mxu0 %v278
    %312 = vmatprep.subr.bf16.mxu0 %v281
    %313 = vmatpush1.bf16.msra.mxu0 %v280
    %314 = vmatprep.subr.bf16.mxu0 0
    %315 = vmatpush1.bf16.msra.mxu0 0
    %316 = vmatprep.subr.bf16.mxu0 0
    %317 = vmatpush1.bf16.msra.mxu0 0
    %318 = vmatprep.subr.bf16.mxu0 0
    %319 = vmatpush1.bf16.msra.mxu0 0
    %320 = vmatprep.subr.bf16.mxu0 0
    %321 = vmatpush1.bf16.msra.mxu0 0
    %322 = vmatprep.subr.bf16.mxu0 0
    %323 = vmatpush1.bf16.msra.mxu0 0
    %324 = vmatprep.subr.bf16.mxu0 0
    %325 = vmatpush1.bf16.msra.mxu0 0
    %326 = vmatprep.subr.bf16.mxu0 0
    %327 = vmatpush1.bf16.msra.mxu0 0
    %328 = vmatprep.subr.bf16.mxu0 0
    %329 = vmatpush1.bf16.msra.mxu0 0
    %330 = vmatprep.mubr.bf16.mxu0 0
    %331 = vmatmul.mubr.bf16.gmra.mrb[0].mxu0 %v189
    %v332 = vpop.f32.mrb[0].mxu0
    %v333 = vadd.f32 %v211, %v332
    %v334 = vpop.f32.mrb[0].mxu0
    %v335 = vadd.f32 %v215, %v334
    %v336 = vpop.f32.mrb[0].mxu0
    %v337 = vpop.f32.mrb[0].mxu0
    %338 = vdwg.mxu0
    %v339 = vrot.slane %v333, 4
    %v340 = vadd.f32 %v333, %v339
    %v341 = vrot.slane %v340, 2
    %v342 = vadd.f32 %v340, %v341
    %v343 = vrot.slane %v342, 1
    %v344 = vadd.f32 %v342, %v343
    %v345 = vrot.slane %v335, 4
    %v346 = vadd.f32 %v335, %v345
    %v347 = vrot.slane %v346, 2
    %v348 = vadd.f32 %v346, %v347
    %v349 = vrot.slane %v348, 1
    %v350 = vadd.f32 %v348, %v349
    %v351 = vrcp.pop 8.0
    %v352 = vmul.f32 %v344, %v351
    %v353 = vmul.f32 %v350, %v351
    %v354 = vmul.f32 %v333, %v333
    %v355 = vmul.f32 %v335, %v335
    %v356 = vrot.slane %v354, 4
    %v357 = vadd.f32 %v354, %v356
    %v358 = vrot.slane %v357, 2
    %v359 = vadd.f32 %v357, %v358
    %v360 = vrot.slane %v359, 1
    %v361 = vadd.f32 %v359, %v360
    %v362 = vrot.slane %v355, 4
    %v363 = vadd.f32 %v355, %v362
    %v364 = vrot.slane %v363, 2
    %v365 = vadd.f32 %v363, %v364
    %v366 = vrot.slane %v365, 1
    %v367 = vadd.f32 %v365, %v366
    %v368 = vmul.f32 %v361, %v351
    %v369 = vmul.f32 %v367, %v351
    %v370 = vmul.f32 %v352, %v352
    %v371 = vmul.f32 %v353, %v353
    %v372 = vsub.f32 %v368, %v370
    %v373 = vsub.f32 %v369, %v371
    %v374 = vsub.f32 %v333, %v352
    %v375 = vsub.f32 %v335, %v353
    %v376 = vadd.f32 %v372, 0.8
    %v377 = vadd.f32 %v373, 0.8
    %v378 = vrsqrt.pop %v376
    %v379 = vrsqrt.pop %v377
    %v380 = vmul.f32 %v374, %v378
    %v381 = vmul.f32 %v375, %v379
    %v382 = vld [vmem:[#allocation13 + $0x3] sm:$0x3]
    %v384 = vlaneseq
    %v385 = vshrl.u32 %v384, 7
    %v386 = vsub.s32 0, %v385
    %v387 = vrot.slane %v382, %v386
    %v388 = vlaneseq
    %v389 = vshrl.u32 %v388, 7
    %v390 = vsub.s32 1, %v389
    %v391 = vrot.slane %v382, %v390
    %v394 = vmul.f32 %v380, %v387
    %v395 = vmul.f32 %v381, %v391
    %v396 = vld [vmem:[#allocation13 + $0x5] sm:$0x3]
    %v398 = vlaneseq
    %v399 = vshrl.u32 %v398, 7
    %v400 = vsub.s32 0, %v399
    %v401 = vrot.slane %v396, %v400
    %v402 = vlaneseq
    %v403 = vshrl.u32 %v402, 7
    %v404 = vsub.s32 1, %v403
    %v405 = vrot.slane %v396, %v404
    %v408 = vadd.f32 %v394, %v401
    %v409 = vadd.f32 %v395, %v405
    %v410 = vmax.f32 %v408, 0.0
    %v411 = vmax.f32 %v409, 0.0
    %v412 = vpack.c.bf16 %v410, %v410
    %v413 = vpack.c.bf16 %v411, %v411
    %v414 = vld [vmem:[#allocation8] sm:$0xff]
    %v415 = vld [vmem:[#allocation8 + $0x8] sm:$0xff]
    %v416 = vld [vmem:[#allocation8 + $0x10] sm:$0xff]
    %v417 = vld [vmem:[#allocation8 + $0x18] sm:$0xff]
    %v418 = vld [vmem:[#allocation8 + $0x20] sm:$0xff]
    %v419 = vld [vmem:[#allocation8 + $0x28] sm:$0xff]
    %v420 = vld [vmem:[#allocation8 + $0x30] sm:$0xff]
    %v421 = vld [vmem:[#allocation8 + $0x38] sm:$0xff]
    %v422 = vld [vmem:[#allocation8 + $0x40] sm:$0xff]
    %v423 = vld [vmem:[#allocation8 + $0x48] sm:$0xff]
    %v424 = vld [vmem:[#allocation8 + $0x50] sm:$0xff]
    %v425 = vld [vmem:[#allocation8 + $0x58] sm:$0xff]
    %v426 = vld [vmem:[#allocation8 + $0x60] sm:$0xff]
    %v427 = vld [vmem:[#allocation8 + $0x68] sm:$0xff]
    %v428 = vld [vmem:[#allocation8 + $0x70] sm:$0xff]
    %v429 = vld [vmem:[#allocation8 + $0x78] sm:$0xff]
    %v430 = vld [vmem:[#allocation8 + $0x80] sm:$0xff]
    %v431 = vld [vmem:[#allocation8 + $0x88] sm:$0xff]
    %v432 = vld [vmem:[#allocation8 + $0x90] sm:$0xff]
    %v433 = vld [vmem:[#allocation8 + $0x98] sm:$0xff]
    %v434 = vld [vmem:[#allocation8 + $0xa0] sm:$0xff]
    %v435 = vld [vmem:[#allocation8 + $0xa8] sm:$0xff]
    %v436 = vld [vmem:[#allocation8 + $0xb0] sm:$0xff]
    %v437 = vld [vmem:[#allocation8 + $0xb8] sm:$0xff]
    %v438 = vld [vmem:[#allocation8 + $0xc0] sm:$0xff]
    %v439 = vld [vmem:[#allocation8 + $0xc8] sm:$0xff]
    %v440 = vld [vmem:[#allocation8 + $0xd0] sm:$0xff]
    %v441 = vld [vmem:[#allocation8 + $0xd8] sm:$0xff]
    %v442 = vld [vmem:[#allocation8 + $0xe0] sm:$0xff]
    %v443 = vld [vmem:[#allocation8 + $0xe8] sm:$0xff]
    %v444 = vld [vmem:[#allocation8 + $0xf0] sm:$0xff]
    %v445 = vld [vmem:[#allocation8 + $0xf8] sm:$0xff]
    %v446 = vld [vmem:[#allocation8 + $0x100] sm:$0xff]
    %v447 = vld [vmem:[#allocation8 + $0x108] sm:$0xff]
    %v448 = vld [vmem:[#allocation8 + $0x110] sm:$0xff]
    %v449 = vld [vmem:[#allocation8 + $0x118] sm:$0xff]
    %v450 = vld [vmem:[#allocation8 + $0x120] sm:$0xff]
    %v451 = vld [vmem:[#allocation8 + $0x128] sm:$0xff]
    %v452 = vld [vmem:[#allocation8 + $0x130] sm:$0xff]
    %v453 = vld [vmem:[#allocation8 + $0x138] sm:$0xff]
    %v454 = vld [vmem:[#allocation8 + $0x140] sm:$0xff]
    %v455 = vld [vmem:[#allocation8 + $0x148] sm:$0xff]
    %v456 = vld [vmem:[#allocation8 + $0x150] sm:$0xff]
    %v457 = vld [vmem:[#allocation8 + $0x158] sm:$0xff]
    %v458 = vld [vmem:[#allocation8 + $0x160] sm:$0xff]
    %v459 = vld [vmem:[#allocation8 + $0x168] sm:$0xff]
    %v460 = vld [vmem:[#allocation8 + $0x170] sm:$0xff]
    %v461 = vld [vmem:[#allocation8 + $0x178] sm:$0xff]
    %v462 = vld [vmem:[#allocation8 + $0x180] sm:$0xff]
    %v463 = vld [vmem:[#allocation8 + $0x188] sm:$0xff]
    %v464 = vld [vmem:[#allocation8 + $0x190] sm:$0xff]
    %v465 = vld [vmem:[#allocation8 + $0x198] sm:$0xff]
    %v466 = vld [vmem:[#allocation8 + $0x1a0] sm:$0xff]
    %v467 = vld [vmem:[#allocation8 + $0x1a8] sm:$0xff]
    %v468 = vld [vmem:[#allocation8 + $0x1b0] sm:$0xff]
    %v469 = vld [vmem:[#allocation8 + $0x1b8] sm:$0xff]
    %v470 = vld [vmem:[#allocation8 + $0x1c0] sm:$0xff]
    %v471 = vld [vmem:[#allocation8 + $0x1c8] sm:$0xff]
    %v472 = vld [vmem:[#allocation8 + $0x1d0] sm:$0xff]
    %v473 = vld [vmem:[#allocation8 + $0x1d8] sm:$0xff]
    %v474 = vld [vmem:[#allocation8 + $0x1e0] sm:$0xff]
    %v475 = vld [vmem:[#allocation8 + $0x1e8] sm:$0xff]
    %v476 = vld [vmem:[#allocation8 + $0x1f0] sm:$0xff]
    %v477 = vld [vmem:[#allocation8 + $0x1f8] sm:$0xff]
    %v478 = vld [vmem:[#allocation13 + $0x7] sm:$0xf]
    %v480 = vlaneseq
    %v481 = vshrl.u32 %v480, 7
    %v482 = vsub.s32 0, %v481
    %v483 = vrot.slane %v478, %v482
    %v484 = vlaneseq
    %v485 = vshrl.u32 %v484, 7
    %v486 = vsub.s32 1, %v485
    %v487 = vrot.slane %v478, %v486
    %v488 = vlaneseq
    %v489 = vshrl.u32 %v488, 7
    %v490 = vsub.s32 2, %v489
    %v491 = vrot.slane %v478, %v490
    %v492 = vlaneseq
    %v493 = vshrl.u32 %v492, 7
    %v494 = vsub.s32 3, %v493
    %v495 = vrot.slane %v478, %v494
    %v564 = vunpack.c.l.b16 %v414
    %v565 = vunpack.c.h.b16 %v414
    %v566 = vunpack.c.l.b16 %v415
    %v567 = vunpack.c.h.b16 %v415
    %v568 = vunpack.c.l.b16 %v416
    %v569 = vunpack.c.h.b16 %v416
    %v570 = vunpack.c.l.b16 %v417
    %v571 = vunpack.c.h.b16 %v417
    %v572 = vunpack.c.l.b16 %v418
    %v573 = vunpack.c.h.b16 %v418
    %v574 = vunpack.c.l.b16 %v419
    %v575 = vunpack.c.h.b16 %v419
    %v576 = vunpack.c.l.b16 %v420
    %v577 = vunpack.c.h.b16 %v420
    %v578 = vunpack.c.l.b16 %v421
    %v579 = vunpack.c.h.b16 %v421
    %v580 = vunpack.c.l.b16 %v422
    %v581 = vunpack.c.h.b16 %v422
    %v582 = vunpack.c.l.b16 %v423
    %v583 = vunpack.c.h.b16 %v423
    %v584 = vunpack.c.l.b16 %v424
    %v585 = vunpack.c.h.b16 %v424
    %v586 = vunpack.c.l.b16 %v425
    %v587 = vunpack.c.h.b16 %v425
    %v588 = vunpack.c.l.b16 %v426
    %v589 = vunpack.c.h.b16 %v426
    %v590 = vunpack.c.l.b16 %v427
    %v591 = vunpack.c.h.b16 %v427
    %v592 = vunpack.c.l.b16 %v428
    %v593 = vunpack.c.h.b16 %v428
    %v594 = vunpack.c.l.b16 %v429
    %v595 = vunpack.c.h.b16 %v429
    %v596 = vunpack.c.l.b16 %v430
    %v597 = vunpack.c.h.b16 %v430
    %v598 = vunpack.c.l.b16 %v431
    %v599 = vunpack.c.h.b16 %v431
    %v600 = vunpack.c.l.b16 %v432
    %v601 = vunpack.c.h.b16 %v432
    %v602 = vunpack.c.l.b16 %v433
    %v603 = vunpack.c.h.b16 %v433
    %v604 = vunpack.c.l.b16 %v434
    %v605 = vunpack.c.h.b16 %v434
    %v606 = vunpack.c.l.b16 %v435
    %v607 = vunpack.c.h.b16 %v435
    %v608 = vunpack.c.l.b16 %v436
    %v609 = vunpack.c.h.b16 %v436
    %v610 = vunpack.c.l.b16 %v437
    %v611 = vunpack.c.h.b16 %v437
    %v612 = vunpack.c.l.b16 %v438
    %v613 = vunpack.c.h.b16 %v438
    %v614 = vunpack.c.l.b16 %v439
    %v615 = vunpack.c.h.b16 %v439
    %v616 = vunpack.c.l.b16 %v440
    %v617 = vunpack.c.h.b16 %v440
    %v618 = vunpack.c.l.b16 %v441
    %v619 = vunpack.c.h.b16 %v441
    %v620 = vunpack.c.l.b16 %v442
    %v621 = vunpack.c.h.b16 %v442
    %v622 = vunpack.c.l.b16 %v443
    %v623 = vunpack.c.h.b16 %v443
    %v624 = vunpack.c.l.b16 %v444
    %v625 = vunpack.c.h.b16 %v444
    %v626 = vunpack.c.l.b16 %v445
    %v627 = vunpack.c.h.b16 %v445
    %v628 = vunpack.c.l.b16 %v446
    %v629 = vunpack.c.h.b16 %v446
    %v630 = vunpack.c.l.b16 %v447
    %v631 = vunpack.c.h.b16 %v447
    %v632 = vunpack.c.l.b16 %v448
    %v633 = vunpack.c.h.b16 %v448
    %v634 = vunpack.c.l.b16 %v449
    %v635 = vunpack.c.h.b16 %v449
    %v636 = vunpack.c.l.b16 %v450
    %v637 = vunpack.c.h.b16 %v450
    %v638 = vunpack.c.l.b16 %v451
    %v639 = vunpack.c.h.b16 %v451
    %v640 = vunpack.c.l.b16 %v452
    %v641 = vunpack.c.h.b16 %v452
    %v642 = vunpack.c.l.b16 %v453
    %v643 = vunpack.c.h.b16 %v453
    %v644 = vunpack.c.l.b16 %v454
    %v645 = vunpack.c.h.b16 %v454
    %v646 = vunpack.c.l.b16 %v455
    %v647 = vunpack.c.h.b16 %v455
    %v648 = vunpack.c.l.b16 %v456
    %v649 = vunpack.c.h.b16 %v456
    %v650 = vunpack.c.l.b16 %v457
    %v651 = vunpack.c.h.b16 %v457
    %v652 = vunpack.c.l.b16 %v458
    %v653 = vunpack.c.h.b16 %v458
    %v654 = vunpack.c.l.b16 %v459
    %v655 = vunpack.c.h.b16 %v459
    %v656 = vunpack.c.l.b16 %v460
    %v657 = vunpack.c.h.b16 %v460
    %v658 = vunpack.c.l.b16 %v461
    %v659 = vunpack.c.h.b16 %v461
    %v660 = vunpack.c.l.b16 %v462
    %v661 = vunpack.c.h.b16 %v462
    %v662 = vunpack.c.l.b16 %v463
    %v663 = vunpack.c.h.b16 %v463
    %v664 = vunpack.c.l.b16 %v464
    %v665 = vunpack.c.h.b16 %v464
    %v666 = vunpack.c.l.b16 %v465
    %v667 = vunpack.c.h.b16 %v465
    %v668 = vunpack.c.l.b16 %v466
    %v669 = vunpack.c.h.b16 %v466
    %v670 = vunpack.c.l.b16 %v467
    %v671 = vunpack.c.h.b16 %v467
    %v672 = vunpack.c.l.b16 %v468
    %v673 = vunpack.c.h.b16 %v468
    %v674 = vunpack.c.l.b16 %v469
    %v675 = vunpack.c.h.b16 %v469
    %v676 = vunpack.c.l.b16 %v470
    %v677 = vunpack.c.h.b16 %v470
    %v678 = vunpack.c.l.b16 %v471
    %v679 = vunpack.c.h.b16 %v471
    %v680 = vunpack.c.l.b16 %v472
    %v681 = vunpack.c.h.b16 %v472
    %v682 = vunpack.c.l.b16 %v473
    %v683 = vunpack.c.h.b16 %v473
    %v684 = vunpack.c.l.b16 %v474
    %v685 = vunpack.c.h.b16 %v474
    %v686 = vunpack.c.l.b16 %v475
    %v687 = vunpack.c.h.b16 %v475
    %v688 = vunpack.c.l.b16 %v476
    %v689 = vunpack.c.h.b16 %v476
    %v690 = vunpack.c.l.b16 %v477
    %v691 = vunpack.c.h.b16 %v477
    %v692 = vpack.c.b16 %v568, %v564
    %v693 = vpack.c.b16 %v569, %v565
    %v694 = vpack.c.b16 %v570, %v566
    %v695 = vpack.c.b16 %v571, %v567
    %v696 = vpack.c.b16 %v576, %v572
    %v697 = vpack.c.b16 %v577, %v573
    %v698 = vpack.c.b16 %v578, %v574
    %v699 = vpack.c.b16 %v579, %v575
    %v700 = vpack.c.b16 %v584, %v580
    %v701 = vpack.c.b16 %v585, %v581
    %v702 = vpack.c.b16 %v586, %v582
    %v703 = vpack.c.b16 %v587, %v583
    %v704 = vpack.c.b16 %v592, %v588
    %v705 = vpack.c.b16 %v593, %v589
    %v706 = vpack.c.b16 %v594, %v590
    %v707 = vpack.c.b16 %v595, %v591
    %v708 = vpack.c.b16 %v600, %v596
    %v709 = vpack.c.b16 %v601, %v597
    %v710 = vpack.c.b16 %v602, %v598
    %v711 = vpack.c.b16 %v603, %v599
    %v712 = vpack.c.b16 %v608, %v604
    %v713 = vpack.c.b16 %v609, %v605
    %v714 = vpack.c.b16 %v610, %v606
    %v715 = vpack.c.b16 %v611, %v607
    %v716 = vpack.c.b16 %v616, %v612
    %v717 = vpack.c.b16 %v617, %v613
    %v718 = vpack.c.b16 %v618, %v614
    %v719 = vpack.c.b16 %v619, %v615
    %v720 = vpack.c.b16 %v624, %v620
    %v721 = vpack.c.b16 %v625, %v621
    %v722 = vpack.c.b16 %v626, %v622
    %v723 = vpack.c.b16 %v627, %v623
    %v724 = vpack.c.b16 %v632, %v628
    %v725 = vpack.c.b16 %v633, %v629
    %v726 = vpack.c.b16 %v634, %v630
    %v727 = vpack.c.b16 %v635, %v631
    %v728 = vpack.c.b16 %v640, %v636
    %v729 = vpack.c.b16 %v641, %v637
    %v730 = vpack.c.b16 %v642, %v638
    %v731 = vpack.c.b16 %v643, %v639
    %v732 = vpack.c.b16 %v648, %v644
    %v733 = vpack.c.b16 %v649, %v645
    %v734 = vpack.c.b16 %v650, %v646
    %v735 = vpack.c.b16 %v651, %v647
    %v736 = vpack.c.b16 %v656, %v652
    %v737 = vpack.c.b16 %v657, %v653
    %v738 = vpack.c.b16 %v658, %v654
    %v739 = vpack.c.b16 %v659, %v655
    %v740 = vpack.c.b16 %v664, %v660
    %v741 = vpack.c.b16 %v665, %v661
    %v742 = vpack.c.b16 %v666, %v662
    %v743 = vpack.c.b16 %v667, %v663
    %v744 = vpack.c.b16 %v672, %v668
    %v745 = vpack.c.b16 %v673, %v669
    %v746 = vpack.c.b16 %v674, %v670
    %v747 = vpack.c.b16 %v675, %v671
    %v748 = vpack.c.b16 %v680, %v676
    %v749 = vpack.c.b16 %v681, %v677
    %v750 = vpack.c.b16 %v682, %v678
    %v751 = vpack.c.b16 %v683, %v679
    %v752 = vpack.c.b16 %v688, %v684
    %v753 = vpack.c.b16 %v689, %v685
    %v754 = vpack.c.b16 %v690, %v686
    %v755 = vpack.c.b16 %v691, %v687
    %820 = vmatprep.subr.bf16.mxu0 %v693
    %821 = vmatpush1.bf16.msra.mxu0 %v692
    %822 = vmatprep.subr.bf16.mxu0 %v697
    %823 = vmatpush1.bf16.msra.mxu0 %v696
    %824 = vmatprep.subr.bf16.mxu0 %v701
    %825 = vmatpush1.bf16.msra.mxu0 %v700
    %826 = vmatprep.subr.bf16.mxu0 %v705
    %827 = vmatpush1.bf16.msra.mxu0 %v704
    %828 = vmatprep.subr.bf16.mxu0 %v709
    %829 = vmatpush1.bf16.msra.mxu0 %v708
    %830 = vmatprep.subr.bf16.mxu0 %v713
    %831 = vmatpush1.bf16.msra.mxu0 %v712
    %832 = vmatprep.subr.bf16.mxu0 %v717
    %833 = vmatpush1.bf16.msra.mxu0 %v716
    %834 = vmatprep.subr.bf16.mxu0 %v721
    %835 = vmatpush1.bf16.msra.mxu0 %v720
    %836 = vmatprep.subr.bf16.mxu0 %v725
    %837 = vmatpush1.bf16.msra.mxu0 %v724
    %838 = vmatprep.subr.bf16.mxu0 %v729
    %839 = vmatpush1.bf16.msra.mxu0 %v728
    %840 = vmatprep.subr.bf16.mxu0 %v733
    %841 = vmatpush1.bf16.msra.mxu0 %v732
    %842 = vmatprep.subr.bf16.mxu0 %v737
    %843 = vmatpush1.bf16.msra.mxu0 %v736
    %844 = vmatprep.subr.bf16.mxu0 %v741
    %845 = vmatpush1.bf16.msra.mxu0 %v740
    %846 = vmatprep.subr.bf16.mxu0 %v745
    %847 = vmatpush1.bf16.msra.mxu0 %v744
    %848 = vmatprep.subr.bf16.mxu0 %v749
    %849 = vmatpush1.bf16.msra.mxu0 %v748
    %850 = vmatprep.subr.bf16.mxu0 %v753
    %851 = vmatpush1.bf16.msra.mxu0 %v752
    %852 = vmatprep.mubr.bf16.mxu0 %v413
    %853 = vmatmul.mubr.bf16.gmra.mrb[0].mxu0 %v412
    %v854 = vpop.f32.mrb[0].mxu0
    %v855 = vadd.f32 %v483, %v854
    %v856 = vpop.f32.mrb[0].mxu0
    %v857 = vadd.f32 %v487, %v856
    %v858 = vpop.f32.mrb[0].mxu0
    %v859 = vpop.f32.mrb[0].mxu0
    %860 = vdwg.mxu0
    %861 = vmatprep.subr.bf16.mxu0 %v695
    %862 = vmatpush1.bf16.msra.mxu0 %v694
    %863 = vmatprep.subr.bf16.mxu0 %v699
    %864 = vmatpush1.bf16.msra.mxu0 %v698
    %865 = vmatprep.subr.bf16.mxu0 %v703
    %866 = vmatpush1.bf16.msra.mxu0 %v702
    %867 = vmatprep.subr.bf16.mxu0 %v707
    %868 = vmatpush1.bf16.msra.mxu0 %v706
    %869 = vmatprep.subr.bf16.mxu0 %v711
    %870 = vmatpush1.bf16.msra.mxu0 %v710
    %871 = vmatprep.subr.bf16.mxu0 %v715
    %872 = vmatpush1.bf16.msra.mxu0 %v714
    %873 = vmatprep.subr.bf16.mxu0 %v719
    %874 = vmatpush1.bf16.msra.mxu0 %v718
    %875 = vmatprep.subr.bf16.mxu0 %v723
    %876 = vmatpush1.bf16.msra.mxu0 %v722
    %877 = vmatprep.subr.bf16.mxu0 %v727
    %878 = vmatpush1.bf16.msra.mxu0 %v726
    %879 = vmatprep.subr.bf16.mxu0 %v731
    %880 = vmatpush1.bf16.msra.mxu0 %v730
    %881 = vmatprep.subr.bf16.mxu0 %v735
    %882 = vmatpush1.bf16.msra.mxu0 %v734
    %883 = vmatprep.subr.bf16.mxu0 %v739
    %884 = vmatpush1.bf16.msra.mxu0 %v738
    %885 = vmatprep.subr.bf16.mxu0 %v743
    %886 = vmatpush1.bf16.msra.mxu0 %v742
    %887 = vmatprep.subr.bf16.mxu0 %v747
    %888 = vmatpush1.bf16.msra.mxu0 %v746
    %889 = vmatprep.subr.bf16.mxu0 %v751
    %890 = vmatpush1.bf16.msra.mxu0 %v750
    %891 = vmatprep.subr.bf16.mxu0 %v755
    %892 = vmatpush1.bf16.msra.mxu0 %v754
    %893 = vmatprep.mubr.bf16.mxu0 %v413
    %894 = vmatmul.mubr.bf16.gmra.mrb[0].mxu0 %v412
    %v895 = vpop.f32.mrb[0].mxu0
    %v896 = vadd.f32 %v491, %v895
    %v897 = vpop.f32.mrb[0].mxu0
    %v898 = vadd.f32 %v495, %v897
    %v899 = vpop.f32.mrb[0].mxu0
    %v900 = vpop.f32.mrb[0].mxu0
    %901 = vdwg.mxu0
    %v902 = vrot.slane %v855, 4
    %v903 = vadd.f32 %v855, %v902
    %v904 = vrot.slane %v903, 2
    %v905 = vadd.f32 %v903, %v904
    %v906 = vrot.slane %v905, 1
    %v907 = vadd.f32 %v905, %v906
    %v908 = vrot.slane %v857, 4
    %v909 = vadd.f32 %v857, %v908
    %v910 = vrot.slane %v909, 2
    %v911 = vadd.f32 %v909, %v910
    %v912 = vrot.slane %v911, 1
    %v913 = vadd.f32 %v911, %v912
    %v914 = vrot.slane %v896, 4
    %v915 = vadd.f32 %v896, %v914
    %v916 = vrot.slane %v915, 2
    %v917 = vadd.f32 %v915, %v916
    %v918 = vrot.slane %v917, 1
    %v919 = vadd.f32 %v917, %v918
    %v920 = vrot.slane %v898, 4
    %v921 = vadd.f32 %v898, %v920
    %v922 = vrot.slane %v921, 2
    %v923 = vadd.f32 %v921, %v922
    %v924 = vrot.slane %v923, 1
    %v925 = vadd.f32 %v923, %v924
    %v926 = vmul.f32 %v907, %v351
    %v927 = vmul.f32 %v913, %v351
    %v928 = vmul.f32 %v919, %v351
    %v929 = vmul.f32 %v925, %v351
    %v930 = vmul.f32 %v855, %v855
    %v931 = vmul.f32 %v857, %v857
    %v932 = vmul.f32 %v896, %v896
    %v933 = vmul.f32 %v898, %v898
    %v934 = vrot.slane %v930, 4
    %v935 = vadd.f32 %v930, %v934
    %v936 = vrot.slane %v935, 2
    %v937 = vadd.f32 %v935, %v936
    %v938 = vrot.slane %v937, 1
    %v939 = vadd.f32 %v937, %v938
    %v940 = vrot.slane %v931, 4
    %v941 = vadd.f32 %v931, %v940
    %v942 = vrot.slane %v941, 2
    %v943 = vadd.f32 %v941, %v942
    %v944 = vrot.slane %v943, 1
    %v945 = vadd.f32 %v943, %v944
    %v946 = vrot.slane %v932, 4
    %v947 = vadd.f32 %v932, %v946
    %v948 = vrot.slane %v947, 2
    %v949 = vadd.f32 %v947, %v948
    %v950 = vrot.slane %v949, 1
    %v951 = vadd.f32 %v949, %v950
    %v952 = vrot.slane %v933, 4
    %v953 = vadd.f32 %v933, %v952
    %v954 = vrot.slane %v953, 2
    %v955 = vadd.f32 %v953, %v954
    %v956 = vrot.slane %v955, 1
    %v957 = vadd.f32 %v955, %v956
    %v958 = vmul.f32 %v939, %v351
    %v959 = vmul.f32 %v945, %v351
    %v960 = vmul.f32 %v951, %v351
    %v961 = vmul.f32 %v957, %v351
    %v962 = vmul.f32 %v926, %v926
    %v963 = vmul.f32 %v927, %v927
    %v964 = vmul.f32 %v928, %v928
    %v965 = vmul.f32 %v929, %v929
    %v966 = vsub.f32 %v958, %v962
    %v967 = vsub.f32 %v959, %v963
    %v968 = vsub.f32 %v960, %v964
    %v969 = vsub.f32 %v961, %v965
    %v970 = vsub.f32 %v855, %v926
    %v971 = vsub.f32 %v857, %v927
    %v972 = vsub.f32 %v896, %v928
    %v973 = vsub.f32 %v898, %v929
    %v974 = vadd.f32 %v966, 0.8
    %v975 = vadd.f32 %v967, 0.8
    %v976 = vadd.f32 %v968, 0.8
    %v977 = vadd.f32 %v969, 0.8
    %v978 = vrsqrt.pop %v974
    %v979 = vrsqrt.pop %v975
    %v980 = vrsqrt.pop %v976
    %v981 = vrsqrt.pop %v977
    %v982 = vmul.f32 %v970, %v978
    %v983 = vmul.f32 %v971, %v979
    %v984 = vmul.f32 %v972, %v980
    %v985 = vmul.f32 %v973, %v981
    %v986 = vld [vmem:[#allocation13 + $0xb] sm:$0xf]
    %v988 = vlaneseq
    %v989 = vshrl.u32 %v988, 7
    %v990 = vsub.s32 0, %v989
    %v991 = vrot.slane %v986, %v990
    %v992 = vlaneseq
    %v993 = vshrl.u32 %v992, 7
    %v994 = vsub.s32 1, %v993
    %v995 = vrot.slane %v986, %v994
    %v996 = vlaneseq
    %v997 = vshrl.u32 %v996, 7
    %v998 = vsub.s32 2, %v997
    %v999 = vrot.slane %v986, %v998
    %v1000 = vlaneseq
    %v1001 = vshrl.u32 %v1000, 7
    %v1002 = vsub.s32 3, %v1001
    %v1003 = vrot.slane %v986, %v1002
    %v1008 = vmul.f32 %v982, %v991
    %v1009 = vmul.f32 %v983, %v995
    %v1010 = vmul.f32 %v984, %v999
    %v1011 = vmul.f32 %v985, %v1003
    %v1012 = vld [vmem:[#allocation13 + $0xf] sm:$0xf]
    %v1014 = vlaneseq
    %v1015 = vshrl.u32 %v1014, 7
    %v1016 = vsub.s32 0, %v1015
    %v1017 = vrot.slane %v1012, %v1016
    %v1018 = vlaneseq
    %v1019 = vshrl.u32 %v1018, 7
    %v1020 = vsub.s32 1, %v1019
    %v1021 = vrot.slane %v1012, %v1020
    %v1022 = vlaneseq
    %v1023 = vshrl.u32 %v1022, 7
    %v1024 = vsub.s32 2, %v1023
    %v1025 = vrot.slane %v1012, %v1024
    %v1026 = vlaneseq
    %v1027 = vshrl.u32 %v1026, 7
    %v1028 = vsub.s32 3, %v1027
    %v1029 = vrot.slane %v1012, %v1028
    %v1034 = vadd.f32 %v1008, %v1017
    %v1035 = vadd.f32 %v1009, %v1021
    %v1036 = vadd.f32 %v1010, %v1025
    %v1037 = vadd.f32 %v1011, %v1029
    %v1038 = vmax.f32 %v1034, 0.0
    %v1039 = vmax.f32 %v1035, 0.0
    %v1040 = vmax.f32 %v1036, 0.0
    %v1041 = vmax.f32 %v1037, 0.0
    %v1042 = vpack.c.bf16 %v1038, %v1038
    %v1043 = vpack.c.bf16 %v1039, %v1039
    %v1044 = vpack.c.bf16 %v1040, %v1040
    %v1045 = vpack.c.bf16 %v1041, %v1041
    %v1046 = vld [vmem:[#allocation10] sm:$0xff]
    %v1047 = vld [vmem:[#allocation10 + $0x8] sm:$0xff]
    %v1048 = vld [vmem:[#allocation10 + $0x10] sm:$0xff]
    %v1049 = vld [vmem:[#allocation10 + $0x18] sm:$0xff]
    %v1050 = vld [vmem:[#allocation10 + $0x20] sm:$0xff]
    %v1051 = vld [vmem:[#allocation10 + $0x28] sm:$0xff]
    %v1052 = vld [vmem:[#allocation10 + $0x30] sm:$0xff]
    %v1053 = vld [vmem:[#allocation10 + $0x38] sm:$0xff]
    %v1054 = vld [vmem:[#allocation10 + $0x40] sm:$0xff]
    %v1055 = vld [vmem:[#allocation10 + $0x48] sm:$0xff]
    %v1056 = vld [vmem:[#allocation10 + $0x50] sm:$0xff]
    %v1057 = vld [vmem:[#allocation10 + $0x58] sm:$0xff]
    %v1058 = vld [vmem:[#allocation10 + $0x60] sm:$0xff]
    %v1059 = vld [vmem:[#allocation10 + $0x68] sm:$0xff]
    %v1060 = vld [vmem:[#allocation10 + $0x70] sm:$0xff]
    %v1061 = vld [vmem:[#allocation10 + $0x78] sm:$0xff]
    %v1062 = vld [vmem:[#allocation10 + $0x80] sm:$0xff]
    %v1063 = vld [vmem:[#allocation10 + $0x88] sm:$0xff]
    %v1064 = vld [vmem:[#allocation10 + $0x90] sm:$0xff]
    %v1065 = vld [vmem:[#allocation10 + $0x98] sm:$0xff]
    %v1066 = vld [vmem:[#allocation10 + $0xa0] sm:$0xff]
    %v1067 = vld [vmem:[#allocation10 + $0xa8] sm:$0xff]
    %v1068 = vld [vmem:[#allocation10 + $0xb0] sm:$0xff]
    %v1069 = vld [vmem:[#allocation10 + $0xb8] sm:$0xff]
    %v1070 = vld [vmem:[#allocation10 + $0xc0] sm:$0xff]
    %v1071 = vld [vmem:[#allocation10 + $0xc8] sm:$0xff]
    %v1072 = vld [vmem:[#allocation10 + $0xd0] sm:$0xff]
    %v1073 = vld [vmem:[#allocation10 + $0xd8] sm:$0xff]
    %v1074 = vld [vmem:[#allocation10 + $0xe0] sm:$0xff]
    %v1075 = vld [vmem:[#allocation10 + $0xe8] sm:$0xff]
    %v1076 = vld [vmem:[#allocation10 + $0xf0] sm:$0xff]
    %v1077 = vld [vmem:[#allocation10 + $0xf8] sm:$0xff]
    %v1078 = vld [vmem:[#allocation10 + $0x100] sm:$0xff]
    %v1079 = vld [vmem:[#allocation10 + $0x108] sm:$0xff]
    %v1080 = vld [vmem:[#allocation10 + $0x110] sm:$0xff]
    %v1081 = vld [vmem:[#allocation10 + $0x118] sm:$0xff]
    %v1082 = vld [vmem:[#allocation10 + $0x120] sm:$0xff]
    %v1083 = vld [vmem:[#allocation10 + $0x128] sm:$0xff]
    %v1084 = vld [vmem:[#allocation10 + $0x130] sm:$0xff]
    %v1085 = vld [vmem:[#allocation10 + $0x138] sm:$0xff]
    %v1086 = vld [vmem:[#allocation10 + $0x140] sm:$0xff]
    %v1087 = vld [vmem:[#allocation10 + $0x148] sm:$0xff]
    %v1088 = vld [vmem:[#allocation10 + $0x150] sm:$0xff]
    %v1089 = vld [vmem:[#allocation10 + $0x158] sm:$0xff]
    %v1090 = vld [vmem:[#allocation10 + $0x160] sm:$0xff]
    %v1091 = vld [vmem:[#allocation10 + $0x168] sm:$0xff]
    %v1092 = vld [vmem:[#allocation10 + $0x170] sm:$0xff]
    %v1093 = vld [vmem:[#allocation10 + $0x178] sm:$0xff]
    %v1094 = vld [vmem:[#allocation10 + $0x180] sm:$0xff]
    %v1095 = vld [vmem:[#allocation10 + $0x188] sm:$0xff]
    %v1096 = vld [vmem:[#allocation10 + $0x190] sm:$0xff]
    %v1097 = vld [vmem:[#allocation10 + $0x198] sm:$0xff]
    %v1098 = vld [vmem:[#allocation10 + $0x1a0] sm:$0xff]
    %v1099 = vld [vmem:[#allocation10 + $0x1a8] sm:$0xff]
    %v1100 = vld [vmem:[#allocation10 + $0x1b0] sm:$0xff]
    %v1101 = vld [vmem:[#allocation10 + $0x1b8] sm:$0xff]
    %v1102 = vld [vmem:[#allocation10 + $0x1c0] sm:$0xff]
    %v1103 = vld [vmem:[#allocation10 + $0x1c8] sm:$0xff]
    %v1104 = vld [vmem:[#allocation10 + $0x1d0] sm:$0xff]
    %v1105 = vld [vmem:[#allocation10 + $0x1d8] sm:$0xff]
    %v1106 = vld [vmem:[#allocation10 + $0x1e0] sm:$0xff]
    %v1107 = vld [vmem:[#allocation10 + $0x1e8] sm:$0xff]
    %v1108 = vld [vmem:[#allocation10 + $0x1f0] sm:$0xff]
    %v1109 = vld [vmem:[#allocation10 + $0x1f8] sm:$0xff]
    %v1110 = vld [vmem:[#allocation10 + $0x200] sm:$0xff]
    %v1111 = vld [vmem:[#allocation10 + $0x208] sm:$0xff]
    %v1112 = vld [vmem:[#allocation10 + $0x210] sm:$0xff]
    %v1113 = vld [vmem:[#allocation10 + $0x218] sm:$0xff]
    %v1114 = vld [vmem:[#allocation10 + $0x220] sm:$0xff]
    %v1115 = vld [vmem:[#allocation10 + $0x228] sm:$0xff]
    %v1116 = vld [vmem:[#allocation10 + $0x230] sm:$0xff]
    %v1117 = vld [vmem:[#allocation10 + $0x238] sm:$0xff]
    %v1118 = vld [vmem:[#allocation10 + $0x240] sm:$0xff]
    %v1119 = vld [vmem:[#allocation10 + $0x248] sm:$0xff]
    %v1120 = vld [vmem:[#allocation10 + $0x250] sm:$0xff]
    %v1121 = vld [vmem:[#allocation10 + $0x258] sm:$0xff]
    %v1122 = vld [vmem:[#allocation10 + $0x260] sm:$0xff]
    %v1123 = vld [vmem:[#allocation10 + $0x268] sm:$0xff]
    %v1124 = vld [vmem:[#allocation10 + $0x270] sm:$0xff]
    %v1125 = vld [vmem:[#allocation10 + $0x278] sm:$0xff]
    %v1126 = vld [vmem:[#allocation10 + $0x280] sm:$0xff]
    %v1127 = vld [vmem:[#allocation10 + $0x288] sm:$0xff]
    %v1128 = vld [vmem:[#allocation10 + $0x290] sm:$0xff]
    %v1129 = vld [vmem:[#allocation10 + $0x298] sm:$0xff]
    %v1130 = vld [vmem:[#allocation10 + $0x2a0] sm:$0xff]
    %v1131 = vld [vmem:[#allocation10 + $0x2a8] sm:$0xff]
    %v1132 = vld [vmem:[#allocation10 + $0x2b0] sm:$0xff]
    %v1133 = vld [vmem:[#allocation10 + $0x2b8] sm:$0xff]
    %v1134 = vld [vmem:[#allocation10 + $0x2c0] sm:$0xff]
    %v1135 = vld [vmem:[#allocation10 + $0x2c8] sm:$0xff]
    %v1136 = vld [vmem:[#allocation10 + $0x2d0] sm:$0xff]
    %v1137 = vld [vmem:[#allocation10 + $0x2d8] sm:$0xff]
    %v1138 = vld [vmem:[#allocation10 + $0x2e0] sm:$0xff]
    %v1139 = vld [vmem:[#allocation10 + $0x2e8] sm:$0xff]
    %v1140 = vld [vmem:[#allocation10 + $0x2f0] sm:$0xff]
    %v1141 = vld [vmem:[#allocation10 + $0x2f8] sm:$0xff]
    %v1142 = vld [vmem:[#allocation10 + $0x300] sm:$0xff]
    %v1143 = vld [vmem:[#allocation10 + $0x308] sm:$0xff]
    %v1144 = vld [vmem:[#allocation10 + $0x310] sm:$0xff]
    %v1145 = vld [vmem:[#allocation10 + $0x318] sm:$0xff]
    %v1146 = vld [vmem:[#allocation10 + $0x320] sm:$0xff]
    %v1147 = vld [vmem:[#allocation10 + $0x328] sm:$0xff]
    %v1148 = vld [vmem:[#allocation10 + $0x330] sm:$0xff]
    %v1149 = vld [vmem:[#allocation10 + $0x338] sm:$0xff]
    %v1150 = vld [vmem:[#allocation10 + $0x340] sm:$0xff]
    %v1151 = vld [vmem:[#allocation10 + $0x348] sm:$0xff]
    %v1152 = vld [vmem:[#allocation10 + $0x350] sm:$0xff]
    %v1153 = vld [vmem:[#allocation10 + $0x358] sm:$0xff]
    %v1154 = vld [vmem:[#allocation10 + $0x360] sm:$0xff]
    %v1155 = vld [vmem:[#allocation10 + $0x368] sm:$0xff]
    %v1156 = vld [vmem:[#allocation10 + $0x370] sm:$0xff]
    %v1157 = vld [vmem:[#allocation10 + $0x378] sm:$0xff]
    %v1158 = vld [vmem:[#allocation10 + $0x380] sm:$0xff]
    %v1159 = vld [vmem:[#allocation10 + $0x388] sm:$0xff]
    %v1160 = vld [vmem:[#allocation10 + $0x390] sm:$0xff]
    %v1161 = vld [vmem:[#allocation10 + $0x398] sm:$0xff]
    %v1162 = vld [vmem:[#allocation10 + $0x3a0] sm:$0xff]
    %v1163 = vld [vmem:[#allocation10 + $0x3a8] sm:$0xff]
    %v1164 = vld [vmem:[#allocation10 + $0x3b0] sm:$0xff]
    %v1165 = vld [vmem:[#allocation10 + $0x3b8] sm:$0xff]
    %v1166 = vld [vmem:[#allocation10 + $0x3c0] sm:$0xff]
    %v1167 = vld [vmem:[#allocation10 + $0x3c8] sm:$0xff]
    %v1168 = vld [vmem:[#allocation10 + $0x3d0] sm:$0xff]
    %v1169 = vld [vmem:[#allocation10 + $0x3d8] sm:$0xff]
    %v1170 = vld [vmem:[#allocation10 + $0x3e0] sm:$0xff]
    %v1171 = vld [vmem:[#allocation10 + $0x3e8] sm:$0xff]
    %v1172 = vld [vmem:[#allocation10 + $0x3f0] sm:$0xff]
    %v1173 = vld [vmem:[#allocation10 + $0x3f8] sm:$0xff]
    %v1174 = vld [vmem:[#allocation10 + $0x400] sm:$0xff]
    %v1175 = vld [vmem:[#allocation10 + $0x408] sm:$0xff]
    %v1176 = vld [vmem:[#allocation10 + $0x410] sm:$0xff]
    %v1177 = vld [vmem:[#allocation10 + $0x418] sm:$0xff]
    %v1178 = vld [vmem:[#allocation10 + $0x420] sm:$0xff]
    %v1179 = vld [vmem:[#allocation10 + $0x428] sm:$0xff]
    %v1180 = vld [vmem:[#allocation10 + $0x430] sm:$0xff]
    %v1181 = vld [vmem:[#allocation10 + $0x438] sm:$0xff]
    %v1182 = vld [vmem:[#allocation10 + $0x440] sm:$0xff]
    %v1183 = vld [vmem:[#allocation10 + $0x448] sm:$0xff]
    %v1184 = vld [vmem:[#allocation10 + $0x450] sm:$0xff]
    %v1185 = vld [vmem:[#allocation10 + $0x458] sm:$0xff]
    %v1186 = vld [vmem:[#allocation10 + $0x460] sm:$0xff]
    %v1187 = vld [vmem:[#allocation10 + $0x468] sm:$0xff]
    %v1188 = vld [vmem:[#allocation10 + $0x470] sm:$0xff]
    %v1189 = vld [vmem:[#allocation10 + $0x478] sm:$0xff]
    %v1190 = vld [vmem:[#allocation10 + $0x480] sm:$0xff]
    %v1191 = vld [vmem:[#allocation10 + $0x488] sm:$0xff]
    %v1192 = vld [vmem:[#allocation10 + $0x490] sm:$0xff]
    %v1193 = vld [vmem:[#allocation10 + $0x498] sm:$0xff]
    %v1194 = vld [vmem:[#allocation10 + $0x4a0] sm:$0xff]
    %v1195 = vld [vmem:[#allocation10 + $0x4a8] sm:$0xff]
    %v1196 = vld [vmem:[#allocation10 + $0x4b0] sm:$0xff]
    %v1197 = vld [vmem:[#allocation10 + $0x4b8] sm:$0xff]
    %v1198 = vld [vmem:[#allocation10 + $0x4c0] sm:$0xff]
    %v1199 = vld [vmem:[#allocation10 + $0x4c8] sm:$0xff]
    %v1200 = vld [vmem:[#allocation10 + $0x4d0] sm:$0xff]
    %v1201 = vld [vmem:[#allocation10 + $0x4d8] sm:$0xff]
    %v1202 = vld [vmem:[#allocation10 + $0x4e0] sm:$0xff]
    %v1203 = vld [vmem:[#allocation10 + $0x4e8] sm:$0xff]
    %v1204 = vld [vmem:[#allocation10 + $0x4f0] sm:$0xff]
    %v1205 = vld [vmem:[#allocation10 + $0x4f8] sm:$0xff]
    %v1206 = vld [vmem:[#allocation10 + $0x500] sm:$0xff]
    %v1207 = vld [vmem:[#allocation10 + $0x508] sm:$0xff]
    %v1208 = vld [vmem:[#allocation10 + $0x510] sm:$0xff]
    %v1209 = vld [vmem:[#allocation10 + $0x518] sm:$0xff]
    %v1210 = vld [vmem:[#allocation10 + $0x520] sm:$0xff]
    %v1211 = vld [vmem:[#allocation10 + $0x528] sm:$0xff]
    %v1212 = vld [vmem:[#allocation10 + $0x530] sm:$0xff]
    %v1213 = vld [vmem:[#allocation10 + $0x538] sm:$0xff]
    %v1214 = vld [vmem:[#allocation10 + $0x540] sm:$0xff]
    %v1215 = vld [vmem:[#allocation10 + $0x548] sm:$0xff]
    %v1216 = vld [vmem:[#allocation10 + $0x550] sm:$0xff]
    %v1217 = vld [vmem:[#allocation10 + $0x558] sm:$0xff]
    %v1218 = vld [vmem:[#allocation10 + $0x560] sm:$0xff]
    %v1219 = vld [vmem:[#allocation10 + $0x568] sm:$0xff]
    %v1220 = vld [vmem:[#allocation10 + $0x570] sm:$0xff]
    %v1221 = vld [vmem:[#allocation10 + $0x578] sm:$0xff]
    %v1222 = vld [vmem:[#allocation10 + $0x580] sm:$0xff]
    %v1223 = vld [vmem:[#allocation10 + $0x588] sm:$0xff]
    %v1224 = vld [vmem:[#allocation10 + $0x590] sm:$0xff]
    %v1225 = vld [vmem:[#allocation10 + $0x598] sm:$0xff]
    %v1226 = vld [vmem:[#allocation10 + $0x5a0] sm:$0xff]
    %v1227 = vld [vmem:[#allocation10 + $0x5a8] sm:$0xff]
    %v1228 = vld [vmem:[#allocation10 + $0x5b0] sm:$0xff]
    %v1229 = vld [vmem:[#allocation10 + $0x5b8] sm:$0xff]
    %v1230 = vld [vmem:[#allocation10 + $0x5c0] sm:$0xff]
    %v1231 = vld [vmem:[#allocation10 + $0x5c8] sm:$0xff]
    %v1232 = vld [vmem:[#allocation10 + $0x5d0] sm:$0xff]
    %v1233 = vld [vmem:[#allocation10 + $0x5d8] sm:$0xff]
    %v1234 = vld [vmem:[#allocation10 + $0x5e0] sm:$0xff]
    %v1235 = vld [vmem:[#allocation10 + $0x5e8] sm:$0xff]
    %v1236 = vld [vmem:[#allocation10 + $0x5f0] sm:$0xff]
    %v1237 = vld [vmem:[#allocation10 + $0x5f8] sm:$0xff]
    %v1238 = vld [vmem:[#allocation10 + $0x600] sm:$0xff]
    %v1239 = vld [vmem:[#allocation10 + $0x608] sm:$0xff]
    %v1240 = vld [vmem:[#allocation10 + $0x610] sm:$0xff]
    %v1241 = vld [vmem:[#allocation10 + $0x618] sm:$0xff]
    %v1242 = vld [vmem:[#allocation10 + $0x620] sm:$0xff]
    %v1243 = vld [vmem:[#allocation10 + $0x628] sm:$0xff]
    %v1244 = vld [vmem:[#allocation10 + $0x630] sm:$0xff]
    %v1245 = vld [vmem:[#allocation10 + $0x638] sm:$0xff]
    %v1246 = vld [vmem:[#allocation10 + $0x640] sm:$0xff]
    %v1247 = vld [vmem:[#allocation10 + $0x648] sm:$0xff]
    %v1248 = vld [vmem:[#allocation10 + $0x650] sm:$0xff]
    %v1249 = vld [vmem:[#allocation10 + $0x658] sm:$0xff]
    %v1250 = vld [vmem:[#allocation10 + $0x660] sm:$0xff]
    %v1251 = vld [vmem:[#allocation10 + $0x668] sm:$0xff]
    %v1252 = vld [vmem:[#allocation10 + $0x670] sm:$0xff]
    %v1253 = vld [vmem:[#allocation10 + $0x678] sm:$0xff]
    %v1254 = vld [vmem:[#allocation10 + $0x680] sm:$0xff]
    %v1255 = vld [vmem:[#allocation10 + $0x688] sm:$0xff]
    %v1256 = vld [vmem:[#allocation10 + $0x690] sm:$0xff]
    %v1257 = vld [vmem:[#allocation10 + $0x698] sm:$0xff]
    %v1258 = vld [vmem:[#allocation10 + $0x6a0] sm:$0xff]
    %v1259 = vld [vmem:[#allocation10 + $0x6a8] sm:$0xff]
    %v1260 = vld [vmem:[#allocation10 + $0x6b0] sm:$0xff]
    %v1261 = vld [vmem:[#allocation10 + $0x6b8] sm:$0xff]
    %v1262 = vld [vmem:[#allocation10 + $0x6c0] sm:$0xff]
    %v1263 = vld [vmem:[#allocation10 + $0x6c8] sm:$0xff]
    %v1264 = vld [vmem:[#allocation10 + $0x6d0] sm:$0xff]
    %v1265 = vld [vmem:[#allocation10 + $0x6d8] sm:$0xff]
    %v1266 = vld [vmem:[#allocation10 + $0x6e0] sm:$0xff]
    %v1267 = vld [vmem:[#allocation10 + $0x6e8] sm:$0xff]
    %v1268 = vld [vmem:[#allocation10 + $0x6f0] sm:$0xff]
    %v1269 = vld [vmem:[#allocation10 + $0x6f8] sm:$0xff]
    %v1270 = vld [vmem:[#allocation10 + $0x700] sm:$0xff]
    %v1271 = vld [vmem:[#allocation10 + $0x708] sm:$0xff]
    %v1272 = vld [vmem:[#allocation10 + $0x710] sm:$0xff]
    %v1273 = vld [vmem:[#allocation10 + $0x718] sm:$0xff]
    %v1274 = vld [vmem:[#allocation10 + $0x720] sm:$0xff]
    %v1275 = vld [vmem:[#allocation10 + $0x728] sm:$0xff]
    %v1276 = vld [vmem:[#allocation10 + $0x730] sm:$0xff]
    %v1277 = vld [vmem:[#allocation10 + $0x738] sm:$0xff]
    %v1278 = vld [vmem:[#allocation10 + $0x740] sm:$0xff]
    %v1279 = vld [vmem:[#allocation10 + $0x748] sm:$0xff]
    %v1280 = vld [vmem:[#allocation10 + $0x750] sm:$0xff]
    %v1281 = vld [vmem:[#allocation10 + $0x758] sm:$0xff]
    %v1282 = vld [vmem:[#allocation10 + $0x760] sm:$0xff]
    %v1283 = vld [vmem:[#allocation10 + $0x768] sm:$0xff]
    %v1284 = vld [vmem:[#allocation10 + $0x770] sm:$0xff]
    %v1285 = vld [vmem:[#allocation10 + $0x778] sm:$0xff]
    %v1286 = vld [vmem:[#allocation10 + $0x780] sm:$0xff]
    %v1287 = vld [vmem:[#allocation10 + $0x788] sm:$0xff]
    %v1288 = vld [vmem:[#allocation10 + $0x790] sm:$0xff]
    %v1289 = vld [vmem:[#allocation10 + $0x798] sm:$0xff]
    %v1290 = vld [vmem:[#allocation10 + $0x7a0] sm:$0xff]
    %v1291 = vld [vmem:[#allocation10 + $0x7a8] sm:$0xff]
    %v1292 = vld [vmem:[#allocation10 + $0x7b0] sm:$0xff]
    %v1293 = vld [vmem:[#allocation10 + $0x7b8] sm:$0xff]
    %v1294 = vld [vmem:[#allocation10 + $0x7c0] sm:$0xff]
    %v1295 = vld [vmem:[#allocation10 + $0x7c8] sm:$0xff]
    %v1296 = vld [vmem:[#allocation10 + $0x7d0] sm:$0xff]
    %v1297 = vld [vmem:[#allocation10 + $0x7d8] sm:$0xff]
    %v1298 = vld [vmem:[#allocation10 + $0x7e0] sm:$0xff]
    %v1299 = vld [vmem:[#allocation10 + $0x7e8] sm:$0xff]
    %v1300 = vld [vmem:[#allocation10 + $0x7f0] sm:$0xff]
    %v1301 = vld [vmem:[#allocation10 + $0x7f8] sm:$0xff]
    %v1302 = vld [vmem:[#allocation13 + $0x13] sm:$0xff]
    %v1304 = vlaneseq
    %v1305 = vshrl.u32 %v1304, 7
    %v1306 = vsub.s32 0, %v1305
    %v1307 = vrot.slane %v1302, %v1306
    %v1308 = vlaneseq
    %v1309 = vshrl.u32 %v1308, 7
    %v1310 = vsub.s32 1, %v1309
    %v1311 = vrot.slane %v1302, %v1310
    %v1312 = vlaneseq
    %v1313 = vshrl.u32 %v1312, 7
    %v1314 = vsub.s32 2, %v1313
    %v1315 = vrot.slane %v1302, %v1314
    %v1316 = vlaneseq
    %v1317 = vshrl.u32 %v1316, 7
    %v1318 = vsub.s32 3, %v1317
    %v1319 = vrot.slane %v1302, %v1318
    %v1320 = vlaneseq
    %v1321 = vshrl.u32 %v1320, 7
    %v1322 = vsub.s32 4, %v1321
    %v1323 = vrot.slane %v1302, %v1322
    %v1324 = vlaneseq
    %v1325 = vshrl.u32 %v1324, 7
    %v1326 = vsub.s32 5, %v1325
    %v1327 = vrot.slane %v1302, %v1326
    %v1328 = vlaneseq
    %v1329 = vshrl.u32 %v1328, 7
    %v1330 = vsub.s32 6, %v1329
    %v1331 = vrot.slane %v1302, %v1330
    %v1332 = vlaneseq
    %v1333 = vshrl.u32 %v1332, 7
    %v1334 = vsub.s32 7, %v1333
    %v1335 = vrot.slane %v1302, %v1334
    %v1600 = vunpack.c.l.b16 %v1046
    %v1601 = vunpack.c.h.b16 %v1046
    %v1602 = vunpack.c.l.b16 %v1047
    %v1603 = vunpack.c.h.b16 %v1047
    %v1604 = vunpack.c.l.b16 %v1048
    %v1605 = vunpack.c.h.b16 %v1048
    %v1606 = vunpack.c.l.b16 %v1049
    %v1607 = vunpack.c.h.b16 %v1049
    %v1608 = vunpack.c.l.b16 %v1050
    %v1609 = vunpack.c.h.b16 %v1050
    %v1610 = vunpack.c.l.b16 %v1051
    %v1611 = vunpack.c.h.b16 %v1051
    %v1612 = vunpack.c.l.b16 %v1052
    %v1613 = vunpack.c.h.b16 %v1052
    %v1614 = vunpack.c.l.b16 %v1053
    %v1615 = vunpack.c.h.b16 %v1053
    %v1616 = vunpack.c.l.b16 %v1054
    %v1617 = vunpack.c.h.b16 %v1054
    %v1618 = vunpack.c.l.b16 %v1055
    %v1619 = vunpack.c.h.b16 %v1055
    %v1620 = vunpack.c.l.b16 %v1056
    %v1621 = vunpack.c.h.b16 %v1056
    %v1622 = vunpack.c.l.b16 %v1057
    %v1623 = vunpack.c.h.b16 %v1057
    %v1624 = vunpack.c.l.b16 %v1058
    %v1625 = vunpack.c.h.b16 %v1058
    %v1626 = vunpack.c.l.b16 %v1059
    %v1627 = vunpack.c.h.b16 %v1059
    %v1628 = vunpack.c.l.b16 %v1060
    %v1629 = vunpack.c.h.b16 %v1060
    %v1630 = vunpack.c.l.b16 %v1061
    %v1631 = vunpack.c.h.b16 %v1061
    %v1632 = vunpack.c.l.b16 %v1062
    %v1633 = vunpack.c.h.b16 %v1062
    %v1634 = vunpack.c.l.b16 %v1063
    %v1635 = vunpack.c.h.b16 %v1063
    %v1636 = vunpack.c.l.b16 %v1064
    %v1637 = vunpack.c.h.b16 %v1064
    %v1638 = vunpack.c.l.b16 %v1065
    %v1639 = vunpack.c.h.b16 %v1065
    %v1640 = vunpack.c.l.b16 %v1066
    %v1641 = vunpack.c.h.b16 %v1066
    %v1642 = vunpack.c.l.b16 %v1067
    %v1643 = vunpack.c.h.b16 %v1067
    %v1644 = vunpack.c.l.b16 %v1068
    %v1645 = vunpack.c.h.b16 %v1068
    %v1646 = vunpack.c.l.b16 %v1069
    %v1647 = vunpack.c.h.b16 %v1069
    %v1648 = vunpack.c.l.b16 %v1070
    %v1649 = vunpack.c.h.b16 %v1070
    %v1650 = vunpack.c.l.b16 %v1071
    %v1651 = vunpack.c.h.b16 %v1071
    %v1652 = vunpack.c.l.b16 %v1072
    %v1653 = vunpack.c.h.b16 %v1072
    %v1654 = vunpack.c.l.b16 %v1073
    %v1655 = vunpack.c.h.b16 %v1073
    %v1656 = vunpack.c.l.b16 %v1074
    %v1657 = vunpack.c.h.b16 %v1074
    %v1658 = vunpack.c.l.b16 %v1075
    %v1659 = vunpack.c.h.b16 %v1075
    %v1660 = vunpack.c.l.b16 %v1076
    %v1661 = vunpack.c.h.b16 %v1076
    %v1662 = vunpack.c.l.b16 %v1077
    %v1663 = vunpack.c.h.b16 %v1077
    %v1664 = vunpack.c.l.b16 %v1078
    %v1665 = vunpack.c.h.b16 %v1078
    %v1666 = vunpack.c.l.b16 %v1079
    %v1667 = vunpack.c.h.b16 %v1079
    %v1668 = vunpack.c.l.b16 %v1080
    %v1669 = vunpack.c.h.b16 %v1080
    %v1670 = vunpack.c.l.b16 %v1081
    %v1671 = vunpack.c.h.b16 %v1081
    %v1672 = vunpack.c.l.b16 %v1082
    %v1673 = vunpack.c.h.b16 %v1082
    %v1674 = vunpack.c.l.b16 %v1083
    %v1675 = vunpack.c.h.b16 %v1083
    %v1676 = vunpack.c.l.b16 %v1084
    %v1677 = vunpack.c.h.b16 %v1084
    %v1678 = vunpack.c.l.b16 %v1085
    %v1679 = vunpack.c.h.b16 %v1085
    %v1680 = vunpack.c.l.b16 %v1086
    %v1681 = vunpack.c.h.b16 %v1086
    %v1682 = vunpack.c.l.b16 %v1087
    %v1683 = vunpack.c.h.b16 %v1087
    %v1684 = vunpack.c.l.b16 %v1088
    %v1685 = vunpack.c.h.b16 %v1088
    %v1686 = vunpack.c.l.b16 %v1089
    %v1687 = vunpack.c.h.b16 %v1089
    %v1688 = vunpack.c.l.b16 %v1090
    %v1689 = vunpack.c.h.b16 %v1090
    %v1690 = vunpack.c.l.b16 %v1091
    %v1691 = vunpack.c.h.b16 %v1091
    %v1692 = vunpack.c.l.b16 %v1092
    %v1693 = vunpack.c.h.b16 %v1092
    %v1694 = vunpack.c.l.b16 %v1093
    %v1695 = vunpack.c.h.b16 %v1093
    %v1696 = vunpack.c.l.b16 %v1094
    %v1697 = vunpack.c.h.b16 %v1094
    %v1698 = vunpack.c.l.b16 %v1095
    %v1699 = vunpack.c.h.b16 %v1095
    %v1700 = vunpack.c.l.b16 %v1096
    %v1701 = vunpack.c.h.b16 %v1096
    %v1702 = vunpack.c.l.b16 %v1097
    %v1703 = vunpack.c.h.b16 %v1097
    %v1704 = vunpack.c.l.b16 %v1098
    %v1705 = vunpack.c.h.b16 %v1098
    %v1706 = vunpack.c.l.b16 %v1099
    %v1707 = vunpack.c.h.b16 %v1099
    %v1708 = vunpack.c.l.b16 %v1100
    %v1709 = vunpack.c.h.b16 %v1100
    %v1710 = vunpack.c.l.b16 %v1101
    %v1711 = vunpack.c.h.b16 %v1101
    %v1712 = vunpack.c.l.b16 %v1102
    %v1713 = vunpack.c.h.b16 %v1102
    %v1714 = vunpack.c.l.b16 %v1103
    %v1715 = vunpack.c.h.b16 %v1103
    %v1716 = vunpack.c.l.b16 %v1104
    %v1717 = vunpack.c.h.b16 %v1104
    %v1718 = vunpack.c.l.b16 %v1105
    %v1719 = vunpack.c.h.b16 %v1105
    %v1720 = vunpack.c.l.b16 %v1106
    %v1721 = vunpack.c.h.b16 %v1106
    %v1722 = vunpack.c.l.b16 %v1107
    %v1723 = vunpack.c.h.b16 %v1107
    %v1724 = vunpack.c.l.b16 %v1108
    %v1725 = vunpack.c.h.b16 %v1108
    %v1726 = vunpack.c.l.b16 %v1109
    %v1727 = vunpack.c.h.b16 %v1109
    %v1728 = vunpack.c.l.b16 %v1110
    %v1729 = vunpack.c.h.b16 %v1110
    %v1730 = vunpack.c.l.b16 %v1111
    %v1731 = vunpack.c.h.b16 %v1111
    %v1732 = vunpack.c.l.b16 %v1112
    %v1733 = vunpack.c.h.b16 %v1112
    %v1734 = vunpack.c.l.b16 %v1113
    %v1735 = vunpack.c.h.b16 %v1113
    %v1736 = vunpack.c.l.b16 %v1114
    %v1737 = vunpack.c.h.b16 %v1114
    %v1738 = vunpack.c.l.b16 %v1115
    %v1739 = vunpack.c.h.b16 %v1115
    %v1740 = vunpack.c.l.b16 %v1116
    %v1741 = vunpack.c.h.b16 %v1116
    %v1742 = vunpack.c.l.b16 %v1117
    %v1743 = vunpack.c.h.b16 %v1117
    %v1744 = vunpack.c.l.b16 %v1118
    %v1745 = vunpack.c.h.b16 %v1118
    %v1746 = vunpack.c.l.b16 %v1119
    %v1747 = vunpack.c.h.b16 %v1119
    %v1748 = vunpack.c.l.b16 %v1120
    %v1749 = vunpack.c.h.b16 %v1120
    %v1750 = vunpack.c.l.b16 %v1121
    %v1751 = vunpack.c.h.b16 %v1121
    %v1752 = vunpack.c.l.b16 %v1122
    %v1753 = vunpack.c.h.b16 %v1122
    %v1754 = vunpack.c.l.b16 %v1123
    %v1755 = vunpack.c.h.b16 %v1123
    %v1756 = vunpack.c.l.b16 %v1124
    %v1757 = vunpack.c.h.b16 %v1124
    %v1758 = vunpack.c.l.b16 %v1125
    %v1759 = vunpack.c.h.b16 %v1125
    %v1760 = vunpack.c.l.b16 %v1126
    %v1761 = vunpack.c.h.b16 %v1126
    %v1762 = vunpack.c.l.b16 %v1127
    %v1763 = vunpack.c.h.b16 %v1127
    %v1764 = vunpack.c.l.b16 %v1128
    %v1765 = vunpack.c.h.b16 %v1128
    %v1766 = vunpack.c.l.b16 %v1129
    %v1767 = vunpack.c.h.b16 %v1129
    %v1768 = vunpack.c.l.b16 %v1130
    %v1769 = vunpack.c.h.b16 %v1130
    %v1770 = vunpack.c.l.b16 %v1131
    %v1771 = vunpack.c.h.b16 %v1131
    %v1772 = vunpack.c.l.b16 %v1132
    %v1773 = vunpack.c.h.b16 %v1132
    %v1774 = vunpack.c.l.b16 %v1133
    %v1775 = vunpack.c.h.b16 %v1133
    %v1776 = vunpack.c.l.b16 %v1134
    %v1777 = vunpack.c.h.b16 %v1134
    %v1778 = vunpack.c.l.b16 %v1135
    %v1779 = vunpack.c.h.b16 %v1135
    %v1780 = vunpack.c.l.b16 %v1136
    %v1781 = vunpack.c.h.b16 %v1136
    %v1782 = vunpack.c.l.b16 %v1137
    %v1783 = vunpack.c.h.b16 %v1137
    %v1784 = vunpack.c.l.b16 %v1138
    %v1785 = vunpack.c.h.b16 %v1138
    %v1786 = vunpack.c.l.b16 %v1139
    %v1787 = vunpack.c.h.b16 %v1139
    %v1788 = vunpack.c.l.b16 %v1140
    %v1789 = vunpack.c.h.b16 %v1140
    %v1790 = vunpack.c.l.b16 %v1141
    %v1791 = vunpack.c.h.b16 %v1141
    %v1792 = vunpack.c.l.b16 %v1142
    %v1793 = vunpack.c.h.b16 %v1142
    %v1794 = vunpack.c.l.b16 %v1143
    %v1795 = vunpack.c.h.b16 %v1143
    %v1796 = vunpack.c.l.b16 %v1144
    %v1797 = vunpack.c.h.b16 %v1144
    %v1798 = vunpack.c.l.b16 %v1145
    %v1799 = vunpack.c.h.b16 %v1145
    %v1800 = vunpack.c.l.b16 %v1146
    %v1801 = vunpack.c.h.b16 %v1146
    %v1802 = vunpack.c.l.b16 %v1147
    %v1803 = vunpack.c.h.b16 %v1147
    %v1804 = vunpack.c.l.b16 %v1148
    %v1805 = vunpack.c.h.b16 %v1148
    %v1806 = vunpack.c.l.b16 %v1149
    %v1807 = vunpack.c.h.b16 %v1149
    %v1808 = vunpack.c.l.b16 %v1150
    %v1809 = vunpack.c.h.b16 %v1150
    %v1810 = vunpack.c.l.b16 %v1151
    %v1811 = vunpack.c.h.b16 %v1151
    %v1812 = vunpack.c.l.b16 %v1152
    %v1813 = vunpack.c.h.b16 %v1152
    %v1814 = vunpack.c.l.b16 %v1153
    %v1815 = vunpack.c.h.b16 %v1153
    %v1816 = vunpack.c.l.b16 %v1154
    %v1817 = vunpack.c.h.b16 %v1154
    %v1818 = vunpack.c.l.b16 %v1155
    %v1819 = vunpack.c.h.b16 %v1155
    %v1820 = vunpack.c.l.b16 %v1156
    %v1821 = vunpack.c.h.b16 %v1156
    %v1822 = vunpack.c.l.b16 %v1157
    %v1823 = vunpack.c.h.b16 %v1157
    %v1824 = vunpack.c.l.b16 %v1158
    %v1825 = vunpack.c.h.b16 %v1158
    %v1826 = vunpack.c.l.b16 %v1159
    %v1827 = vunpack.c.h.b16 %v1159
    %v1828 = vunpack.c.l.b16 %v1160
    %v1829 = vunpack.c.h.b16 %v1160
    %v1830 = vunpack.c.l.b16 %v1161
    %v1831 = vunpack.c.h.b16 %v1161
    %v1832 = vunpack.c.l.b16 %v1162
    %v1833 = vunpack.c.h.b16 %v1162
    %v1834 = vunpack.c.l.b16 %v1163
    %v1835 = vunpack.c.h.b16 %v1163
    %v1836 = vunpack.c.l.b16 %v1164
    %v1837 = vunpack.c.h.b16 %v1164
    %v1838 = vunpack.c.l.b16 %v1165
    %v1839 = vunpack.c.h.b16 %v1165
    %v1840 = vunpack.c.l.b16 %v1166
    %v1841 = vunpack.c.h.b16 %v1166
    %v1842 = vunpack.c.l.b16 %v1167
    %v1843 = vunpack.c.h.b16 %v1167
    %v1844 = vunpack.c.l.b16 %v1168
    %v1845 = vunpack.c.h.b16 %v1168
    %v1846 = vunpack.c.l.b16 %v1169
    %v1847 = vunpack.c.h.b16 %v1169
    %v1848 = vunpack.c.l.b16 %v1170
    %v1849 = vunpack.c.h.b16 %v1170
    %v1850 = vunpack.c.l.b16 %v1171
    %v1851 = vunpack.c.h.b16 %v1171
    %v1852 = vunpack.c.l.b16 %v1172
    %v1853 = vunpack.c.h.b16 %v1172
    %v1854 = vunpack.c.l.b16 %v1173
    %v1855 = vunpack.c.h.b16 %v1173
    %v1856 = vunpack.c.l.b16 %v1174
    %v1857 = vunpack.c.h.b16 %v1174
    %v1858 = vunpack.c.l.b16 %v1175
    %v1859 = vunpack.c.h.b16 %v1175
    %v1860 = vunpack.c.l.b16 %v1176
    %v1861 = vunpack.c.h.b16 %v1176
    %v1862 = vunpack.c.l.b16 %v1177
    %v1863 = vunpack.c.h.b16 %v1177
    %v1864 = vunpack.c.l.b16 %v1178
    %v1865 = vunpack.c.h.b16 %v1178
    %v1866 = vunpack.c.l.b16 %v1179
    %v1867 = vunpack.c.h.b16 %v1179
    %v1868 = vunpack.c.l.b16 %v1180
    %v1869 = vunpack.c.h.b16 %v1180
    %v1870 = vunpack.c.l.b16 %v1181
    %v1871 = vunpack.c.h.b16 %v1181
    %v1872 = vunpack.c.l.b16 %v1182
    %v1873 = vunpack.c.h.b16 %v1182
    %v1874 = vunpack.c.l.b16 %v1183
    %v1875 = vunpack.c.h.b16 %v1183
    %v1876 = vunpack.c.l.b16 %v1184
    %v1877 = vunpack.c.h.b16 %v1184
    %v1878 = vunpack.c.l.b16 %v1185
    %v1879 = vunpack.c.h.b16 %v1185
    %v1880 = vunpack.c.l.b16 %v1186
    %v1881 = vunpack.c.h.b16 %v1186
    %v1882 = vunpack.c.l.b16 %v1187
    %v1883 = vunpack.c.h.b16 %v1187
    %v1884 = vunpack.c.l.b16 %v1188
    %v1885 = vunpack.c.h.b16 %v1188
    %v1886 = vunpack.c.l.b16 %v1189
    %v1887 = vunpack.c.h.b16 %v1189
    %v1888 = vunpack.c.l.b16 %v1190
    %v1889 = vunpack.c.h.b16 %v1190
    %v1890 = vunpack.c.l.b16 %v1191
    %v1891 = vunpack.c.h.b16 %v1191
    %v1892 = vunpack.c.l.b16 %v1192
    %v1893 = vunpack.c.h.b16 %v1192
    %v1894 = vunpack.c.l.b16 %v1193
    %v1895 = vunpack.c.h.b16 %v1193
    %v1896 = vunpack.c.l.b16 %v1194
    %v1897 = vunpack.c.h.b16 %v1194
    %v1898 = vunpack.c.l.b16 %v1195
    %v1899 = vunpack.c.h.b16 %v1195
    %v1900 = vunpack.c.l.b16 %v1196
    %v1901 = vunpack.c.h.b16 %v1196
    %v1902 = vunpack.c.l.b16 %v1197
    %v1903 = vunpack.c.h.b16 %v1197
    %v1904 = vunpack.c.l.b16 %v1198
    %v1905 = vunpack.c.h.b16 %v1198
    %v1906 = vunpack.c.l.b16 %v1199
    %v1907 = vunpack.c.h.b16 %v1199
    %v1908 = vunpack.c.l.b16 %v1200
    %v1909 = vunpack.c.h.b16 %v1200
    %v1910 = vunpack.c.l.b16 %v1201
    %v1911 = vunpack.c.h.b16 %v1201
    %v1912 = vunpack.c.l.b16 %v1202
    %v1913 = vunpack.c.h.b16 %v1202
    %v1914 = vunpack.c.l.b16 %v1203
    %v1915 = vunpack.c.h.b16 %v1203
    %v1916 = vunpack.c.l.b16 %v1204
    %v1917 = vunpack.c.h.b16 %v1204
    %v1918 = vunpack.c.l.b16 %v1205
    %v1919 = vunpack.c.h.b16 %v1205
    %v1920 = vunpack.c.l.b16 %v1206
    %v1921 = vunpack.c.h.b16 %v1206
    %v1922 = vunpack.c.l.b16 %v1207
    %v1923 = vunpack.c.h.b16 %v1207
    %v1924 = vunpack.c.l.b16 %v1208
    %v1925 = vunpack.c.h.b16 %v1208
    %v1926 = vunpack.c.l.b16 %v1209
    %v1927 = vunpack.c.h.b16 %v1209
    %v1928 = vunpack.c.l.b16 %v1210
    %v1929 = vunpack.c.h.b16 %v1210
    %v1930 = vunpack.c.l.b16 %v1211
    %v1931 = vunpack.c.h.b16 %v1211
    %v1932 = vunpack.c.l.b16 %v1212
    %v1933 = vunpack.c.h.b16 %v1212
    %v1934 = vunpack.c.l.b16 %v1213
    %v1935 = vunpack.c.h.b16 %v1213
    %v1936 = vunpack.c.l.b16 %v1214
    %v1937 = vunpack.c.h.b16 %v1214
    %v1938 = vunpack.c.l.b16 %v1215
    %v1939 = vunpack.c.h.b16 %v1215
    %v1940 = vunpack.c.l.b16 %v1216
    %v1941 = vunpack.c.h.b16 %v1216
    %v1942 = vunpack.c.l.b16 %v1217
    %v1943 = vunpack.c.h.b16 %v1217
    %v1944 = vunpack.c.l.b16 %v1218
    %v1945 = vunpack.c.h.b16 %v1218
    %v1946 = vunpack.c.l.b16 %v1219
    %v1947 = vunpack.c.h.b16 %v1219
    %v1948 = vunpack.c.l.b16 %v1220
    %v1949 = vunpack.c.h.b16 %v1220
    %v1950 = vunpack.c.l.b16 %v1221
    %v1951 = vunpack.c.h.b16 %v1221
    %v1952 = vunpack.c.l.b16 %v1222
    %v1953 = vunpack.c.h.b16 %v1222
    %v1954 = vunpack.c.l.b16 %v1223
    %v1955 = vunpack.c.h.b16 %v1223
    %v1956 = vunpack.c.l.b16 %v1224
    %v1957 = vunpack.c.h.b16 %v1224
    %v1958 = vunpack.c.l.b16 %v1225
    %v1959 = vunpack.c.h.b16 %v1225
    %v1960 = vunpack.c.l.b16 %v1226
    %v1961 = vunpack.c.h.b16 %v1226
    %v1962 = vunpack.c.l.b16 %v1227
    %v1963 = vunpack.c.h.b16 %v1227
    %v1964 = vunpack.c.l.b16 %v1228
    %v1965 = vunpack.c.h.b16 %v1228
    %v1966 = vunpack.c.l.b16 %v1229
    %v1967 = vunpack.c.h.b16 %v1229
    %v1968 = vunpack.c.l.b16 %v1230
    %v1969 = vunpack.c.h.b16 %v1230
    %v1970 = vunpack.c.l.b16 %v1231
    %v1971 = vunpack.c.h.b16 %v1231
    %v1972 = vunpack.c.l.b16 %v1232
    %v1973 = vunpack.c.h.b16 %v1232
    %v1974 = vunpack.c.l.b16 %v1233
    %v1975 = vunpack.c.h.b16 %v1233
    %v1976 = vunpack.c.l.b16 %v1234
    %v1977 = vunpack.c.h.b16 %v1234
    %v1978 = vunpack.c.l.b16 %v1235
    %v1979 = vunpack.c.h.b16 %v1235
    %v1980 = vunpack.c.l.b16 %v1236
    %v1981 = vunpack.c.h.b16 %v1236
    %v1982 = vunpack.c.l.b16 %v1237
    %v1983 = vunpack.c.h.b16 %v1237
    %v1984 = vunpack.c.l.b16 %v1238
    %v1985 = vunpack.c.h.b16 %v1238
    %v1986 = vunpack.c.l.b16 %v1239
    %v1987 = vunpack.c.h.b16 %v1239
    %v1988 = vunpack.c.l.b16 %v1240
    %v1989 = vunpack.c.h.b16 %v1240
    %v1990 = vunpack.c.l.b16 %v1241
    %v1991 = vunpack.c.h.b16 %v1241
    %v1992 = vunpack.c.l.b16 %v1242
    %v1993 = vunpack.c.h.b16 %v1242
    %v1994 = vunpack.c.l.b16 %v1243
    %v1995 = vunpack.c.h.b16 %v1243
    %v1996 = vunpack.c.l.b16 %v1244
    %v1997 = vunpack.c.h.b16 %v1244
    %v1998 = vunpack.c.l.b16 %v1245
    %v1999 = vunpack.c.h.b16 %v1245
    %v2000 = vunpack.c.l.b16 %v1246
    %v2001 = vunpack.c.h.b16 %v1246
    %v2002 = vunpack.c.l.b16 %v1247
    %v2003 = vunpack.c.h.b16 %v1247
    %v2004 = vunpack.c.l.b16 %v1248
    %v2005 = vunpack.c.h.b16 %v1248
    %v2006 = vunpack.c.l.b16 %v1249
    %v2007 = vunpack.c.h.b16 %v1249
    %v2008 = vunpack.c.l.b16 %v1250
    %v2009 = vunpack.c.h.b16 %v1250
    %v2010 = vunpack.c.l.b16 %v1251
    %v2011 = vunpack.c.h.b16 %v1251
    %v2012 = vunpack.c.l.b16 %v1252
    %v2013 = vunpack.c.h.b16 %v1252
    %v2014 = vunpack.c.l.b16 %v1253
    %v2015 = vunpack.c.h.b16 %v1253
    %v2016 = vunpack.c.l.b16 %v1254
    %v2017 = vunpack.c.h.b16 %v1254
    %v2018 = vunpack.c.l.b16 %v1255
    %v2019 = vunpack.c.h.b16 %v1255
    %v2020 = vunpack.c.l.b16 %v1256
    %v2021 = vunpack.c.h.b16 %v1256
    %v2022 = vunpack.c.l.b16 %v1257
    %v2023 = vunpack.c.h.b16 %v1257
    %v2024 = vunpack.c.l.b16 %v1258
    %v2025 = vunpack.c.h.b16 %v1258
    %v2026 = vunpack.c.l.b16 %v1259
    %v2027 = vunpack.c.h.b16 %v1259
    %v2028 = vunpack.c.l.b16 %v1260
    %v2029 = vunpack.c.h.b16 %v1260
    %v2030 = vunpack.c.l.b16 %v1261
    %v2031 = vunpack.c.h.b16 %v1261
    %v2032 = vunpack.c.l.b16 %v1262
    %v2033 = vunpack.c.h.b16 %v1262
    %v2034 = vunpack.c.l.b16 %v1263
    %v2035 = vunpack.c.h.b16 %v1263
    %v2036 = vunpack.c.l.b16 %v1264
    %v2037 = vunpack.c.h.b16 %v1264
    %v2038 = vunpack.c.l.b16 %v1265
    %v2039 = vunpack.c.h.b16 %v1265
    %v2040 = vunpack.c.l.b16 %v1266
    %v2041 = vunpack.c.h.b16 %v1266
    %v2042 = vunpack.c.l.b16 %v1267
    %v2043 = vunpack.c.h.b16 %v1267
    %v2044 = vunpack.c.l.b16 %v1268
    %v2045 = vunpack.c.h.b16 %v1268
    %v2046 = vunpack.c.l.b16 %v1269
    %v2047 = vunpack.c.h.b16 %v1269
    %v2048 = vunpack.c.l.b16 %v1270
    %v2049 = vunpack.c.h.b16 %v1270
    %v2050 = vunpack.c.l.b16 %v1271
    %v2051 = vunpack.c.h.b16 %v1271
    %v2052 = vunpack.c.l.b16 %v1272
    %v2053 = vunpack.c.h.b16 %v1272
    %v2054 = vunpack.c.l.b16 %v1273
    %v2055 = vunpack.c.h.b16 %v1273
    %v2056 = vunpack.c.l.b16 %v1274
    %v2057 = vunpack.c.h.b16 %v1274
    %v2058 = vunpack.c.l.b16 %v1275
    %v2059 = vunpack.c.h.b16 %v1275
    %v2060 = vunpack.c.l.b16 %v1276
    %v2061 = vunpack.c.h.b16 %v1276
    %v2062 = vunpack.c.l.b16 %v1277
    %v2063 = vunpack.c.h.b16 %v1277
    %v2064 = vunpack.c.l.b16 %v1278
    %v2065 = vunpack.c.h.b16 %v1278
    %v2066 = vunpack.c.l.b16 %v1279
    %v2067 = vunpack.c.h.b16 %v1279
    %v2068 = vunpack.c.l.b16 %v1280
    %v2069 = vunpack.c.h.b16 %v1280
    %v2070 = vunpack.c.l.b16 %v1281
    %v2071 = vunpack.c.h.b16 %v1281
    %v2072 = vunpack.c.l.b16 %v1282
    %v2073 = vunpack.c.h.b16 %v1282
    %v2074 = vunpack.c.l.b16 %v1283
    %v2075 = vunpack.c.h.b16 %v1283
    %v2076 = vunpack.c.l.b16 %v1284
    %v2077 = vunpack.c.h.b16 %v1284
    %v2078 = vunpack.c.l.b16 %v1285
    %v2079 = vunpack.c.h.b16 %v1285
    %v2080 = vunpack.c.l.b16 %v1286
    %v2081 = vunpack.c.h.b16 %v1286
    %v2082 = vunpack.c.l.b16 %v1287
    %v2083 = vunpack.c.h.b16 %v1287
    %v2084 = vunpack.c.l.b16 %v1288
    %v2085 = vunpack.c.h.b16 %v1288
    %v2086 = vunpack.c.l.b16 %v1289
    %v2087 = vunpack.c.h.b16 %v1289
    %v2088 = vunpack.c.l.b16 %v1290
    %v2089 = vunpack.c.h.b16 %v1290
    %v2090 = vunpack.c.l.b16 %v1291
    %v2091 = vunpack.c.h.b16 %v1291
    %v2092 = vunpack.c.l.b16 %v1292
    %v2093 = vunpack.c.h.b16 %v1292
    %v2094 = vunpack.c.l.b16 %v1293
    %v2095 = vunpack.c.h.b16 %v1293
    %v2096 = vunpack.c.l.b16 %v1294
    %v2097 = vunpack.c.h.b16 %v1294
    %v2098 = vunpack.c.l.b16 %v1295
    %v2099 = vunpack.c.h.b16 %v1295
    %v2100 = vunpack.c.l.b16 %v1296
    %v2101 = vunpack.c.h.b16 %v1296
    %v2102 = vunpack.c.l.b16 %v1297
    %v2103 = vunpack.c.h.b16 %v1297
    %v2104 = vunpack.c.l.b16 %v1298
    %v2105 = vunpack.c.h.b16 %v1298
    %v2106 = vunpack.c.l.b16 %v1299
    %v2107 = vunpack.c.h.b16 %v1299
    %v2108 = vunpack.c.l.b16 %v1300
    %v2109 = vunpack.c.h.b16 %v1300
    %v2110 = vunpack.c.l.b16 %v1301
    %v2111 = vunpack.c.h.b16 %v1301
    %v2112 = vpack.c.b16 %v1608, %v1600
    %v2113 = vpack.c.b16 %v1609, %v1601
    %v2114 = vpack.c.b16 %v1610, %v1602
    %v2115 = vpack.c.b16 %v1611, %v1603
    %v2116 = vpack.c.b16 %v1612, %v1604
    %v2117 = vpack.c.b16 %v1613, %v1605
    %v2118 = vpack.c.b16 %v1614, %v1606
    %v2119 = vpack.c.b16 %v1615, %v1607
    %v2120 = vpack.c.b16 %v1624, %v1616
    %v2121 = vpack.c.b16 %v1625, %v1617
    %v2122 = vpack.c.b16 %v1626, %v1618
    %v2123 = vpack.c.b16 %v1627, %v1619
    %v2124 = vpack.c.b16 %v1628, %v1620
    %v2125 = vpack.c.b16 %v1629, %v1621
    %v2126 = vpack.c.b16 %v1630, %v1622
    %v2127 = vpack.c.b16 %v1631, %v1623
    %v2128 = vpack.c.b16 %v1640, %v1632
    %v2129 = vpack.c.b16 %v1641, %v1633
    %v2130 = vpack.c.b16 %v1642, %v1634
    %v2131 = vpack.c.b16 %v1643, %v1635
    %v2132 = vpack.c.b16 %v1644, %v1636
    %v2133 = vpack.c.b16 %v1645, %v1637
    %v2134 = vpack.c.b16 %v1646, %v1638
    %v2135 = vpack.c.b16 %v1647, %v1639
    %v2136 = vpack.c.b16 %v1656, %v1648
    %v2137 = vpack.c.b16 %v1657, %v1649
    %v2138 = vpack.c.b16 %v1658, %v1650
    %v2139 = vpack.c.b16 %v1659, %v1651
    %v2140 = vpack.c.b16 %v1660, %v1652
    %v2141 = vpack.c.b16 %v1661, %v1653
    %v2142 = vpack.c.b16 %v1662, %v1654
    %v2143 = vpack.c.b16 %v1663, %v1655
    %v2144 = vpack.c.b16 %v1672, %v1664
    %v2145 = vpack.c.b16 %v1673, %v1665
    %v2146 = vpack.c.b16 %v1674, %v1666
    %v2147 = vpack.c.b16 %v1675, %v1667
    %v2148 = vpack.c.b16 %v1676, %v1668
    %v2149 = vpack.c.b16 %v1677, %v1669
    %v2150 = vpack.c.b16 %v1678, %v1670
    %v2151 = vpack.c.b16 %v1679, %v1671
    %v2152 = vpack.c.b16 %v1688, %v1680
    %v2153 = vpack.c.b16 %v1689, %v1681
    %v2154 = vpack.c.b16 %v1690, %v1682
    %v2155 = vpack.c.b16 %v1691, %v1683
    %v2156 = vpack.c.b16 %v1692, %v1684
    %v2157 = vpack.c.b16 %v1693, %v1685
    %v2158 = vpack.c.b16 %v1694, %v1686
    %v2159 = vpack.c.b16 %v1695, %v1687
    %v2160 = vpack.c.b16 %v1704, %v1696
    %v2161 = vpack.c.b16 %v1705, %v1697
    %v2162 = vpack.c.b16 %v1706, %v1698
    %v2163 = vpack.c.b16 %v1707, %v1699
    %v2164 = vpack.c.b16 %v1708, %v1700
    %v2165 = vpack.c.b16 %v1709, %v1701
    %v2166 = vpack.c.b16 %v1710, %v1702
    %v2167 = vpack.c.b16 %v1711, %v1703
    %v2168 = vpack.c.b16 %v1720, %v1712
    %v2169 = vpack.c.b16 %v1721, %v1713
    %v2170 = vpack.c.b16 %v1722, %v1714
    %v2171 = vpack.c.b16 %v1723, %v1715
    %v2172 = vpack.c.b16 %v1724, %v1716
    %v2173 = vpack.c.b16 %v1725, %v1717
    %v2174 = vpack.c.b16 %v1726, %v1718
    %v2175 = vpack.c.b16 %v1727, %v1719
    %v2176 = vpack.c.b16 %v1736, %v1728
    %v2177 = vpack.c.b16 %v1737, %v1729
    %v2178 = vpack.c.b16 %v1738, %v1730
    %v2179 = vpack.c.b16 %v1739, %v1731
    %v2180 = vpack.c.b16 %v1740, %v1732
    %v2181 = vpack.c.b16 %v1741, %v1733
    %v2182 = vpack.c.b16 %v1742, %v1734
    %v2183 = vpack.c.b16 %v1743, %v1735
    %v2184 = vpack.c.b16 %v1752, %v1744
    %v2185 = vpack.c.b16 %v1753, %v1745
    %v2186 = vpack.c.b16 %v1754, %v1746
    %v2187 = vpack.c.b16 %v1755, %v1747
    %v2188 = vpack.c.b16 %v1756, %v1748
    %v2189 = vpack.c.b16 %v1757, %v1749
    %v2190 = vpack.c.b16 %v1758, %v1750
    %v2191 = vpack.c.b16 %v1759, %v1751
    %v2192 = vpack.c.b16 %v1768, %v1760
    %v2193 = vpack.c.b16 %v1769, %v1761
    %v2194 = vpack.c.b16 %v1770, %v1762
    %v2195 = vpack.c.b16 %v1771, %v1763
    %v2196 = vpack.c.b16 %v1772, %v1764
    %v2197 = vpack.c.b16 %v1773, %v1765
    %v2198 = vpack.c.b16 %v1774, %v1766
    %v2199 = vpack.c.b16 %v1775, %v1767
    %v2200 = vpack.c.b16 %v1784, %v1776
    %v2201 = vpack.c.b16 %v1785, %v1777
    %v2202 = vpack.c.b16 %v1786, %v1778
    %v2203 = vpack.c.b16 %v1787, %v1779
    %v2204 = vpack.c.b16 %v1788, %v1780
    %v2205 = vpack.c.b16 %v1789, %v1781
    %v2206 = vpack.c.b16 %v1790, %v1782
    %v2207 = vpack.c.b16 %v1791, %v1783
    %v2208 = vpack.c.b16 %v1800, %v1792
    %v2209 = vpack.c.b16 %v1801, %v1793
    %v2210 = vpack.c.b16 %v1802, %v1794
    %v2211 = vpack.c.b16 %v1803, %v1795
    %v2212 = vpack.c.b16 %v1804, %v1796
    %v2213 = vpack.c.b16 %v1805, %v1797
    %v2214 = vpack.c.b16 %v1806, %v1798
    %v2215 = vpack.c.b16 %v1807, %v1799
    %v2216 = vpack.c.b16 %v1816, %v1808
    %v2217 = vpack.c.b16 %v1817, %v1809
    %v2218 = vpack.c.b16 %v1818, %v1810
    %v2219 = vpack.c.b16 %v1819, %v1811
    %v2220 = vpack.c.b16 %v1820, %v1812
    %v2221 = vpack.c.b16 %v1821, %v1813
    %v2222 = vpack.c.b16 %v1822, %v1814
    %v2223 = vpack.c.b16 %v1823, %v1815
    %v2224 = vpack.c.b16 %v1832, %v1824
    %v2225 = vpack.c.b16 %v1833, %v1825
    %v2226 = vpack.c.b16 %v1834, %v1826
    %v2227 = vpack.c.b16 %v1835, %v1827
    %v2228 = vpack.c.b16 %v1836, %v1828
    %v2229 = vpack.c.b16 %v1837, %v1829
    %v2230 = vpack.c.b16 %v1838, %v1830
    %v2231 = vpack.c.b16 %v1839, %v1831
    %v2232 = vpack.c.b16 %v1848, %v1840
    %v2233 = vpack.c.b16 %v1849, %v1841
    %v2234 = vpack.c.b16 %v1850, %v1842
    %v2235 = vpack.c.b16 %v1851, %v1843
    %v2236 = vpack.c.b16 %v1852, %v1844
    %v2237 = vpack.c.b16 %v1853, %v1845
    %v2238 = vpack.c.b16 %v1854, %v1846
    %v2239 = vpack.c.b16 %v1855, %v1847
    %v2240 = vpack.c.b16 %v1864, %v1856
    %v2241 = vpack.c.b16 %v1865, %v1857
    %v2242 = vpack.c.b16 %v1866, %v1858
    %v2243 = vpack.c.b16 %v1867, %v1859
    %v2244 = vpack.c.b16 %v1868, %v1860
    %v2245 = vpack.c.b16 %v1869, %v1861
    %v2246 = vpack.c.b16 %v1870, %v1862
    %v2247 = vpack.c.b16 %v1871, %v1863
    %v2248 = vpack.c.b16 %v1880, %v1872
    %v2249 = vpack.c.b16 %v1881, %v1873
    %v2250 = vpack.c.b16 %v1882, %v1874
    %v2251 = vpack.c.b16 %v1883, %v1875
    %v2252 = vpack.c.b16 %v1884, %v1876
    %v2253 = vpack.c.b16 %v1885, %v1877
    %v2254 = vpack.c.b16 %v1886, %v1878
    %v2255 = vpack.c.b16 %v1887, %v1879
    %v2256 = vpack.c.b16 %v1896, %v1888
    %v2257 = vpack.c.b16 %v1897, %v1889
    %v2258 = vpack.c.b16 %v1898, %v1890
    %v2259 = vpack.c.b16 %v1899, %v1891
    %v2260 = vpack.c.b16 %v1900, %v1892
    %v2261 = vpack.c.b16 %v1901, %v1893
    %v2262 = vpack.c.b16 %v1902, %v1894
    %v2263 = vpack.c.b16 %v1903, %v1895
    %v2264 = vpack.c.b16 %v1912, %v1904
    %v2265 = vpack.c.b16 %v1913, %v1905
    %v2266 = vpack.c.b16 %v1914, %v1906
    %v2267 = vpack.c.b16 %v1915, %v1907
    %v2268 = vpack.c.b16 %v1916, %v1908
    %v2269 = vpack.c.b16 %v1917, %v1909
    %v2270 = vpack.c.b16 %v1918, %v1910
    %v2271 = vpack.c.b16 %v1919, %v1911
    %v2272 = vpack.c.b16 %v1928, %v1920
    %v2273 = vpack.c.b16 %v1929, %v1921
    %v2274 = vpack.c.b16 %v1930, %v1922
    %v2275 = vpack.c.b16 %v1931, %v1923
    %v2276 = vpack.c.b16 %v1932, %v1924
    %v2277 = vpack.c.b16 %v1933, %v1925
    %v2278 = vpack.c.b16 %v1934, %v1926
    %v2279 = vpack.c.b16 %v1935, %v1927
    %v2280 = vpack.c.b16 %v1944, %v1936
    %v2281 = vpack.c.b16 %v1945, %v1937
    %v2282 = vpack.c.b16 %v1946, %v1938
    %v2283 = vpack.c.b16 %v1947, %v1939
    %v2284 = vpack.c.b16 %v1948, %v1940
    %v2285 = vpack.c.b16 %v1949, %v1941
    %v2286 = vpack.c.b16 %v1950, %v1942
    %v2287 = vpack.c.b16 %v1951, %v1943
    %v2288 = vpack.c.b16 %v1960, %v1952
    %v2289 = vpack.c.b16 %v1961, %v1953
    %v2290 = vpack.c.b16 %v1962, %v1954
    %v2291 = vpack.c.b16 %v1963, %v1955
    %v2292 = vpack.c.b16 %v1964, %v1956
    %v2293 = vpack.c.b16 %v1965, %v1957
    %v2294 = vpack.c.b16 %v1966, %v1958
    %v2295 = vpack.c.b16 %v1967, %v1959
    %v2296 = vpack.c.b16 %v1976, %v1968
    %v2297 = vpack.c.b16 %v1977, %v1969
    %v2298 = vpack.c.b16 %v1978, %v1970
    %v2299 = vpack.c.b16 %v1979, %v1971
    %v2300 = vpack.c.b16 %v1980, %v1972
    %v2301 = vpack.c.b16 %v1981, %v1973
    %v2302 = vpack.c.b16 %v1982, %v1974
    %v2303 = vpack.c.b16 %v1983, %v1975
    %v2304 = vpack.c.b16 %v1992, %v1984
    %v2305 = vpack.c.b16 %v1993, %v1985
    %v2306 = vpack.c.b16 %v1994, %v1986
    %v2307 = vpack.c.b16 %v1995, %v1987
    %v2308 = vpack.c.b16 %v1996, %v1988
    %v2309 = vpack.c.b16 %v1997, %v1989
    %v2310 = vpack.c.b16 %v1998, %v1990
    %v2311 = vpack.c.b16 %v1999, %v1991
    %v2312 = vpack.c.b16 %v2008, %v2000
    %v2313 = vpack.c.b16 %v2009, %v2001
    %v2314 = vpack.c.b16 %v2010, %v2002
    %v2315 = vpack.c.b16 %v2011, %v2003
    %v2316 = vpack.c.b16 %v2012, %v2004
    %v2317 = vpack.c.b16 %v2013, %v2005
    %v2318 = vpack.c.b16 %v2014, %v2006
    %v2319 = vpack.c.b16 %v2015, %v2007
    %v2320 = vpack.c.b16 %v2024, %v2016
    %v2321 = vpack.c.b16 %v2025, %v2017
    %v2322 = vpack.c.b16 %v2026, %v2018
    %v2323 = vpack.c.b16 %v2027, %v2019
    %v2324 = vpack.c.b16 %v2028, %v2020
    %v2325 = vpack.c.b16 %v2029, %v2021
    %v2326 = vpack.c.b16 %v2030, %v2022
    %v2327 = vpack.c.b16 %v2031, %v2023
    %v2328 = vpack.c.b16 %v2040, %v2032
    %v2329 = vpack.c.b16 %v2041, %v2033
    %v2330 = vpack.c.b16 %v2042, %v2034
    %v2331 = vpack.c.b16 %v2043, %v2035
    %v2332 = vpack.c.b16 %v2044, %v2036
    %v2333 = vpack.c.b16 %v2045, %v2037
    %v2334 = vpack.c.b16 %v2046, %v2038
    %v2335 = vpack.c.b16 %v2047, %v2039
    %v2336 = vpack.c.b16 %v2056, %v2048
    %v2337 = vpack.c.b16 %v2057, %v2049
    %v2338 = vpack.c.b16 %v2058, %v2050
    %v2339 = vpack.c.b16 %v2059, %v2051
    %v2340 = vpack.c.b16 %v2060, %v2052
    %v2341 = vpack.c.b16 %v2061, %v2053
    %v2342 = vpack.c.b16 %v2062, %v2054
    %v2343 = vpack.c.b16 %v2063, %v2055
    %v2344 = vpack.c.b16 %v2072, %v2064
    %v2345 = vpack.c.b16 %v2073, %v2065
    %v2346 = vpack.c.b16 %v2074, %v2066
    %v2347 = vpack.c.b16 %v2075, %v2067
    %v2348 = vpack.c.b16 %v2076, %v2068
    %v2349 = vpack.c.b16 %v2077, %v2069
    %v2350 = vpack.c.b16 %v2078, %v2070
    %v2351 = vpack.c.b16 %v2079, %v2071
    %v2352 = vpack.c.b16 %v2088, %v2080
    %v2353 = vpack.c.b16 %v2089, %v2081
    %v2354 = vpack.c.b16 %v2090, %v2082
    %v2355 = vpack.c.b16 %v2091, %v2083
    %v2356 = vpack.c.b16 %v2092, %v2084
    %v2357 = vpack.c.b16 %v2093, %v2085
    %v2358 = vpack.c.b16 %v2094, %v2086
    %v2359 = vpack.c.b16 %v2095, %v2087
    %v2360 = vpack.c.b16 %v2104, %v2096
    %v2361 = vpack.c.b16 %v2105, %v2097
    %v2362 = vpack.c.b16 %v2106, %v2098
    %v2363 = vpack.c.b16 %v2107, %v2099
    %v2364 = vpack.c.b16 %v2108, %v2100
    %v2365 = vpack.c.b16 %v2109, %v2101
    %v2366 = vpack.c.b16 %v2110, %v2102
    %v2367 = vpack.c.b16 %v2111, %v2103
    %2624 = vmatprep.subr.bf16.mxu0 %v2113
    %2625 = vmatpush1.bf16.msra.mxu0 %v2112
    %2626 = vmatprep.subr.bf16.mxu0 %v2121
    %2627 = vmatpush1.bf16.msra.mxu0 %v2120
    %2628 = vmatprep.subr.bf16.mxu0 %v2129
    %2629 = vmatpush1.bf16.msra.mxu0 %v2128
    %2630 = vmatprep.subr.bf16.mxu0 %v2137
    %2631 = vmatpush1.bf16.msra.mxu0 %v2136
    %2632 = vmatprep.subr.bf16.mxu0 %v2145
    %2633 = vmatpush1.bf16.msra.mxu0 %v2144
    %2634 = vmatprep.subr.bf16.mxu0 %v2153
    %2635 = vmatpush1.bf16.msra.mxu0 %v2152
    %2636 = vmatprep.subr.bf16.mxu0 %v2161
    %2637 = vmatpush1.bf16.msra.mxu0 %v2160
    %2638 = vmatprep.subr.bf16.mxu0 %v2169
    %2639 = vmatpush1.bf16.msra.mxu0 %v2168
    %2640 = vmatprep.subr.bf16.mxu0 %v2177
    %2641 = vmatpush1.bf16.msra.mxu0 %v2176
    %2642 = vmatprep.subr.bf16.mxu0 %v2185
    %2643 = vmatpush1.bf16.msra.mxu0 %v2184
    %2644 = vmatprep.subr.bf16.mxu0 %v2193
    %2645 = vmatpush1.bf16.msra.mxu0 %v2192
    %2646 = vmatprep.subr.bf16.mxu0 %v2201
    %2647 = vmatpush1.bf16.msra.mxu0 %v2200
    %2648 = vmatprep.subr.bf16.mxu0 %v2209
    %2649 = vmatpush1.bf16.msra.mxu0 %v2208
    %2650 = vmatprep.subr.bf16.mxu0 %v2217
    %2651 = vmatpush1.bf16.msra.mxu0 %v2216
    %2652 = vmatprep.subr.bf16.mxu0 %v2225
    %2653 = vmatpush1.bf16.msra.mxu0 %v2224
    %2654 = vmatprep.subr.bf16.mxu0 %v2233
    %2655 = vmatpush1.bf16.msra.mxu0 %v2232
    %2656 = vmatprep.mubr.bf16.mxu0 %v1043
    %2657 = vmatmul.mubr.bf16.gmra.mrb[0].mxu0 %v1042
    %v2658 = vpop.f32.mrb[0].mxu0
    %v2659 = vadd.f32 %v1307, %v2658
    %v2660 = vpop.f32.mrb[0].mxu0
    %v2661 = vadd.f32 %v1311, %v2660
    %v2662 = vpop.f32.mrb[0].mxu0
    %v2663 = vpop.f32.mrb[0].mxu0
    %2664 = vdwg.mxu0
    %2665 = vmatprep.subr.bf16.mxu0 %v2241
    %2666 = vmatpush1.bf16.msra.mxu0 %v2240
    %2667 = vmatprep.subr.bf16.mxu0 %v2249
    %2668 = vmatpush1.bf16.msra.mxu0 %v2248
    %2669 = vmatprep.subr.bf16.mxu0 %v2257
    %2670 = vmatpush1.bf16.msra.mxu0 %v2256
    %2671 = vmatprep.subr.bf16.mxu0 %v2265
    %2672 = vmatpush1.bf16.msra.mxu0 %v2264
    %2673 = vmatprep.subr.bf16.mxu0 %v2273
    %2674 = vmatpush1.bf16.msra.mxu0 %v2272
    %2675 = vmatprep.subr.bf16.mxu0 %v2281
    %2676 = vmatpush1.bf16.msra.mxu0 %v2280
    %2677 = vmatprep.subr.bf16.mxu0 %v2289
    %2678 = vmatpush1.bf16.msra.mxu0 %v2288
    %2679 = vmatprep.subr.bf16.mxu0 %v2297
    %2680 = vmatpush1.bf16.msra.mxu0 %v2296
    %2681 = vmatprep.subr.bf16.mxu0 %v2305
    %2682 = vmatpush1.bf16.msra.mxu0 %v2304
    %2683 = vmatprep.subr.bf16.mxu0 %v2313
    %2684 = vmatpush1.bf16.msra.mxu0 %v2312
    %2685 = vmatprep.subr.bf16.mxu0 %v2321
    %2686 = vmatpush1.bf16.msra.mxu0 %v2320
    %2687 = vmatprep.subr.bf16.mxu0 %v2329
    %2688 = vmatpush1.bf16.msra.mxu0 %v2328
    %2689 = vmatprep.subr.bf16.mxu0 %v2337
    %2690 = vmatpush1.bf16.msra.mxu0 %v2336
    %2691 = vmatprep.subr.bf16.mxu0 %v2345
    %2692 = vmatpush1.bf16.msra.mxu0 %v2344
    %2693 = vmatprep.subr.bf16.mxu0 %v2353
    %2694 = vmatpush1.bf16.msra.mxu0 %v2352
    %2695 = vmatprep.subr.bf16.mxu0 %v2361
    %2696 = vmatpush1.bf16.msra.mxu0 %v2360
    %2697 = vmatprep.mubr.bf16.mxu0 %v1045
    %2698 = vmatmul.mubr.bf16.gmra.mrb[0].mxu0 %v1044
    %v2699 = vpop.f32.mrb[0].mxu0
    %v2700 = vadd.f32 %v2659, %v2699
    %v2701 = vpop.f32.mrb[0].mxu0
    %v2702 = vadd.f32 %v2661, %v2701
    %v2703 = vpop.f32.mrb[0].mxu0
    %v2704 = vpop.f32.mrb[0].mxu0
    %2705 = vdwg.mxu0
    %2706 = vmatprep.subr.bf16.mxu0 %v2115
    %2707 = vmatpush1.bf16.msra.mxu0 %v2114
    %2708 = vmatprep.subr.bf16.mxu0 %v2123
    %2709 = vmatpush1.bf16.msra.mxu0 %v2122
    %2710 = vmatprep.subr.bf16.mxu0 %v2131
    %2711 = vmatpush1.bf16.msra.mxu0 %v2130
    %2712 = vmatprep.subr.bf16.mxu0 %v2139
    %2713 = vmatpush1.bf16.msra.mxu0 %v2138
    %2714 = vmatprep.subr.bf16.mxu0 %v2147
    %2715 = vmatpush1.bf16.msra.mxu0 %v2146
    %2716 = vmatprep.subr.bf16.mxu0 %v2155
    %2717 = vmatpush1.bf16.msra.mxu0 %v2154
    %2718 = vmatprep.subr.bf16.mxu0 %v2163
    %2719 = vmatpush1.bf16.msra.mxu0 %v2162
    %2720 = vmatprep.subr.bf16.mxu0 %v2171
    %2721 = vmatpush1.bf16.msra.mxu0 %v2170
    %2722 = vmatprep.subr.bf16.mxu0 %v2179
    %2723 = vmatpush1.bf16.msra.mxu0 %v2178
    %2724 = vmatprep.subr.bf16.mxu0 %v2187
    %2725 = vmatpush1.bf16.msra.mxu0 %v2186
    %2726 = vmatprep.subr.bf16.mxu0 %v2195
    %2727 = vmatpush1.bf16.msra.mxu0 %v2194
    %2728 = vmatprep.subr.bf16.mxu0 %v2203
    %2729 = vmatpush1.bf16.msra.mxu0 %v2202
    %2730 = vmatprep.subr.bf16.mxu0 %v2211
    %2731 = vmatpush1.bf16.msra.mxu0 %v2210
    %2732 = vmatprep.subr.bf16.mxu0 %v2219
    %2733 = vmatpush1.bf16.msra.mxu0 %v2218
    %2734 = vmatprep.subr.bf16.mxu0 %v2227
    %2735 = vmatpush1.bf16.msra.mxu0 %v2226
    %2736 = vmatprep.subr.bf16.mxu0 %v2235
    %2737 = vmatpush1.bf16.msra.mxu0 %v2234
    %2738 = vmatprep.mubr.bf16.mxu0 %v1043
    %2739 = vmatmul.mubr.bf16.gmra.mrb[0].mxu0 %v1042
    %v2740 = vpop.f32.mrb[0].mxu0
    %v2741 = vadd.f32 %v1315, %v2740
    %v2742 = vpop.f32.mrb[0].mxu0
    %v2743 = vadd.f32 %v1319, %v2742
    %v2744 = vpop.f32.mrb[0].mxu0
    %v2745 = vpop.f32.mrb[0].mxu0
    %2746 = vdwg.mxu0
    %2747 = vmatprep.subr.bf16.mxu0 %v2243
    %2748 = vmatpush1.bf16.msra.mxu0 %v2242
    %2749 = vmatprep.subr.bf16.mxu0 %v2251
    %2750 = vmatpush1.bf16.msra.mxu0 %v2250
    %2751 = vmatprep.subr.bf16.mxu0 %v2259
    %2752 = vmatpush1.bf16.msra.mxu0 %v2258
    %2753 = vmatprep.subr.bf16.mxu0 %v2267
    %2754 = vmatpush1.bf16.msra.mxu0 %v2266
    %2755 = vmatprep.subr.bf16.mxu0 %v2275
    %2756 = vmatpush1.bf16.msra.mxu0 %v2274
    %2757 = vmatprep.subr.bf16.mxu0 %v2283
    %2758 = vmatpush1.bf16.msra.mxu0 %v2282
    %2759 = vmatprep.subr.bf16.mxu0 %v2291
    %2760 = vmatpush1.bf16.msra.mxu0 %v2290
    %2761 = vmatprep.subr.bf16.mxu0 %v2299
    %2762 = vmatpush1.bf16.msra.mxu0 %v2298
    %2763 = vmatprep.subr.bf16.mxu0 %v2307
    %2764 = vmatpush1.bf16.msra.mxu0 %v2306
    %2765 = vmatprep.subr.bf16.mxu0 %v2315
    %2766 = vmatpush1.bf16.msra.mxu0 %v2314
    %2767 = vmatprep.subr.bf16.mxu0 %v2323
    %2768 = vmatpush1.bf16.msra.mxu0 %v2322
    %2769 = vmatprep.subr.bf16.mxu0 %v2331
    %2770 = vmatpush1.bf16.msra.mxu0 %v2330
    %2771 = vmatprep.subr.bf16.mxu0 %v2339
    %2772 = vmatpush1.bf16.msra.mxu0 %v2338
    %2773 = vmatprep.subr.bf16.mxu0 %v2347
    %2774 = vmatpush1.bf16.msra.mxu0 %v2346
    %2775 = vmatprep.subr.bf16.mxu0 %v2355
    %2776 = vmatpush1.bf16.msra.mxu0 %v2354
    %2777 = vmatprep.subr.bf16.mxu0 %v2363
    %2778 = vmatpush1.bf16.msra.mxu0 %v2362
    %2779 = vmatprep.mubr.bf16.mxu0 %v1045
    %2780 = vmatmul.mubr.bf16.gmra.mrb[0].mxu0 %v1044
    %v2781 = vpop.f32.mrb[0].mxu0
    %v2782 = vadd.f32 %v2741, %v2781
    %v2783 = vpop.f32.mrb[0].mxu0
    %v2784 = vadd.f32 %v2743, %v2783
    %v2785 = vpop.f32.mrb[0].mxu0
    %v2786 = vpop.f32.mrb[0].mxu0
    %2787 = vdwg.mxu0
    %2788 = vmatprep.subr.bf16.mxu0 %v2117
    %2789 = vmatpush1.bf16.msra.mxu0 %v2116
    %2790 = vmatprep.subr.bf16.mxu0 %v2125
    %2791 = vmatpush1.bf16.msra.mxu0 %v2124
    %2792 = vmatprep.subr.bf16.mxu0 %v2133
    %2793 = vmatpush1.bf16.msra.mxu0 %v2132
    %2794 = vmatprep.subr.bf16.mxu0 %v2141
    %2795 = vmatpush1.bf16.msra.mxu0 %v2140
    %2796 = vmatprep.subr.bf16.mxu0 %v2149
    %2797 = vmatpush1.bf16.msra.mxu0 %v2148
    %2798 = vmatprep.subr.bf16.mxu0 %v2157
    %2799 = vmatpush1.bf16.msra.mxu0 %v2156
    %2800 = vmatprep.subr.bf16.mxu0 %v2165
    %2801 = vmatpush1.bf16.msra.mxu0 %v2164
    %2802 = vmatprep.subr.bf16.mxu0 %v2173
    %2803 = vmatpush1.bf16.msra.mxu0 %v2172
    %2804 = vmatprep.subr.bf16.mxu0 %v2181
    %2805 = vmatpush1.bf16.msra.mxu0 %v2180
    %2806 = vmatprep.subr.bf16.mxu0 %v2189
    %2807 = vmatpush1.bf16.msra.mxu0 %v2188
    %2808 = vmatprep.subr.bf16.mxu0 %v2197
    %2809 = vmatpush1.bf16.msra.mxu0 %v2196
    %2810 = vmatprep.subr.bf16.mxu0 %v2205
    %2811 = vmatpush1.bf16.msra.mxu0 %v2204
    %2812 = vmatprep.subr.bf16.mxu0 %v2213
    %2813 = vmatpush1.bf16.msra.mxu0 %v2212
    %2814 = vmatprep.subr.bf16.mxu0 %v2221
    %2815 = vmatpush1.bf16.msra.mxu0 %v2220
    %2816 = vmatprep.subr.bf16.mxu0 %v2229
    %2817 = vmatpush1.bf16.msra.mxu0 %v2228
    %2818 = vmatprep.subr.bf16.mxu0 %v2237
    %2819 = vmatpush1.bf16.msra.mxu0 %v2236
    %2820 = vmatprep.mubr.bf16.mxu0 %v1043
    %2821 = vmatmul.mubr.bf16.gmra.mrb[0].mxu0 %v1042
    %v2822 = vpop.f32.mrb[0].mxu0
    %v2823 = vadd.f32 %v1323, %v2822
    %v2824 = vpop.f32.mrb[0].mxu0
    %v2825 = vadd.f32 %v1327, %v2824
    %v2826 = vpop.f32.mrb[0].mxu0
    %v2827 = vpop.f32.mrb[0].mxu0
    %2828 = vdwg.mxu0
    %2829 = vmatprep.subr.bf16.mxu0 %v2245
    %2830 = vmatpush1.bf16.msra.mxu0 %v2244
    %2831 = vmatprep.subr.bf16.mxu0 %v2253
    %2832 = vmatpush1.bf16.msra.mxu0 %v2252
    %2833 = vmatprep.subr.bf16.mxu0 %v2261
    %2834 = vmatpush1.bf16.msra.mxu0 %v2260
    %2835 = vmatprep.subr.bf16.mxu0 %v2269
    %2836 = vmatpush1.bf16.msra.mxu0 %v2268
    %2837 = vmatprep.subr.bf16.mxu0 %v2277
    %2838 = vmatpush1.bf16.msra.mxu0 %v2276
    %2839 = vmatprep.subr.bf16.mxu0 %v2285
    %2840 = vmatpush1.bf16.msra.mxu0 %v2284
    %2841 = vmatprep.subr.bf16.mxu0 %v2293
    %2842 = vmatpush1.bf16.msra.mxu0 %v2292
    %2843 = vmatprep.subr.bf16.mxu0 %v2301
    %2844 = vmatpush1.bf16.msra.mxu0 %v2300
    %2845 = vmatprep.subr.bf16.mxu0 %v2309
    %2846 = vmatpush1.bf16.msra.mxu0 %v2308
    %2847 = vmatprep.subr.bf16.mxu0 %v2317
    %2848 = vmatpush1.bf16.msra.mxu0 %v2316
    %2849 = vmatprep.subr.bf16.mxu0 %v2325
    %2850 = vmatpush1.bf16.msra.mxu0 %v2324
    %2851 = vmatprep.subr.bf16.mxu0 %v2333
    %2852 = vmatpush1.bf16.msra.mxu0 %v2332
    %2853 = vmatprep.subr.bf16.mxu0 %v2341
    %2854 = vmatpush1.bf16.msra.mxu0 %v2340
    %2855 = vmatprep.subr.bf16.mxu0 %v2349
    %2856 = vmatpush1.bf16.msra.mxu0 %v2348
    %2857 = vmatprep.subr.bf16.mxu0 %v2357
    %2858 = vmatpush1.bf16.msra.mxu0 %v2356
    %2859 = vmatprep.subr.bf16.mxu0 %v2365
    %2860 = vmatpush1.bf16.msra.mxu0 %v2364
    %2861 = vmatprep.mubr.bf16.mxu0 %v1045
    %2862 = vmatmul.mubr.bf16.gmra.mrb[0].mxu0 %v1044
    %v2863 = vpop.f32.mrb[0].mxu0
    %v2864 = vadd.f32 %v2823, %v2863
    %v2865 = vpop.f32.mrb[0].mxu0
    %v2866 = vadd.f32 %v2825, %v2865
    %v2867 = vpop.f32.mrb[0].mxu0
    %v2868 = vpop.f32.mrb[0].mxu0
    %2869 = vdwg.mxu0
    %2870 = vmatprep.subr.bf16.mxu0 %v2119
    %2871 = vmatpush1.bf16.msra.mxu0 %v2118
    %2872 = vmatprep.subr.bf16.mxu0 %v2127
    %2873 = vmatpush1.bf16.msra.mxu0 %v2126
    %2874 = vmatprep.subr.bf16.mxu0 %v2135
    %2875 = vmatpush1.bf16.msra.mxu0 %v2134
    %2876 = vmatprep.subr.bf16.mxu0 %v2143
    %2877 = vmatpush1.bf16.msra.mxu0 %v2142
    %2878 = vmatprep.subr.bf16.mxu0 %v2151
    %2879 = vmatpush1.bf16.msra.mxu0 %v2150
    %2880 = vmatprep.subr.bf16.mxu0 %v2159
    %2881 = vmatpush1.bf16.msra.mxu0 %v2158
    %2882 = vmatprep.subr.bf16.mxu0 %v2167
    %2883 = vmatpush1.bf16.msra.mxu0 %v2166
    %2884 = vmatprep.subr.bf16.mxu0 %v2175
    %2885 = vmatpush1.bf16.msra.mxu0 %v2174
    %2886 = vmatprep.subr.bf16.mxu0 %v2183
    %2887 = vmatpush1.bf16.msra.mxu0 %v2182
    %2888 = vmatprep.subr.bf16.mxu0 %v2191
    %2889 = vmatpush1.bf16.msra.mxu0 %v2190
    %2890 = vmatprep.subr.bf16.mxu0 %v2199
    %2891 = vmatpush1.bf16.msra.mxu0 %v2198
    %2892 = vmatprep.subr.bf16.mxu0 %v2207
    %2893 = vmatpush1.bf16.msra.mxu0 %v2206
    %2894 = vmatprep.subr.bf16.mxu0 %v2215
    %2895 = vmatpush1.bf16.msra.mxu0 %v2214
    %2896 = vmatprep.subr.bf16.mxu0 %v2223
    %2897 = vmatpush1.bf16.msra.mxu0 %v2222
    %2898 = vmatprep.subr.bf16.mxu0 %v2231
    %2899 = vmatpush1.bf16.msra.mxu0 %v2230
    %2900 = vmatprep.subr.bf16.mxu0 %v2239
    %2901 = vmatpush1.bf16.msra.mxu0 %v2238
    %2902 = vmatprep.mubr.bf16.mxu0 %v1043
    %2903 = vmatmul.mubr.bf16.gmra.mrb[0].mxu0 %v1042
    %v2904 = vpop.f32.mrb[0].mxu0
    %v2905 = vadd.f32 %v1331, %v2904
    %v2906 = vpop.f32.mrb[0].mxu0
    %v2907 = vadd.f32 %v1335, %v2906
    %v2908 = vpop.f32.mrb[0].mxu0
    %v2909 = vpop.f32.mrb[0].mxu0
    %2910 = vdwg.mxu0
    %2911 = vmatprep.subr.bf16.mxu0 %v2247
    %2912 = vmatpush1.bf16.msra.mxu0 %v2246
    %2913 = vmatprep.subr.bf16.mxu0 %v2255
    %2914 = vmatpush1.bf16.msra.mxu0 %v2254
    %2915 = vmatprep.subr.bf16.mxu0 %v2263
    %2916 = vmatpush1.bf16.msra.mxu0 %v2262
    %2917 = vmatprep.subr.bf16.mxu0 %v2271
    %2918 = vmatpush1.bf16.msra.mxu0 %v2270
    %2919 = vmatprep.subr.bf16.mxu0 %v2279
    %2920 = vmatpush1.bf16.msra.mxu0 %v2278
    %2921 = vmatprep.subr.bf16.mxu0 %v2287
    %2922 = vmatpush1.bf16.msra.mxu0 %v2286
    %2923 = vmatprep.subr.bf16.mxu0 %v2295
    %2924 = vmatpush1.bf16.msra.mxu0 %v2294
    %2925 = vmatprep.subr.bf16.mxu0 %v2303
    %2926 = vmatpush1.bf16.msra.mxu0 %v2302
    %2927 = vmatprep.subr.bf16.mxu0 %v2311
    %2928 = vmatpush1.bf16.msra.mxu0 %v2310
    %2929 = vmatprep.subr.bf16.mxu0 %v2319
    %2930 = vmatpush1.bf16.msra.mxu0 %v2318
    %2931 = vmatprep.subr.bf16.mxu0 %v2327
    %2932 = vmatpush1.bf16.msra.mxu0 %v2326
    %2933 = vmatprep.subr.bf16.mxu0 %v2335
    %2934 = vmatpush1.bf16.msra.mxu0 %v2334
    %2935 = vmatprep.subr.bf16.mxu0 %v2343
    %2936 = vmatpush1.bf16.msra.mxu0 %v2342
    %2937 = vmatprep.subr.bf16.mxu0 %v2351
    %2938 = vmatpush1.bf16.msra.mxu0 %v2350
    %2939 = vmatprep.subr.bf16.mxu0 %v2359
    %2940 = vmatpush1.bf16.msra.mxu0 %v2358
    %2941 = vmatprep.subr.bf16.mxu0 %v2367
    %2942 = vmatpush1.bf16.msra.mxu0 %v2366
    %2943 = vmatprep.mubr.bf16.mxu0 %v1045
    %2944 = vmatmul.mubr.bf16.gmra.mrb[0].mxu0 %v1044
    %v2945 = vpop.f32.mrb[0].mxu0
    %v2946 = vadd.f32 %v2905, %v2945
    %v2947 = vpop.f32.mrb[0].mxu0
    %v2948 = vadd.f32 %v2907, %v2947
    %v2949 = vpop.f32.mrb[0].mxu0
    %v2950 = vpop.f32.mrb[0].mxu0
    %2951 = vdwg.mxu0
    %v2952 = vrot.slane %v2700, 4
    %v2953 = vadd.f32 %v2700, %v2952
    %v2954 = vrot.slane %v2953, 2
    %v2955 = vadd.f32 %v2953, %v2954
    %v2956 = vrot.slane %v2955, 1
    %v2957 = vadd.f32 %v2955, %v2956
    %v2958 = vrot.slane %v2702, 4
    %v2959 = vadd.f32 %v2702, %v2958
    %v2960 = vrot.slane %v2959, 2
    %v2961 = vadd.f32 %v2959, %v2960
    %v2962 = vrot.slane %v2961, 1
    %v2963 = vadd.f32 %v2961, %v2962
    %v2964 = vrot.slane %v2782, 4
    %v2965 = vadd.f32 %v2782, %v2964
    %v2966 = vrot.slane %v2965, 2
    %v2967 = vadd.f32 %v2965, %v2966
    %v2968 = vrot.slane %v2967, 1
    %v2969 = vadd.f32 %v2967, %v2968
    %v2970 = vrot.slane %v2784, 4
    %v2971 = vadd.f32 %v2784, %v2970
    %v2972 = vrot.slane %v2971, 2
    %v2973 = vadd.f32 %v2971, %v2972
    %v2974 = vrot.slane %v2973, 1
    %v2975 = vadd.f32 %v2973, %v2974
    %v2976 = vrot.slane %v2864, 4
    %v2977 = vadd.f32 %v2864, %v2976
    %v2978 = vrot.slane %v2977, 2
    %v2979 = vadd.f32 %v2977, %v2978
    %v2980 = vrot.slane %v2979, 1
    %v2981 = vadd.f32 %v2979, %v2980
    %v2982 = vrot.slane %v2866, 4
    %v2983 = vadd.f32 %v2866, %v2982
    %v2984 = vrot.slane %v2983, 2
    %v2985 = vadd.f32 %v2983, %v2984
    %v2986 = vrot.slane %v2985, 1
    %v2987 = vadd.f32 %v2985, %v2986
    %v2988 = vrot.slane %v2946, 4
    %v2989 = vadd.f32 %v2946, %v2988
    %v2990 = vrot.slane %v2989, 2
    %v2991 = vadd.f32 %v2989, %v2990
    %v2992 = vrot.slane %v2991, 1
    %v2993 = vadd.f32 %v2991, %v2992
    %v2994 = vrot.slane %v2948, 4
    %v2995 = vadd.f32 %v2948, %v2994
    %v2996 = vrot.slane %v2995, 2
    %v2997 = vadd.f32 %v2995, %v2996
    %v2998 = vrot.slane %v2997, 1
    %v2999 = vadd.f32 %v2997, %v2998
    %v3000 = vmul.f32 %v2957, %v351
    %v3001 = vmul.f32 %v2963, %v351
    %v3002 = vmul.f32 %v2969, %v351
    %v3003 = vmul.f32 %v2975, %v351
    %v3004 = vmul.f32 %v2981, %v351
    %v3005 = vmul.f32 %v2987, %v351
    %v3006 = vmul.f32 %v2993, %v351
    %v3007 = vmul.f32 %v2999, %v351
    %v3008 = vmul.f32 %v2700, %v2700
    %v3009 = vmul.f32 %v2702, %v2702
    %v3010 = vmul.f32 %v2782, %v2782
    %v3011 = vmul.f32 %v2784, %v2784
    %v3012 = vmul.f32 %v2864, %v2864
    %v3013 = vmul.f32 %v2866, %v2866
    %v3014 = vmul.f32 %v2946, %v2946
    %v3015 = vmul.f32 %v2948, %v2948
    %v3016 = vrot.slane %v3008, 4
    %v3017 = vadd.f32 %v3008, %v3016
    %v3018 = vrot.slane %v3017, 2
    %v3019 = vadd.f32 %v3017, %v3018
    %v3020 = vrot.slane %v3019, 1
    %v3021 = vadd.f32 %v3019, %v3020
    %v3022 = vrot.slane %v3009, 4
    %v3023 = vadd.f32 %v3009, %v3022
    %v3024 = vrot.slane %v3023, 2
    %v3025 = vadd.f32 %v3023, %v3024
    %v3026 = vrot.slane %v3025, 1
    %v3027 = vadd.f32 %v3025, %v3026
    %v3028 = vrot.slane %v3010, 4
    %v3029 = vadd.f32 %v3010, %v3028
    %v3030 = vrot.slane %v3029, 2
    %v3031 = vadd.f32 %v3029, %v3030
    %v3032 = vrot.slane %v3031, 1
    %v3033 = vadd.f32 %v3031, %v3032
    %v3034 = vrot.slane %v3011, 4
    %v3035 = vadd.f32 %v3011, %v3034
    %v3036 = vrot.slane %v3035, 2
    %v3037 = vadd.f32 %v3035, %v3036
    %v3038 = vrot.slane %v3037, 1
    %v3039 = vadd.f32 %v3037, %v3038
    %v3040 = vrot.slane %v3012, 4
    %v3041 = vadd.f32 %v3012, %v3040
    %v3042 = vrot.slane %v3041, 2
    %v3043 = vadd.f32 %v3041, %v3042
    %v3044 = vrot.slane %v3043, 1
    %v3045 = vadd.f32 %v3043, %v3044
    %v3046 = vrot.slane %v3013, 4
    %v3047 = vadd.f32 %v3013, %v3046
    %v3048 = vrot.slane %v3047, 2
    %v3049 = vadd.f32 %v3047, %v3048
    %v3050 = vrot.slane %v3049, 1
    %v3051 = vadd.f32 %v3049, %v3050
    %v3052 = vrot.slane %v3014, 4
    %v3053 = vadd.f32 %v3014, %v3052
    %v3054 = vrot.slane %v3053, 2
    %v3055 = vadd.f32 %v3053, %v3054
    %v3056 = vrot.slane %v3055, 1
    %v3057 = vadd.f32 %v3055, %v3056
    %v3058 = vrot.slane %v3015, 4
    %v3059 = vadd.f32 %v3015, %v3058
    %v3060 = vrot.slane %v3059, 2
    %v3061 = vadd.f32 %v3059, %v3060
    %v3062 = vrot.slane %v3061, 1
    %v3063 = vadd.f32 %v3061, %v3062
    %v3064 = vmul.f32 %v3021, %v351
    %v3065 = vmul.f32 %v3027, %v351
    %v3066 = vmul.f32 %v3033, %v351
    %v3067 = vmul.f32 %v3039, %v351
    %v3068 = vmul.f32 %v3045, %v351
    %v3069 = vmul.f32 %v3051, %v351
    %v3070 = vmul.f32 %v3057, %v351
    %v3071 = vmul.f32 %v3063, %v351
    %v3072 = vmul.f32 %v3000, %v3000
    %v3073 = vmul.f32 %v3001, %v3001
    %v3074 = vmul.f32 %v3002, %v3002
    %v3075 = vmul.f32 %v3003, %v3003
    %v3076 = vmul.f32 %v3004, %v3004
    %v3077 = vmul.f32 %v3005, %v3005
    %v3078 = vmul.f32 %v3006, %v3006
    %v3079 = vmul.f32 %v3007, %v3007
    %v3080 = vsub.f32 %v3064, %v3072
    %v3081 = vsub.f32 %v3065, %v3073
    %v3082 = vsub.f32 %v3066, %v3074
    %v3083 = vsub.f32 %v3067, %v3075
    %v3084 = vsub.f32 %v3068, %v3076
    %v3085 = vsub.f32 %v3069, %v3077
    %v3086 = vsub.f32 %v3070, %v3078
    %v3087 = vsub.f32 %v3071, %v3079
    %v3088 = vsub.f32 %v2700, %v3000
    %v3089 = vsub.f32 %v2702, %v3001
    %v3090 = vsub.f32 %v2782, %v3002
    %v3091 = vsub.f32 %v2784, %v3003
    %v3092 = vsub.f32 %v2864, %v3004
    %v3093 = vsub.f32 %v2866, %v3005
    %v3094 = vsub.f32 %v2946, %v3006
    %v3095 = vsub.f32 %v2948, %v3007
    %v3096 = vadd.f32 %v3080, 0.8
    %v3097 = vadd.f32 %v3081, 0.8
    %v3098 = vadd.f32 %v3082, 0.8
    %v3099 = vadd.f32 %v3083, 0.8
    %v3100 = vadd.f32 %v3084, 0.8
    %v3101 = vadd.f32 %v3085, 0.8
    %v3102 = vadd.f32 %v3086, 0.8
    %v3103 = vadd.f32 %v3087, 0.8
    %v3104 = vrsqrt.pop %v3096
    %v3105 = vrsqrt.pop %v3097
    %v3106 = vrsqrt.pop %v3098
    %v3107 = vrsqrt.pop %v3099
    %v3108 = vrsqrt.pop %v3100
    %v3109 = vrsqrt.pop %v3101
    %v3110 = vrsqrt.pop %v3102
    %v3111 = vrsqrt.pop %v3103
    %v3112 = vmul.f32 %v3088, %v3104
    %v3113 = vmul.f32 %v3089, %v3105
    %v3114 = vmul.f32 %v3090, %v3106
    %v3115 = vmul.f32 %v3091, %v3107
    %v3116 = vmul.f32 %v3092, %v3108
    %v3117 = vmul.f32 %v3093, %v3109
    %v3118 = vmul.f32 %v3094, %v3110
    %v3119 = vmul.f32 %v3095, %v3111
    %v3120 = vld [vmem:[#allocation13 + $0x1b] sm:$0xff]
    %v3122 = vlaneseq
    %v3123 = vshrl.u32 %v3122, 7
    %v3124 = vsub.s32 0, %v3123
    %v3125 = vrot.slane %v3120, %v3124
    %v3126 = vlaneseq
    %v3127 = vshrl.u32 %v3126, 7
    %v3128 = vsub.s32 1, %v3127
    %v3129 = vrot.slane %v3120, %v3128
    %v3130 = vlaneseq
    %v3131 = vshrl.u32 %v3130, 7
    %v3132 = vsub.s32 2, %v3131
    %v3133 = vrot.slane %v3120, %v3132
    %v3134 = vlaneseq
    %v3135 = vshrl.u32 %v3134, 7
    %v3136 = vsub.s32 3, %v3135
    %v3137 = vrot.slane %v3120, %v3136
    %v3138 = vlaneseq
    %v3139 = vshrl.u32 %v3138, 7
    %v3140 = vsub.s32 4, %v3139
    %v3141 = vrot.slane %v3120, %v3140
    %v3142 = vlaneseq
    %v3143 = vshrl.u32 %v3142, 7
    %v3144 = vsub.s32 5, %v3143
    %v3145 = vrot.slane %v3120, %v3144
    %v3146 = vlaneseq
    %v3147 = vshrl.u32 %v3146, 7
    %v3148 = vsub.s32 6, %v3147
    %v3149 = vrot.slane %v3120, %v3148
    %v3150 = vlaneseq
    %v3151 = vshrl.u32 %v3150, 7
    %v3152 = vsub.s32 7, %v3151
    %v3153 = vrot.slane %v3120, %v3152
    %v3162 = vmul.f32 %v3112, %v3125
    %v3163 = vmul.f32 %v3113, %v3129
    %v3164 = vmul.f32 %v3114, %v3133
    %v3165 = vmul.f32 %v3115, %v3137
    %v3166 = vmul.f32 %v3116, %v3141
    %v3167 = vmul.f32 %v3117, %v3145
    %v3168 = vmul.f32 %v3118, %v3149
    %v3169 = vmul.f32 %v3119, %v3153
    %v3170 = vld [vmem:[#allocation13 + $0x23] sm:$0xff]
    %v3172 = vlaneseq
    %v3173 = vshrl.u32 %v3172, 7
    %v3174 = vsub.s32 0, %v3173
    %v3175 = vrot.slane %v3170, %v3174
    %v3176 = vlaneseq
    %v3177 = vshrl.u32 %v3176, 7
    %v3178 = vsub.s32 1, %v3177
    %v3179 = vrot.slane %v3170, %v3178
    %v3180 = vlaneseq
    %v3181 = vshrl.u32 %v3180, 7
    %v3182 = vsub.s32 2, %v3181
    %v3183 = vrot.slane %v3170, %v3182
    %v3184 = vlaneseq
    %v3185 = vshrl.u32 %v3184, 7
    %v3186 = vsub.s32 3, %v3185
    %v3187 = vrot.slane %v3170, %v3186
    %v3188 = vlaneseq
    %v3189 = vshrl.u32 %v3188, 7
    %v3190 = vsub.s32 4, %v3189
    %v3191 = vrot.slane %v3170, %v3190
    %v3192 = vlaneseq
    %v3193 = vshrl.u32 %v3192, 7
    %v3194 = vsub.s32 5, %v3193
    %v3195 = vrot.slane %v3170, %v3194
    %v3196 = vlaneseq
    %v3197 = vshrl.u32 %v3196, 7
    %v3198 = vsub.s32 6, %v3197
    %v3199 = vrot.slane %v3170, %v3198
    %v3200 = vlaneseq
    %v3201 = vshrl.u32 %v3200, 7
    %v3202 = vsub.s32 7, %v3201
    %v3203 = vrot.slane %v3170, %v3202
    %v3212 = vadd.f32 %v3162, %v3175
    %v3213 = vadd.f32 %v3163, %v3179
    %v3214 = vadd.f32 %v3164, %v3183
    %v3215 = vadd.f32 %v3165, %v3187
    %v3216 = vadd.f32 %v3166, %v3191
    %v3217 = vadd.f32 %v3167, %v3195
    %v3218 = vadd.f32 %v3168, %v3199
    %v3219 = vadd.f32 %v3169, %v3203
    %v3220 = vmax.f32 %v3212, 0.0
    %v3221 = vmax.f32 %v3213, 0.0
    %v3222 = vmax.f32 %v3214, 0.0
    %v3223 = vmax.f32 %v3215, 0.0
    %v3224 = vmax.f32 %v3216, 0.0
    %v3225 = vmax.f32 %v3217, 0.0
    %v3226 = vmax.f32 %v3218, 0.0
    %v3227 = vmax.f32 %v3219, 0.0
    %v3228 = vpack.c.bf16 %v3220, %v3220
    %v3229 = vpack.c.bf16 %v3221, %v3221
    %v3230 = vpack.c.bf16 %v3222, %v3222
    %v3231 = vpack.c.bf16 %v3223, %v3223
    %v3232 = vpack.c.bf16 %v3224, %v3224
    %v3233 = vpack.c.bf16 %v3225, %v3225
    %v3234 = vpack.c.bf16 %v3226, %v3226
    %v3235 = vpack.c.bf16 %v3227, %v3227
    %v3236 = vld [vmem:[#allocation11] sm:$0xff]
    %v3237 = vld [vmem:[#allocation11 + $0x8] sm:$0xff]
    %v3238 = vld [vmem:[#allocation11 + $0x10] sm:$0xff]
    %v3239 = vld [vmem:[#allocation11 + $0x18] sm:$0xff]
    %v3240 = vld [vmem:[#allocation11 + $0x20] sm:$0xff]
    %v3241 = vld [vmem:[#allocation11 + $0x28] sm:$0xff]
    %v3242 = vld [vmem:[#allocation11 + $0x30] sm:$0xff]
    %v3243 = vld [vmem:[#allocation11 + $0x38] sm:$0xff]
    %v3244 = vld [vmem:[#allocation11 + $0x40] sm:$0xff]
    %v3245 = vld [vmem:[#allocation11 + $0x48] sm:$0xff]
    %v3246 = vld [vmem:[#allocation11 + $0x50] sm:$0xff]
    %v3247 = vld [vmem:[#allocation11 + $0x58] sm:$0xff]
    %v3248 = vld [vmem:[#allocation11 + $0x60] sm:$0xff]
    %v3249 = vld [vmem:[#allocation11 + $0x68] sm:$0xff]
    %v3250 = vld [vmem:[#allocation11 + $0x70] sm:$0xff]
    %v3251 = vld [vmem:[#allocation11 + $0x78] sm:$0xff]
    %v3252 = vld [vmem:[#allocation11 + $0x80] sm:$0xff]
    %v3253 = vld [vmem:[#allocation11 + $0x88] sm:$0xff]
    %v3254 = vld [vmem:[#allocation11 + $0x90] sm:$0xff]
    %v3255 = vld [vmem:[#allocation11 + $0x98] sm:$0xff]
    %v3256 = vld [vmem:[#allocation11 + $0xa0] sm:$0xff]
    %v3257 = vld [vmem:[#allocation11 + $0xa8] sm:$0xff]
    %v3258 = vld [vmem:[#allocation11 + $0xb0] sm:$0xff]
    %v3259 = vld [vmem:[#allocation11 + $0xb8] sm:$0xff]
    %v3260 = vld [vmem:[#allocation11 + $0xc0] sm:$0xff]
    %v3261 = vld [vmem:[#allocation11 + $0xc8] sm:$0xff]
    %v3262 = vld [vmem:[#allocation11 + $0xd0] sm:$0xff]
    %v3263 = vld [vmem:[#allocation11 + $0xd8] sm:$0xff]
    %v3264 = vld [vmem:[#allocation11 + $0xe0] sm:$0xff]
    %v3265 = vld [vmem:[#allocation11 + $0xe8] sm:$0xff]
    %v3266 = vld [vmem:[#allocation11 + $0xf0] sm:$0xff]
    %v3267 = vld [vmem:[#allocation11 + $0xf8] sm:$0xff]
    %v3268 = vld [vmem:[#allocation11 + $0x100] sm:$0xff]
    %v3269 = vld [vmem:[#allocation11 + $0x108] sm:$0xff]
    %v3270 = vld [vmem:[#allocation11 + $0x110] sm:$0xff]
    %v3271 = vld [vmem:[#allocation11 + $0x118] sm:$0xff]
    %v3272 = vld [vmem:[#allocation11 + $0x120] sm:$0xff]
    %v3273 = vld [vmem:[#allocation11 + $0x128] sm:$0xff]
    %v3274 = vld [vmem:[#allocation11 + $0x130] sm:$0xff]
    %v3275 = vld [vmem:[#allocation11 + $0x138] sm:$0xff]
    %v3276 = vld [vmem:[#allocation11 + $0x140] sm:$0xff]
    %v3277 = vld [vmem:[#allocation11 + $0x148] sm:$0xff]
    %v3278 = vld [vmem:[#allocation11 + $0x150] sm:$0xff]
    %v3279 = vld [vmem:[#allocation11 + $0x158] sm:$0xff]
    %v3280 = vld [vmem:[#allocation11 + $0x160] sm:$0xff]
    %v3281 = vld [vmem:[#allocation11 + $0x168] sm:$0xff]
    %v3282 = vld [vmem:[#allocation11 + $0x170] sm:$0xff]
    %v3283 = vld [vmem:[#allocation11 + $0x178] sm:$0xff]
    %v3284 = vld [vmem:[#allocation11 + $0x180] sm:$0xff]
    %v3285 = vld [vmem:[#allocation11 + $0x188] sm:$0xff]
    %v3286 = vld [vmem:[#allocation11 + $0x190] sm:$0xff]
    %v3287 = vld [vmem:[#allocation11 + $0x198] sm:$0xff]
    %v3288 = vld [vmem:[#allocation11 + $0x1a0] sm:$0xff]
    %v3289 = vld [vmem:[#allocation11 + $0x1a8] sm:$0xff]
    %v3290 = vld [vmem:[#allocation11 + $0x1b0] sm:$0xff]
    %v3291 = vld [vmem:[#allocation11 + $0x1b8] sm:$0xff]
    %v3292 = vld [vmem:[#allocation11 + $0x1c0] sm:$0xff]
    %v3293 = vld [vmem:[#allocation11 + $0x1c8] sm:$0xff]
    %v3294 = vld [vmem:[#allocation11 + $0x1d0] sm:$0xff]
    %v3295 = vld [vmem:[#allocation11 + $0x1d8] sm:$0xff]
    %v3296 = vld [vmem:[#allocation11 + $0x1e0] sm:$0xff]
    %v3297 = vld [vmem:[#allocation11 + $0x1e8] sm:$0xff]
    %v3298 = vld [vmem:[#allocation11 + $0x1f0] sm:$0xff]
    %v3299 = vld [vmem:[#allocation11 + $0x1f8] sm:$0xff]
    %v3300 = vld [vmem:[#allocation11 + $0x200] sm:$0xff]
    %v3301 = vld [vmem:[#allocation11 + $0x208] sm:$0xff]
    %v3302 = vld [vmem:[#allocation11 + $0x210] sm:$0xff]
    %v3303 = vld [vmem:[#allocation11 + $0x218] sm:$0xff]
    %v3304 = vld [vmem:[#allocation11 + $0x220] sm:$0xff]
    %v3305 = vld [vmem:[#allocation11 + $0x228] sm:$0xff]
    %v3306 = vld [vmem:[#allocation11 + $0x230] sm:$0xff]
    %v3307 = vld [vmem:[#allocation11 + $0x238] sm:$0xff]
    %v3308 = vld [vmem:[#allocation11 + $0x240] sm:$0xff]
    %v3309 = vld [vmem:[#allocation11 + $0x248] sm:$0xff]
    %v3310 = vld [vmem:[#allocation11 + $0x250] sm:$0xff]
    %v3311 = vld [vmem:[#allocation11 + $0x258] sm:$0xff]
    %v3312 = vld [vmem:[#allocation11 + $0x260] sm:$0xff]
    %v3313 = vld [vmem:[#allocation11 + $0x268] sm:$0xff]
    %v3314 = vld [vmem:[#allocation11 + $0x270] sm:$0xff]
    %v3315 = vld [vmem:[#allocation11 + $0x278] sm:$0xff]
    %v3316 = vld [vmem:[#allocation11 + $0x280] sm:$0xff]
    %v3317 = vld [vmem:[#allocation11 + $0x288] sm:$0xff]
    %v3318 = vld [vmem:[#allocation11 + $0x290] sm:$0xff]
    %v3319 = vld [vmem:[#allocation11 + $0x298] sm:$0xff]
    %v3320 = vld [vmem:[#allocation11 + $0x2a0] sm:$0xff]
    %v3321 = vld [vmem:[#allocation11 + $0x2a8] sm:$0xff]
    %v3322 = vld [vmem:[#allocation11 + $0x2b0] sm:$0xff]
    %v3323 = vld [vmem:[#allocation11 + $0x2b8] sm:$0xff]
    %v3324 = vld [vmem:[#allocation11 + $0x2c0] sm:$0xff]
    %v3325 = vld [vmem:[#allocation11 + $0x2c8] sm:$0xff]
    %v3326 = vld [vmem:[#allocation11 + $0x2d0] sm:$0xff]
    %v3327 = vld [vmem:[#allocation11 + $0x2d8] sm:$0xff]
    %v3328 = vld [vmem:[#allocation11 + $0x2e0] sm:$0xff]
    %v3329 = vld [vmem:[#allocation11 + $0x2e8] sm:$0xff]
    %v3330 = vld [vmem:[#allocation11 + $0x2f0] sm:$0xff]
    %v3331 = vld [vmem:[#allocation11 + $0x2f8] sm:$0xff]
    %v3332 = vld [vmem:[#allocation11 + $0x300] sm:$0xff]
    %v3333 = vld [vmem:[#allocation11 + $0x308] sm:$0xff]
    %v3334 = vld [vmem:[#allocation11 + $0x310] sm:$0xff]
    %v3335 = vld [vmem:[#allocation11 + $0x318] sm:$0xff]
    %v3336 = vld [vmem:[#allocation11 + $0x320] sm:$0xff]
    %v3337 = vld [vmem:[#allocation11 + $0x328] sm:$0xff]
    %v3338 = vld [vmem:[#allocation11 + $0x330] sm:$0xff]
    %v3339 = vld [vmem:[#allocation11 + $0x338] sm:$0xff]
    %v3340 = vld [vmem:[#allocation11 + $0x340] sm:$0xff]
    %v3341 = vld [vmem:[#allocation11 + $0x348] sm:$0xff]
    %v3342 = vld [vmem:[#allocation11 + $0x350] sm:$0xff]
    %v3343 = vld [vmem:[#allocation11 + $0x358] sm:$0xff]
    %v3344 = vld [vmem:[#allocation11 + $0x360] sm:$0xff]
    %v3345 = vld [vmem:[#allocation11 + $0x368] sm:$0xff]
    %v3346 = vld [vmem:[#allocation11 + $0x370] sm:$0xff]
    %v3347 = vld [vmem:[#allocation11 + $0x378] sm:$0xff]
    %v3348 = vld [vmem:[#allocation11 + $0x380] sm:$0xff]
    %v3349 = vld [vmem:[#allocation11 + $0x388] sm:$0xff]
    %v3350 = vld [vmem:[#allocation11 + $0x390] sm:$0xff]
    %v3351 = vld [vmem:[#allocation11 + $0x398] sm:$0xff]
    %v3352 = vld [vmem:[#allocation11 + $0x3a0] sm:$0xff]
    %v3353 = vld [vmem:[#allocation11 + $0x3a8] sm:$0xff]
    %v3354 = vld [vmem:[#allocation11 + $0x3b0] sm:$0xff]
    %v3355 = vld [vmem:[#allocation11 + $0x3b8] sm:$0xff]
    %v3356 = vld [vmem:[#allocation11 + $0x3c0] sm:$0xff]
    %v3357 = vld [vmem:[#allocation11 + $0x3c8] sm:$0xff]
    %v3358 = vld [vmem:[#allocation11 + $0x3d0] sm:$0xff]
    %v3359 = vld [vmem:[#allocation11 + $0x3d8] sm:$0xff]
    %v3360 = vld [vmem:[#allocation11 + $0x3e0] sm:$0xff]
    %v3361 = vld [vmem:[#allocation11 + $0x3e8] sm:$0xff]
    %v3362 = vld [vmem:[#allocation11 + $0x3f0] sm:$0xff]
    %v3363 = vld [vmem:[#allocation11 + $0x3f8] sm:$0xff]
    %v3364 = vld [vmem:[#allocation11 + $0x400] sm:$0xff]
    %v3365 = vld [vmem:[#allocation11 + $0x408] sm:$0xff]
    %v3366 = vld [vmem:[#allocation11 + $0x410] sm:$0xff]
    %v3367 = vld [vmem:[#allocation11 + $0x418] sm:$0xff]
    %v3368 = vld [vmem:[#allocation11 + $0x420] sm:$0xff]
    %v3369 = vld [vmem:[#allocation11 + $0x428] sm:$0xff]
    %v3370 = vld [vmem:[#allocation11 + $0x430] sm:$0xff]
    %v3371 = vld [vmem:[#allocation11 + $0x438] sm:$0xff]
    %v3372 = vld [vmem:[#allocation11 + $0x440] sm:$0xff]
    %v3373 = vld [vmem:[#allocation11 + $0x448] sm:$0xff]
    %v3374 = vld [vmem:[#allocation11 + $0x450] sm:$0xff]
    %v3375 = vld [vmem:[#allocation11 + $0x458] sm:$0xff]
    %v3376 = vld [vmem:[#allocation11 + $0x460] sm:$0xff]
    %v3377 = vld [vmem:[#allocation11 + $0x468] sm:$0xff]
    %v3378 = vld [vmem:[#allocation11 + $0x470] sm:$0xff]
    %v3379 = vld [vmem:[#allocation11 + $0x478] sm:$0xff]
    %v3380 = vld [vmem:[#allocation11 + $0x480] sm:$0xff]
    %v3381 = vld [vmem:[#allocation11 + $0x488] sm:$0xff]
    %v3382 = vld [vmem:[#allocation11 + $0x490] sm:$0xff]
    %v3383 = vld [vmem:[#allocation11 + $0x498] sm:$0xff]
    %v3384 = vld [vmem:[#allocation11 + $0x4a0] sm:$0xff]
    %v3385 = vld [vmem:[#allocation11 + $0x4a8] sm:$0xff]
    %v3386 = vld [vmem:[#allocation11 + $0x4b0] sm:$0xff]
    %v3387 = vld [vmem:[#allocation11 + $0x4b8] sm:$0xff]
    %v3388 = vld [vmem:[#allocation11 + $0x4c0] sm:$0xff]
    %v3389 = vld [vmem:[#allocation11 + $0x4c8] sm:$0xff]
    %v3390 = vld [vmem:[#allocation11 + $0x4d0] sm:$0xff]
    %v3391 = vld [vmem:[#allocation11 + $0x4d8] sm:$0xff]
    %v3392 = vld [vmem:[#allocation11 + $0x4e0] sm:$0xff]
    %v3393 = vld [vmem:[#allocation11 + $0x4e8] sm:$0xff]
    %v3394 = vld [vmem:[#allocation11 + $0x4f0] sm:$0xff]
    %v3395 = vld [vmem:[#allocation11 + $0x4f8] sm:$0xff]
    %v3396 = vld [vmem:[#allocation11 + $0x500] sm:$0xff]
    %v3397 = vld [vmem:[#allocation11 + $0x508] sm:$0xff]
    %v3398 = vld [vmem:[#allocation11 + $0x510] sm:$0xff]
    %v3399 = vld [vmem:[#allocation11 + $0x518] sm:$0xff]
    %v3400 = vld [vmem:[#allocation11 + $0x520] sm:$0xff]
    %v3401 = vld [vmem:[#allocation11 + $0x528] sm:$0xff]
    %v3402 = vld [vmem:[#allocation11 + $0x530] sm:$0xff]
    %v3403 = vld [vmem:[#allocation11 + $0x538] sm:$0xff]
    %v3404 = vld [vmem:[#allocation11 + $0x540] sm:$0xff]
    %v3405 = vld [vmem:[#allocation11 + $0x548] sm:$0xff]
    %v3406 = vld [vmem:[#allocation11 + $0x550] sm:$0xff]
    %v3407 = vld [vmem:[#allocation11 + $0x558] sm:$0xff]
    %v3408 = vld [vmem:[#allocation11 + $0x560] sm:$0xff]
    %v3409 = vld [vmem:[#allocation11 + $0x568] sm:$0xff]
    %v3410 = vld [vmem:[#allocation11 + $0x570] sm:$0xff]
    %v3411 = vld [vmem:[#allocation11 + $0x578] sm:$0xff]
    %v3412 = vld [vmem:[#allocation11 + $0x580] sm:$0xff]
    %v3413 = vld [vmem:[#allocation11 + $0x588] sm:$0xff]
    %v3414 = vld [vmem:[#allocation11 + $0x590] sm:$0xff]
    %v3415 = vld [vmem:[#allocation11 + $0x598] sm:$0xff]
    %v3416 = vld [vmem:[#allocation11 + $0x5a0] sm:$0xff]
    %v3417 = vld [vmem:[#allocation11 + $0x5a8] sm:$0xff]
    %v3418 = vld [vmem:[#allocation11 + $0x5b0] sm:$0xff]
    %v3419 = vld [vmem:[#allocation11 + $0x5b8] sm:$0xff]
    %v3420 = vld [vmem:[#allocation11 + $0x5c0] sm:$0xff]
    %v3421 = vld [vmem:[#allocation11 + $0x5c8] sm:$0xff]
    %v3422 = vld [vmem:[#allocation11 + $0x5d0] sm:$0xff]
    %v3423 = vld [vmem:[#allocation11 + $0x5d8] sm:$0xff]
    %v3424 = vld [vmem:[#allocation11 + $0x5e0] sm:$0xff]
    %v3425 = vld [vmem:[#allocation11 + $0x5e8] sm:$0xff]
    %v3426 = vld [vmem:[#allocation11 + $0x5f0] sm:$0xff]
    %v3427 = vld [vmem:[#allocation11 + $0x5f8] sm:$0xff]
    %v3428 = vld [vmem:[#allocation11 + $0x600] sm:$0xff]
    %v3429 = vld [vmem:[#allocation11 + $0x608] sm:$0xff]
    %v3430 = vld [vmem:[#allocation11 + $0x610] sm:$0xff]
    %v3431 = vld [vmem:[#allocation11 + $0x618] sm:$0xff]
    %v3432 = vld [vmem:[#allocation11 + $0x620] sm:$0xff]
    %v3433 = vld [vmem:[#allocation11 + $0x628] sm:$0xff]
    %v3434 = vld [vmem:[#allocation11 + $0x630] sm:$0xff]
    %v3435 = vld [vmem:[#allocation11 + $0x638] sm:$0xff]
    %v3436 = vld [vmem:[#allocation11 + $0x640] sm:$0xff]
    %v3437 = vld [vmem:[#allocation11 + $0x648] sm:$0xff]
    %v3438 = vld [vmem:[#allocation11 + $0x650] sm:$0xff]
    %v3439 = vld [vmem:[#allocation11 + $0x658] sm:$0xff]
    %v3440 = vld [vmem:[#allocation11 + $0x660] sm:$0xff]
    %v3441 = vld [vmem:[#allocation11 + $0x668] sm:$0xff]
    %v3442 = vld [vmem:[#allocation11 + $0x670] sm:$0xff]
    %v3443 = vld [vmem:[#allocation11 + $0x678] sm:$0xff]
    %v3444 = vld [vmem:[#allocation11 + $0x680] sm:$0xff]
    %v3445 = vld [vmem:[#allocation11 + $0x688] sm:$0xff]
    %v3446 = vld [vmem:[#allocation11 + $0x690] sm:$0xff]
    %v3447 = vld [vmem:[#allocation11 + $0x698] sm:$0xff]
    %v3448 = vld [vmem:[#allocation11 + $0x6a0] sm:$0xff]
    %v3449 = vld [vmem:[#allocation11 + $0x6a8] sm:$0xff]
    %v3450 = vld [vmem:[#allocation11 + $0x6b0] sm:$0xff]
    %v3451 = vld [vmem:[#allocation11 + $0x6b8] sm:$0xff]
    %v3452 = vld [vmem:[#allocation11 + $0x6c0] sm:$0xff]
    %v3453 = vld [vmem:[#allocation11 + $0x6c8] sm:$0xff]
    %v3454 = vld [vmem:[#allocation11 + $0x6d0] sm:$0xff]
    %v3455 = vld [vmem:[#allocation11 + $0x6d8] sm:$0xff]
    %v3456 = vld [vmem:[#allocation11 + $0x6e0] sm:$0xff]
    %v3457 = vld [vmem:[#allocation11 + $0x6e8] sm:$0xff]
    %v3458 = vld [vmem:[#allocation11 + $0x6f0] sm:$0xff]
    %v3459 = vld [vmem:[#allocation11 + $0x6f8] sm:$0xff]
    %v3460 = vld [vmem:[#allocation11 + $0x700] sm:$0xff]
    %v3461 = vld [vmem:[#allocation11 + $0x708] sm:$0xff]
    %v3462 = vld [vmem:[#allocation11 + $0x710] sm:$0xff]
    %v3463 = vld [vmem:[#allocation11 + $0x718] sm:$0xff]
    %v3464 = vld [vmem:[#allocation11 + $0x720] sm:$0xff]
    %v3465 = vld [vmem:[#allocation11 + $0x728] sm:$0xff]
    %v3466 = vld [vmem:[#allocation11 + $0x730] sm:$0xff]
    %v3467 = vld [vmem:[#allocation11 + $0x738] sm:$0xff]
    %v3468 = vld [vmem:[#allocation11 + $0x740] sm:$0xff]
    %v3469 = vld [vmem:[#allocation11 + $0x748] sm:$0xff]
    %v3470 = vld [vmem:[#allocation11 + $0x750] sm:$0xff]
    %v3471 = vld [vmem:[#allocation11 + $0x758] sm:$0xff]
    %v3472 = vld [vmem:[#allocation11 + $0x760] sm:$0xff]
    %v3473 = vld [vmem:[#allocation11 + $0x768] sm:$0xff]
    %v3474 = vld [vmem:[#allocation11 + $0x770] sm:$0xff]
    %v3475 = vld [vmem:[#allocation11 + $0x778] sm:$0xff]
    %v3476 = vld [vmem:[#allocation11 + $0x780] sm:$0xff]
    %v3477 = vld [vmem:[#allocation11 + $0x788] sm:$0xff]
    %v3478 = vld [vmem:[#allocation11 + $0x790] sm:$0xff]
    %v3479 = vld [vmem:[#allocation11 + $0x798] sm:$0xff]
    %v3480 = vld [vmem:[#allocation11 + $0x7a0] sm:$0xff]
    %v3481 = vld [vmem:[#allocation11 + $0x7a8] sm:$0xff]
    %v3482 = vld [vmem:[#allocation11 + $0x7b0] sm:$0xff]
    %v3483 = vld [vmem:[#allocation11 + $0x7b8] sm:$0xff]
    %v3484 = vld [vmem:[#allocation11 + $0x7c0] sm:$0xff]
    %v3485 = vld [vmem:[#allocation11 + $0x7c8] sm:$0xff]
    %v3486 = vld [vmem:[#allocation11 + $0x7d0] sm:$0xff]
    %v3487 = vld [vmem:[#allocation11 + $0x7d8] sm:$0xff]
    %v3488 = vld [vmem:[#allocation11 + $0x7e0] sm:$0xff]
    %v3489 = vld [vmem:[#allocation11 + $0x7e8] sm:$0xff]
    %v3490 = vld [vmem:[#allocation11 + $0x7f0] sm:$0xff]
    %v3491 = vld [vmem:[#allocation11 + $0x7f8] sm:$0xff]
    %v3492 = vld [vmem:[#allocation11 + $0x800] sm:$0xff]
    %v3493 = vld [vmem:[#allocation11 + $0x808] sm:$0xff]
    %v3494 = vld [vmem:[#allocation11 + $0x810] sm:$0xff]
    %v3495 = vld [vmem:[#allocation11 + $0x818] sm:$0xff]
    %v3496 = vld [vmem:[#allocation11 + $0x820] sm:$0xff]
    %v3497 = vld [vmem:[#allocation11 + $0x828] sm:$0xff]
    %v3498 = vld [vmem:[#allocation11 + $0x830] sm:$0xff]
    %v3499 = vld [vmem:[#allocation11 + $0x838] sm:$0xff]
    %v3500 = vld [vmem:[#allocation11 + $0x840] sm:$0xff]
    %v3501 = vld [vmem:[#allocation11 + $0x848] sm:$0xff]
    %v3502 = vld [vmem:[#allocation11 + $0x850] sm:$0xff]
    %v3503 = vld [vmem:[#allocation11 + $0x858] sm:$0xff]
    %v3504 = vld [vmem:[#allocation11 + $0x860] sm:$0xff]
    %v3505 = vld [vmem:[#allocation11 + $0x868] sm:$0xff]
    %v3506 = vld [vmem:[#allocation11 + $0x870] sm:$0xff]
    %v3507 = vld [vmem:[#allocation11 + $0x878] sm:$0xff]
    %v3508 = vld [vmem:[#allocation11 + $0x880] sm:$0xff]
    %v3509 = vld [vmem:[#allocation11 + $0x888] sm:$0xff]
    %v3510 = vld [vmem:[#allocation11 + $0x890] sm:$0xff]
    %v3511 = vld [vmem:[#allocation11 + $0x898] sm:$0xff]
    %v3512 = vld [vmem:[#allocation11 + $0x8a0] sm:$0xff]
    %v3513 = vld [vmem:[#allocation11 + $0x8a8] sm:$0xff]
    %v3514 = vld [vmem:[#allocation11 + $0x8b0] sm:$0xff]
    %v3515 = vld [vmem:[#allocation11 + $0x8b8] sm:$0xff]
    %v3516 = vld [vmem:[#allocation11 + $0x8c0] sm:$0xff]
    %v3517 = vld [vmem:[#allocation11 + $0x8c8] sm:$0xff]
    %v3518 = vld [vmem:[#allocation11 + $0x8d0] sm:$0xff]
    %v3519 = vld [vmem:[#allocation11 + $0x8d8] sm:$0xff]
    %v3520 = vld [vmem:[#allocation11 + $0x8e0] sm:$0xff]
    %v3521 = vld [vmem:[#allocation11 + $0x8e8] sm:$0xff]
    %v3522 = vld [vmem:[#allocation11 + $0x8f0] sm:$0xff]
    %v3523 = vld [vmem:[#allocation11 + $0x8f8] sm:$0xff]
    %v3524 = vld [vmem:[#allocation11 + $0x900] sm:$0xff]
    %v3525 = vld [vmem:[#allocation11 + $0x908] sm:$0xff]
    %v3526 = vld [vmem:[#allocation11 + $0x910] sm:$0xff]
    %v3527 = vld [vmem:[#allocation11 + $0x918] sm:$0xff]
    %v3528 = vld [vmem:[#allocation11 + $0x920] sm:$0xff]
    %v3529 = vld [vmem:[#allocation11 + $0x928] sm:$0xff]
    %v3530 = vld [vmem:[#allocation11 + $0x930] sm:$0xff]
    %v3531 = vld [vmem:[#allocation11 + $0x938] sm:$0xff]
    %v3532 = vld [vmem:[#allocation11 + $0x940] sm:$0xff]
    %v3533 = vld [vmem:[#allocation11 + $0x948] sm:$0xff]
    %v3534 = vld [vmem:[#allocation11 + $0x950] sm:$0xff]
    %v3535 = vld [vmem:[#allocation11 + $0x958] sm:$0xff]
    %v3536 = vld [vmem:[#allocation11 + $0x960] sm:$0xff]
    %v3537 = vld [vmem:[#allocation11 + $0x968] sm:$0xff]
    %v3538 = vld [vmem:[#allocation11 + $0x970] sm:$0xff]
    %v3539 = vld [vmem:[#allocation11 + $0x978] sm:$0xff]
    %v3540 = vld [vmem:[#allocation11 + $0x980] sm:$0xff]
    %v3541 = vld [vmem:[#allocation11 + $0x988] sm:$0xff]
    %v3542 = vld [vmem:[#allocation11 + $0x990] sm:$0xff]
    %v3543 = vld [vmem:[#allocation11 + $0x998] sm:$0xff]
    %v3544 = vld [vmem:[#allocation11 + $0x9a0] sm:$0xff]
    %v3545 = vld [vmem:[#allocation11 + $0x9a8] sm:$0xff]
    %v3546 = vld [vmem:[#allocation11 + $0x9b0] sm:$0xff]
    %v3547 = vld [vmem:[#allocation11 + $0x9b8] sm:$0xff]
    %v3548 = vld [vmem:[#allocation11 + $0x9c0] sm:$0xff]
    %v3549 = vld [vmem:[#allocation11 + $0x9c8] sm:$0xff]
    %v3550 = vld [vmem:[#allocation11 + $0x9d0] sm:$0xff]
    %v3551 = vld [vmem:[#allocation11 + $0x9d8] sm:$0xff]
    %v3552 = vld [vmem:[#allocation11 + $0x9e0] sm:$0xff]
    %v3553 = vld [vmem:[#allocation11 + $0x9e8] sm:$0xff]
    %v3554 = vld [vmem:[#allocation11 + $0x9f0] sm:$0xff]
    %v3555 = vld [vmem:[#allocation11 + $0x9f8] sm:$0xff]
    %v3556 = vld [vmem:[#allocation11 + $0xa00] sm:$0xff]
    %v3557 = vld [vmem:[#allocation11 + $0xa08] sm:$0xff]
    %v3558 = vld [vmem:[#allocation11 + $0xa10] sm:$0xff]
    %v3559 = vld [vmem:[#allocation11 + $0xa18] sm:$0xff]
    %v3560 = vld [vmem:[#allocation11 + $0xa20] sm:$0xff]
    %v3561 = vld [vmem:[#allocation11 + $0xa28] sm:$0xff]
    %v3562 = vld [vmem:[#allocation11 + $0xa30] sm:$0xff]
    %v3563 = vld [vmem:[#allocation11 + $0xa38] sm:$0xff]
    %v3564 = vld [vmem:[#allocation11 + $0xa40] sm:$0xff]
    %v3565 = vld [vmem:[#allocation11 + $0xa48] sm:$0xff]
    %v3566 = vld [vmem:[#allocation11 + $0xa50] sm:$0xff]
    %v3567 = vld [vmem:[#allocation11 + $0xa58] sm:$0xff]
    %v3568 = vld [vmem:[#allocation11 + $0xa60] sm:$0xff]
    %v3569 = vld [vmem:[#allocation11 + $0xa68] sm:$0xff]
    %v3570 = vld [vmem:[#allocation11 + $0xa70] sm:$0xff]
    %v3571 = vld [vmem:[#allocation11 + $0xa78] sm:$0xff]
    %v3572 = vld [vmem:[#allocation11 + $0xa80] sm:$0xff]
    %v3573 = vld [vmem:[#allocation11 + $0xa88] sm:$0xff]
    %v3574 = vld [vmem:[#allocation11 + $0xa90] sm:$0xff]
    %v3575 = vld [vmem:[#allocation11 + $0xa98] sm:$0xff]
    %v3576 = vld [vmem:[#allocation11 + $0xaa0] sm:$0xff]
    %v3577 = vld [vmem:[#allocation11 + $0xaa8] sm:$0xff]
    %v3578 = vld [vmem:[#allocation11 + $0xab0] sm:$0xff]
    %v3579 = vld [vmem:[#allocation11 + $0xab8] sm:$0xff]
    %v3580 = vld [vmem:[#allocation11 + $0xac0] sm:$0xff]
    %v3581 = vld [vmem:[#allocation11 + $0xac8] sm:$0xff]
    %v3582 = vld [vmem:[#allocation11 + $0xad0] sm:$0xff]
    %v3583 = vld [vmem:[#allocation11 + $0xad8] sm:$0xff]
    %v3584 = vld [vmem:[#allocation11 + $0xae0] sm:$0xff]
    %v3585 = vld [vmem:[#allocation11 + $0xae8] sm:$0xff]
    %v3586 = vld [vmem:[#allocation11 + $0xaf0] sm:$0xff]
    %v3587 = vld [vmem:[#allocation11 + $0xaf8] sm:$0xff]
    %v3588 = vld [vmem:[#allocation11 + $0xb00] sm:$0xff]
    %v3589 = vld [vmem:[#allocation11 + $0xb08] sm:$0xff]
    %v3590 = vld [vmem:[#allocation11 + $0xb10] sm:$0xff]
    %v3591 = vld [vmem:[#allocation11 + $0xb18] sm:$0xff]
    %v3592 = vld [vmem:[#allocation11 + $0xb20] sm:$0xff]
    %v3593 = vld [vmem:[#allocation11 + $0xb28] sm:$0xff]
    %v3594 = vld [vmem:[#allocation11 + $0xb30] sm:$0xff]
    %v3595 = vld [vmem:[#allocation11 + $0xb38] sm:$0xff]
    %v3596 = vld [vmem:[#allocation11 + $0xb40] sm:$0xff]
    %v3597 = vld [vmem:[#allocation11 + $0xb48] sm:$0xff]
    %v3598 = vld [vmem:[#allocation11 + $0xb50] sm:$0xff]
    %v3599 = vld [vmem:[#allocation11 + $0xb58] sm:$0xff]
    %v3600 = vld [vmem:[#allocation11 + $0xb60] sm:$0xff]
    %v3601 = vld [vmem:[#allocation11 + $0xb68] sm:$0xff]
    %v3602 = vld [vmem:[#allocation11 + $0xb70] sm:$0xff]
    %v3603 = vld [vmem:[#allocation11 + $0xb78] sm:$0xff]
    %v3604 = vld [vmem:[#allocation11 + $0xb80] sm:$0xff]
    %v3605 = vld [vmem:[#allocation11 + $0xb88] sm:$0xff]
    %v3606 = vld [vmem:[#allocation11 + $0xb90] sm:$0xff]
    %v3607 = vld [vmem:[#allocation11 + $0xb98] sm:$0xff]
    %v3608 = vld [vmem:[#allocation11 + $0xba0] sm:$0xff]
    %v3609 = vld [vmem:[#allocation11 + $0xba8] sm:$0xff]
    %v3610 = vld [vmem:[#allocation11 + $0xbb0] sm:$0xff]
    %v3611 = vld [vmem:[#allocation11 + $0xbb8] sm:$0xff]
    %v3612 = vld [vmem:[#allocation11 + $0xbc0] sm:$0xff]
    %v3613 = vld [vmem:[#allocation11 + $0xbc8] sm:$0xff]
    %v3614 = vld [vmem:[#allocation11 + $0xbd0] sm:$0xff]
    %v3615 = vld [vmem:[#allocation11 + $0xbd8] sm:$0xff]
    %v3616 = vld [vmem:[#allocation11 + $0xbe0] sm:$0xff]
    %v3617 = vld [vmem:[#allocation11 + $0xbe8] sm:$0xff]
    %v3618 = vld [vmem:[#allocation11 + $0xbf0] sm:$0xff]
    %v3619 = vld [vmem:[#allocation11 + $0xbf8] sm:$0xff]
    %v3620 = vld [vmem:[#allocation11 + $0xc00] sm:$0xff]
    %v3621 = vld [vmem:[#allocation11 + $0xc08] sm:$0xff]
    %v3622 = vld [vmem:[#allocation11 + $0xc10] sm:$0xff]
    %v3623 = vld [vmem:[#allocation11 + $0xc18] sm:$0xff]
    %v3624 = vld [vmem:[#allocation11 + $0xc20] sm:$0xff]
    %v3625 = vld [vmem:[#allocation11 + $0xc28] sm:$0xff]
    %v3626 = vld [vmem:[#allocation11 + $0xc30] sm:$0xff]
    %v3627 = vld [vmem:[#allocation11 + $0xc38] sm:$0xff]
    %v3628 = vld [vmem:[#allocation11 + $0xc40] sm:$0xff]
    %v3629 = vld [vmem:[#allocation11 + $0xc48] sm:$0xff]
    %v3630 = vld [vmem:[#allocation11 + $0xc50] sm:$0xff]
    %v3631 = vld [vmem:[#allocation11 + $0xc58] sm:$0xff]
    %v3632 = vld [vmem:[#allocation11 + $0xc60] sm:$0xff]
    %v3633 = vld [vmem:[#allocation11 + $0xc68] sm:$0xff]
    %v3634 = vld [vmem:[#allocation11 + $0xc70] sm:$0xff]
    %v3635 = vld [vmem:[#allocation11 + $0xc78] sm:$0xff]
    %v3636 = vld [vmem:[#allocation11 + $0xc80] sm:$0xff]
    %v3637 = vld [vmem:[#allocation11 + $0xc88] sm:$0xff]
    %v3638 = vld [vmem:[#allocation11 + $0xc90] sm:$0xff]
    %v3639 = vld [vmem:[#allocation11 + $0xc98] sm:$0xff]
    %v3640 = vld [vmem:[#allocation11 + $0xca0] sm:$0xff]
    %v3641 = vld [vmem:[#allocation11 + $0xca8] sm:$0xff]
    %v3642 = vld [vmem:[#allocation11 + $0xcb0] sm:$0xff]
    %v3643 = vld [vmem:[#allocation11 + $0xcb8] sm:$0xff]
    %v3644 = vld [vmem:[#allocation11 + $0xcc0] sm:$0xff]
    %v3645 = vld [vmem:[#allocation11 + $0xcc8] sm:$0xff]
    %v3646 = vld [vmem:[#allocation11 + $0xcd0] sm:$0xff]
    %v3647 = vld [vmem:[#allocation11 + $0xcd8] sm:$0xff]
    %v3648 = vld [vmem:[#allocation11 + $0xce0] sm:$0xff]
    %v3649 = vld [vmem:[#allocation11 + $0xce8] sm:$0xff]
    %v3650 = vld [vmem:[#allocation11 + $0xcf0] sm:$0xff]
    %v3651 = vld [vmem:[#allocation11 + $0xcf8] sm:$0xff]
    %v3652 = vld [vmem:[#allocation11 + $0xd00] sm:$0xff]
    %v3653 = vld [vmem:[#allocation11 + $0xd08] sm:$0xff]
    %v3654 = vld [vmem:[#allocation11 + $0xd10] sm:$0xff]
    %v3655 = vld [vmem:[#allocation11 + $0xd18] sm:$0xff]
    %v3656 = vld [vmem:[#allocation11 + $0xd20] sm:$0xff]
    %v3657 = vld [vmem:[#allocation11 + $0xd28] sm:$0xff]
    %v3658 = vld [vmem:[#allocation11 + $0xd30] sm:$0xff]
    %v3659 = vld [vmem:[#allocation11 + $0xd38] sm:$0xff]
    %v3660 = vld [vmem:[#allocation11 + $0xd40] sm:$0xff]
    %v3661 = vld [vmem:[#allocation11 + $0xd48] sm:$0xff]
    %v3662 = vld [vmem:[#allocation11 + $0xd50] sm:$0xff]
    %v3663 = vld [vmem:[#allocation11 + $0xd58] sm:$0xff]
    %v3664 = vld [vmem:[#allocation11 + $0xd60] sm:$0xff]
    %v3665 = vld [vmem:[#allocation11 + $0xd68] sm:$0xff]
    %v3666 = vld [vmem:[#allocation11 + $0xd70] sm:$0xff]
    %v3667 = vld [vmem:[#allocation11 + $0xd78] sm:$0xff]
    %v3668 = vld [vmem:[#allocation11 + $0xd80] sm:$0xff]
    %v3669 = vld [vmem:[#allocation11 + $0xd88] sm:$0xff]
    %v3670 = vld [vmem:[#allocation11 + $0xd90] sm:$0xff]
    %v3671 = vld [vmem:[#allocation11 + $0xd98] sm:$0xff]
    %v3672 = vld [vmem:[#allocation11 + $0xda0] sm:$0xff]
    %v3673 = vld [vmem:[#allocation11 + $0xda8] sm:$0xff]
    %v3674 = vld [vmem:[#allocation11 + $0xdb0] sm:$0xff]
    %v3675 = vld [vmem:[#allocation11 + $0xdb8] sm:$0xff]
    %v3676 = vld [vmem:[#allocation11 + $0xdc0] sm:$0xff]
    %v3677 = vld [vmem:[#allocation11 + $0xdc8] sm:$0xff]
    %v3678 = vld [vmem:[#allocation11 + $0xdd0] sm:$0xff]
    %v3679 = vld [vmem:[#allocation11 + $0xdd8] sm:$0xff]
    %v3680 = vld [vmem:[#allocation11 + $0xde0] sm:$0xff]
    %v3681 = vld [vmem:[#allocation11 + $0xde8] sm:$0xff]
    %v3682 = vld [vmem:[#allocation11 + $0xdf0] sm:$0xff]
    %v3683 = vld [vmem:[#allocation11 + $0xdf8] sm:$0xff]
    %v3684 = vld [vmem:[#allocation11 + $0xe00] sm:$0xff]
    %v3685 = vld [vmem:[#allocation11 + $0xe08] sm:$0xff]
    %v3686 = vld [vmem:[#allocation11 + $0xe10] sm:$0xff]
    %v3687 = vld [vmem:[#allocation11 + $0xe18] sm:$0xff]
    %v3688 = vld [vmem:[#allocation11 + $0xe20] sm:$0xff]
    %v3689 = vld [vmem:[#allocation11 + $0xe28] sm:$0xff]
    %v3690 = vld [vmem:[#allocation11 + $0xe30] sm:$0xff]
    %v3691 = vld [vmem:[#allocation11 + $0xe38] sm:$0xff]
    %v3692 = vld [vmem:[#allocation11 + $0xe40] sm:$0xff]
    %v3693 = vld [vmem:[#allocation11 + $0xe48] sm:$0xff]
    %v3694 = vld [vmem:[#allocation11 + $0xe50] sm:$0xff]
    %v3695 = vld [vmem:[#allocation11 + $0xe58] sm:$0xff]
    %v3696 = vld [vmem:[#allocation11 + $0xe60] sm:$0xff]
    %v3697 = vld [vmem:[#allocation11 + $0xe68] sm:$0xff]
    %v3698 = vld [vmem:[#allocation11 + $0xe70] sm:$0xff]
    %v3699 = vld [vmem:[#allocation11 + $0xe78] sm:$0xff]
    %v3700 = vld [vmem:[#allocation11 + $0xe80] sm:$0xff]
    %v3701 = vld [vmem:[#allocation11 + $0xe88] sm:$0xff]
    %v3702 = vld [vmem:[#allocation11 + $0xe90] sm:$0xff]
    %v3703 = vld [vmem:[#allocation11 + $0xe98] sm:$0xff]
    %v3704 = vld [vmem:[#allocation11 + $0xea0] sm:$0xff]
    %v3705 = vld [vmem:[#allocation11 + $0xea8] sm:$0xff]
    %v3706 = vld [vmem:[#allocation11 + $0xeb0] sm:$0xff]
    %v3707 = vld [vmem:[#allocation11 + $0xeb8] sm:$0xff]
    %v3708 = vld [vmem:[#allocation11 + $0xec0] sm:$0xff]
    %v3709 = vld [vmem:[#allocation11 + $0xec8] sm:$0xff]
    %v3710 = vld [vmem:[#allocation11 + $0xed0] sm:$0xff]
    %v3711 = vld [vmem:[#allocation11 + $0xed8] sm:$0xff]
    %v3712 = vld [vmem:[#allocation11 + $0xee0] sm:$0xff]
    %v3713 = vld [vmem:[#allocation11 + $0xee8] sm:$0xff]
    %v3714 = vld [vmem:[#allocation11 + $0xef0] sm:$0xff]
    %v3715 = vld [vmem:[#allocation11 + $0xef8] sm:$0xff]
    %v3716 = vld [vmem:[#allocation11 + $0xf00] sm:$0xff]
    %v3717 = vld [vmem:[#allocation11 + $0xf08] sm:$0xff]
    %v3718 = vld [vmem:[#allocation11 + $0xf10] sm:$0xff]
    %v3719 = vld [vmem:[#allocation11 + $0xf18] sm:$0xff]
    %v3720 = vld [vmem:[#allocation11 + $0xf20] sm:$0xff]
    %v3721 = vld [vmem:[#allocation11 + $0xf28] sm:$0xff]
    %v3722 = vld [vmem:[#allocation11 + $0xf30] sm:$0xff]
    %v3723 = vld [vmem:[#allocation11 + $0xf38] sm:$0xff]
    %v3724 = vld [vmem:[#allocation11 + $0xf40] sm:$0xff]
    %v3725 = vld [vmem:[#allocation11 + $0xf48] sm:$0xff]
    %v3726 = vld [vmem:[#allocation11 + $0xf50] sm:$0xff]
    %v3727 = vld [vmem:[#allocation11 + $0xf58] sm:$0xff]
    %v3728 = vld [vmem:[#allocation11 + $0xf60] sm:$0xff]
    %v3729 = vld [vmem:[#allocation11 + $0xf68] sm:$0xff]
    %v3730 = vld [vmem:[#allocation11 + $0xf70] sm:$0xff]
    %v3731 = vld [vmem:[#allocation11 + $0xf78] sm:$0xff]
    %v3732 = vld [vmem:[#allocation11 + $0xf80] sm:$0xff]
    %v3733 = vld [vmem:[#allocation11 + $0xf88] sm:$0xff]
    %v3734 = vld [vmem:[#allocation11 + $0xf90] sm:$0xff]
    %v3735 = vld [vmem:[#allocation11 + $0xf98] sm:$0xff]
    %v3736 = vld [vmem:[#allocation11 + $0xfa0] sm:$0xff]
    %v3737 = vld [vmem:[#allocation11 + $0xfa8] sm:$0xff]
    %v3738 = vld [vmem:[#allocation11 + $0xfb0] sm:$0xff]
    %v3739 = vld [vmem:[#allocation11 + $0xfb8] sm:$0xff]
    %v3740 = vld [vmem:[#allocation11 + $0xfc0] sm:$0xff]
    %v3741 = vld [vmem:[#allocation11 + $0xfc8] sm:$0xff]
    %v3742 = vld [vmem:[#allocation11 + $0xfd0] sm:$0xff]
    %v3743 = vld [vmem:[#allocation11 + $0xfd8] sm:$0xff]
    %v3744 = vld [vmem:[#allocation11 + $0xfe0] sm:$0xff]
    %v3745 = vld [vmem:[#allocation11 + $0xfe8] sm:$0xff]
    %v3746 = vld [vmem:[#allocation11 + $0xff0] sm:$0xff]
    %v3747 = vld [vmem:[#allocation11 + $0xff8] sm:$0xff]
    %v3748 = vld [vmem:[#allocation13 + $0x2b] sm:$0xff]
    %v3750 = vlaneseq
    %v3751 = vshrl.u32 %v3750, 7
    %v3752 = vsub.s32 0, %v3751
    %v3753 = vrot.slane %v3748, %v3752
    %v3754 = vlaneseq
    %v3755 = vshrl.u32 %v3754, 7
    %v3756 = vsub.s32 1, %v3755
    %v3757 = vrot.slane %v3748, %v3756
    %v3758 = vlaneseq
    %v3759 = vshrl.u32 %v3758, 7
    %v3760 = vsub.s32 2, %v3759
    %v3761 = vrot.slane %v3748, %v3760
    %v3762 = vlaneseq
    %v3763 = vshrl.u32 %v3762, 7
    %v3764 = vsub.s32 3, %v3763
    %v3765 = vrot.slane %v3748, %v3764
    %v3766 = vlaneseq
    %v3767 = vshrl.u32 %v3766, 7
    %v3768 = vsub.s32 4, %v3767
    %v3769 = vrot.slane %v3748, %v3768
    %v3770 = vlaneseq
    %v3771 = vshrl.u32 %v3770, 7
    %v3772 = vsub.s32 5, %v3771
    %v3773 = vrot.slane %v3748, %v3772
    %v3774 = vlaneseq
    %v3775 = vshrl.u32 %v3774, 7
    %v3776 = vsub.s32 6, %v3775
    %v3777 = vrot.slane %v3748, %v3776
    %v3778 = vlaneseq
    %v3779 = vshrl.u32 %v3778, 7
    %v3780 = vsub.s32 7, %v3779
    %v3781 = vrot.slane %v3748, %v3780
    %v4302 = vunpack.c.l.b16 %v3236
    %v4303 = vunpack.c.h.b16 %v3236
    %v4304 = vunpack.c.l.b16 %v3237
    %v4305 = vunpack.c.h.b16 %v3237
    %v4306 = vunpack.c.l.b16 %v3238
    %v4307 = vunpack.c.h.b16 %v3238
    %v4308 = vunpack.c.l.b16 %v3239
    %v4309 = vunpack.c.h.b16 %v3239
    %v4310 = vunpack.c.l.b16 %v3240
    %v4311 = vunpack.c.h.b16 %v3240
    %v4312 = vunpack.c.l.b16 %v3241
    %v4313 = vunpack.c.h.b16 %v3241
    %v4314 = vunpack.c.l.b16 %v3242
    %v4315 = vunpack.c.h.b16 %v3242
    %v4316 = vunpack.c.l.b16 %v3243
    %v4317 = vunpack.c.h.b16 %v3243
    %v4318 = vunpack.c.l.b16 %v3244
    %v4319 = vunpack.c.h.b16 %v3244
    %v4320 = vunpack.c.l.b16 %v3245
    %v4321 = vunpack.c.h.b16 %v3245
    %v4322 = vunpack.c.l.b16 %v3246
    %v4323 = vunpack.c.h.b16 %v3246
    %v4324 = vunpack.c.l.b16 %v3247
    %v4325 = vunpack.c.h.b16 %v3247
    %v4326 = vunpack.c.l.b16 %v3248
    %v4327 = vunpack.c.h.b16 %v3248
    %v4328 = vunpack.c.l.b16 %v3249
    %v4329 = vunpack.c.h.b16 %v3249
    %v4330 = vunpack.c.l.b16 %v3250
    %v4331 = vunpack.c.h.b16 %v3250
    %v4332 = vunpack.c.l.b16 %v3251
    %v4333 = vunpack.c.h.b16 %v3251
    %v4334 = vunpack.c.l.b16 %v3252
    %v4335 = vunpack.c.h.b16 %v3252
    %v4336 = vunpack.c.l.b16 %v3253
    %v4337 = vunpack.c.h.b16 %v3253
    %v4338 = vunpack.c.l.b16 %v3254
    %v4339 = vunpack.c.h.b16 %v3254
    %v4340 = vunpack.c.l.b16 %v3255
    %v4341 = vunpack.c.h.b16 %v3255
    %v4342 = vunpack.c.l.b16 %v3256
    %v4343 = vunpack.c.h.b16 %v3256
    %v4344 = vunpack.c.l.b16 %v3257
    %v4345 = vunpack.c.h.b16 %v3257
    %v4346 = vunpack.c.l.b16 %v3258
    %v4347 = vunpack.c.h.b16 %v3258
    %v4348 = vunpack.c.l.b16 %v3259
    %v4349 = vunpack.c.h.b16 %v3259
    %v4350 = vunpack.c.l.b16 %v3260
    %v4351 = vunpack.c.h.b16 %v3260
    %v4352 = vunpack.c.l.b16 %v3261
    %v4353 = vunpack.c.h.b16 %v3261
    %v4354 = vunpack.c.l.b16 %v3262
    %v4355 = vunpack.c.h.b16 %v3262
    %v4356 = vunpack.c.l.b16 %v3263
    %v4357 = vunpack.c.h.b16 %v3263
    %v4358 = vunpack.c.l.b16 %v3264
    %v4359 = vunpack.c.h.b16 %v3264
    %v4360 = vunpack.c.l.b16 %v3265
    %v4361 = vunpack.c.h.b16 %v3265
    %v4362 = vunpack.c.l.b16 %v3266
    %v4363 = vunpack.c.h.b16 %v3266
    %v4364 = vunpack.c.l.b16 %v3267
    %v4365 = vunpack.c.h.b16 %v3267
    %v4366 = vunpack.c.l.b16 %v3268
    %v4367 = vunpack.c.h.b16 %v3268
    %v4368 = vunpack.c.l.b16 %v3269
    %v4369 = vunpack.c.h.b16 %v3269
    %v4370 = vunpack.c.l.b16 %v3270
    %v4371 = vunpack.c.h.b16 %v3270
    %v4372 = vunpack.c.l.b16 %v3271
    %v4373 = vunpack.c.h.b16 %v3271
    %v4374 = vunpack.c.l.b16 %v3272
    %v4375 = vunpack.c.h.b16 %v3272
    %v4376 = vunpack.c.l.b16 %v3273
    %v4377 = vunpack.c.h.b16 %v3273
    %v4378 = vunpack.c.l.b16 %v3274
    %v4379 = vunpack.c.h.b16 %v3274
    %v4380 = vunpack.c.l.b16 %v3275
    %v4381 = vunpack.c.h.b16 %v3275
    %v4382 = vunpack.c.l.b16 %v3276
    %v4383 = vunpack.c.h.b16 %v3276
    %v4384 = vunpack.c.l.b16 %v3277
    %v4385 = vunpack.c.h.b16 %v3277
    %v4386 = vunpack.c.l.b16 %v3278
    %v4387 = vunpack.c.h.b16 %v3278
    %v4388 = vunpack.c.l.b16 %v3279
    %v4389 = vunpack.c.h.b16 %v3279
    %v4390 = vunpack.c.l.b16 %v3280
    %v4391 = vunpack.c.h.b16 %v3280
    %v4392 = vunpack.c.l.b16 %v3281
    %v4393 = vunpack.c.h.b16 %v3281
    %v4394 = vunpack.c.l.b16 %v3282
    %v4395 = vunpack.c.h.b16 %v3282
    %v4396 = vunpack.c.l.b16 %v3283
    %v4397 = vunpack.c.h.b16 %v3283
    %v4398 = vunpack.c.l.b16 %v3284
    %v4399 = vunpack.c.h.b16 %v3284
    %v4400 = vunpack.c.l.b16 %v3285
    %v4401 = vunpack.c.h.b16 %v3285
    %v4402 = vunpack.c.l.b16 %v3286
    %v4403 = vunpack.c.h.b16 %v3286
    %v4404 = vunpack.c.l.b16 %v3287
    %v4405 = vunpack.c.h.b16 %v3287
    %v4406 = vunpack.c.l.b16 %v3288
    %v4407 = vunpack.c.h.b16 %v3288
    %v4408 = vunpack.c.l.b16 %v3289
    %v4409 = vunpack.c.h.b16 %v3289
    %v4410 = vunpack.c.l.b16 %v3290
    %v4411 = vunpack.c.h.b16 %v3290
    %v4412 = vunpack.c.l.b16 %v3291
    %v4413 = vunpack.c.h.b16 %v3291
    %v4414 = vunpack.c.l.b16 %v3292
    %v4415 = vunpack.c.h.b16 %v3292
    %v4416 = vunpack.c.l.b16 %v3293
    %v4417 = vunpack.c.h.b16 %v3293
    %v4418 = vunpack.c.l.b16 %v3294
    %v4419 = vunpack.c.h.b16 %v3294
    %v4420 = vunpack.c.l.b16 %v3295
    %v4421 = vunpack.c.h.b16 %v3295
    %v4422 = vunpack.c.l.b16 %v3296
    %v4423 = vunpack.c.h.b16 %v3296
    %v4424 = vunpack.c.l.b16 %v3297
    %v4425 = vunpack.c.h.b16 %v3297
    %v4426 = vunpack.c.l.b16 %v3298
    %v4427 = vunpack.c.h.b16 %v3298
    %v4428 = vunpack.c.l.b16 %v3299
    %v4429 = vunpack.c.h.b16 %v3299
    %v4430 = vunpack.c.l.b16 %v3300
    %v4431 = vunpack.c.h.b16 %v3300
    %v4432 = vunpack.c.l.b16 %v3301
    %v4433 = vunpack.c.h.b16 %v3301
    %v4434 = vunpack.c.l.b16 %v3302
    %v4435 = vunpack.c.h.b16 %v3302
    %v4436 = vunpack.c.l.b16 %v3303
    %v4437 = vunpack.c.h.b16 %v3303
    %v4438 = vunpack.c.l.b16 %v3304
    %v4439 = vunpack.c.h.b16 %v3304
    %v4440 = vunpack.c.l.b16 %v3305
    %v4441 = vunpack.c.h.b16 %v3305
    %v4442 = vunpack.c.l.b16 %v3306
    %v4443 = vunpack.c.h.b16 %v3306
    %v4444 = vunpack.c.l.b16 %v3307
    %v4445 = vunpack.c.h.b16 %v3307
    %v4446 = vunpack.c.l.b16 %v3308
    %v4447 = vunpack.c.h.b16 %v3308
    %v4448 = vunpack.c.l.b16 %v3309
    %v4449 = vunpack.c.h.b16 %v3309
    %v4450 = vunpack.c.l.b16 %v3310
    %v4451 = vunpack.c.h.b16 %v3310
    %v4452 = vunpack.c.l.b16 %v3311
    %v4453 = vunpack.c.h.b16 %v3311
    %v4454 = vunpack.c.l.b16 %v3312
    %v4455 = vunpack.c.h.b16 %v3312
    %v4456 = vunpack.c.l.b16 %v3313
    %v4457 = vunpack.c.h.b16 %v3313
    %v4458 = vunpack.c.l.b16 %v3314
    %v4459 = vunpack.c.h.b16 %v3314
    %v4460 = vunpack.c.l.b16 %v3315
    %v4461 = vunpack.c.h.b16 %v3315
    %v4462 = vunpack.c.l.b16 %v3316
    %v4463 = vunpack.c.h.b16 %v3316
    %v4464 = vunpack.c.l.b16 %v3317
    %v4465 = vunpack.c.h.b16 %v3317
    %v4466 = vunpack.c.l.b16 %v3318
    %v4467 = vunpack.c.h.b16 %v3318
    %v4468 = vunpack.c.l.b16 %v3319
    %v4469 = vunpack.c.h.b16 %v3319
    %v4470 = vunpack.c.l.b16 %v3320
    %v4471 = vunpack.c.h.b16 %v3320
    %v4472 = vunpack.c.l.b16 %v3321
    %v4473 = vunpack.c.h.b16 %v3321
    %v4474 = vunpack.c.l.b16 %v3322
    %v4475 = vunpack.c.h.b16 %v3322
    %v4476 = vunpack.c.l.b16 %v3323
    %v4477 = vunpack.c.h.b16 %v3323
    %v4478 = vunpack.c.l.b16 %v3324
    %v4479 = vunpack.c.h.b16 %v3324
    %v4480 = vunpack.c.l.b16 %v3325
    %v4481 = vunpack.c.h.b16 %v3325
    %v4482 = vunpack.c.l.b16 %v3326
    %v4483 = vunpack.c.h.b16 %v3326
    %v4484 = vunpack.c.l.b16 %v3327
    %v4485 = vunpack.c.h.b16 %v3327
    %v4486 = vunpack.c.l.b16 %v3328
    %v4487 = vunpack.c.h.b16 %v3328
    %v4488 = vunpack.c.l.b16 %v3329
    %v4489 = vunpack.c.h.b16 %v3329
    %v4490 = vunpack.c.l.b16 %v3330
    %v4491 = vunpack.c.h.b16 %v3330
    %v4492 = vunpack.c.l.b16 %v3331
    %v4493 = vunpack.c.h.b16 %v3331
    %v4494 = vunpack.c.l.b16 %v3332
    %v4495 = vunpack.c.h.b16 %v3332
    %v4496 = vunpack.c.l.b16 %v3333
    %v4497 = vunpack.c.h.b16 %v3333
    %v4498 = vunpack.c.l.b16 %v3334
    %v4499 = vunpack.c.h.b16 %v3334
    %v4500 = vunpack.c.l.b16 %v3335
    %v4501 = vunpack.c.h.b16 %v3335
    %v4502 = vunpack.c.l.b16 %v3336
    %v4503 = vunpack.c.h.b16 %v3336
    %v4504 = vunpack.c.l.b16 %v3337
    %v4505 = vunpack.c.h.b16 %v3337
    %v4506 = vunpack.c.l.b16 %v3338
    %v4507 = vunpack.c.h.b16 %v3338
    %v4508 = vunpack.c.l.b16 %v3339
    %v4509 = vunpack.c.h.b16 %v3339
    %v4510 = vunpack.c.l.b16 %v3340
    %v4511 = vunpack.c.h.b16 %v3340
    %v4512 = vunpack.c.l.b16 %v3341
    %v4513 = vunpack.c.h.b16 %v3341
    %v4514 = vunpack.c.l.b16 %v3342
    %v4515 = vunpack.c.h.b16 %v3342
    %v4516 = vunpack.c.l.b16 %v3343
    %v4517 = vunpack.c.h.b16 %v3343
    %v4518 = vunpack.c.l.b16 %v3344
    %v4519 = vunpack.c.h.b16 %v3344
    %v4520 = vunpack.c.l.b16 %v3345
    %v4521 = vunpack.c.h.b16 %v3345
    %v4522 = vunpack.c.l.b16 %v3346
    %v4523 = vunpack.c.h.b16 %v3346
    %v4524 = vunpack.c.l.b16 %v3347
    %v4525 = vunpack.c.h.b16 %v3347
    %v4526 = vunpack.c.l.b16 %v3348
    %v4527 = vunpack.c.h.b16 %v3348
    %v4528 = vunpack.c.l.b16 %v3349
    %v4529 = vunpack.c.h.b16 %v3349
    %v4530 = vunpack.c.l.b16 %v3350
    %v4531 = vunpack.c.h.b16 %v3350
    %v4532 = vunpack.c.l.b16 %v3351
    %v4533 = vunpack.c.h.b16 %v3351
    %v4534 = vunpack.c.l.b16 %v3352
    %v4535 = vunpack.c.h.b16 %v3352
    %v4536 = vunpack.c.l.b16 %v3353
    %v4537 = vunpack.c.h.b16 %v3353
    %v4538 = vunpack.c.l.b16 %v3354
    %v4539 = vunpack.c.h.b16 %v3354
    %v4540 = vunpack.c.l.b16 %v3355
    %v4541 = vunpack.c.h.b16 %v3355
    %v4542 = vunpack.c.l.b16 %v3356
    %v4543 = vunpack.c.h.b16 %v3356
    %v4544 = vunpack.c.l.b16 %v3357
    %v4545 = vunpack.c.h.b16 %v3357
    %v4546 = vunpack.c.l.b16 %v3358
    %v4547 = vunpack.c.h.b16 %v3358
    %v4548 = vunpack.c.l.b16 %v3359
    %v4549 = vunpack.c.h.b16 %v3359
    %v4550 = vunpack.c.l.b16 %v3360
    %v4551 = vunpack.c.h.b16 %v3360
    %v4552 = vunpack.c.l.b16 %v3361
    %v4553 = vunpack.c.h.b16 %v3361
    %v4554 = vunpack.c.l.b16 %v3362
    %v4555 = vunpack.c.h.b16 %v3362
    %v4556 = vunpack.c.l.b16 %v3363
    %v4557 = vunpack.c.h.b16 %v3363
    %v4558 = vunpack.c.l.b16 %v3364
    %v4559 = vunpack.c.h.b16 %v3364
    %v4560 = vunpack.c.l.b16 %v3365
    %v4561 = vunpack.c.h.b16 %v3365
    %v4562 = vunpack.c.l.b16 %v3366
    %v4563 = vunpack.c.h.b16 %v3366
    %v4564 = vunpack.c.l.b16 %v3367
    %v4565 = vunpack.c.h.b16 %v3367
    %v4566 = vunpack.c.l.b16 %v3368
    %v4567 = vunpack.c.h.b16 %v3368
    %v4568 = vunpack.c.l.b16 %v3369
    %v4569 = vunpack.c.h.b16 %v3369
    %v4570 = vunpack.c.l.b16 %v3370
    %v4571 = vunpack.c.h.b16 %v3370
    %v4572 = vunpack.c.l.b16 %v3371
    %v4573 = vunpack.c.h.b16 %v3371
    %v4574 = vunpack.c.l.b16 %v3372
    %v4575 = vunpack.c.h.b16 %v3372
    %v4576 = vunpack.c.l.b16 %v3373
    %v4577 = vunpack.c.h.b16 %v3373
    %v4578 = vunpack.c.l.b16 %v3374
    %v4579 = vunpack.c.h.b16 %v3374
    %v4580 = vunpack.c.l.b16 %v3375
    %v4581 = vunpack.c.h.b16 %v3375
    %v4582 = vunpack.c.l.b16 %v3376
    %v4583 = vunpack.c.h.b16 %v3376
    %v4584 = vunpack.c.l.b16 %v3377
    %v4585 = vunpack.c.h.b16 %v3377
    %v4586 = vunpack.c.l.b16 %v3378
    %v4587 = vunpack.c.h.b16 %v3378
    %v4588 = vunpack.c.l.b16 %v3379
    %v4589 = vunpack.c.h.b16 %v3379
    %v4590 = vunpack.c.l.b16 %v3380
    %v4591 = vunpack.c.h.b16 %v3380
    %v4592 = vunpack.c.l.b16 %v3381
    %v4593 = vunpack.c.h.b16 %v3381
    %v4594 = vunpack.c.l.b16 %v3382
    %v4595 = vunpack.c.h.b16 %v3382
    %v4596 = vunpack.c.l.b16 %v3383
    %v4597 = vunpack.c.h.b16 %v3383
    %v4598 = vunpack.c.l.b16 %v3384
    %v4599 = vunpack.c.h.b16 %v3384
    %v4600 = vunpack.c.l.b16 %v3385
    %v4601 = vunpack.c.h.b16 %v3385
    %v4602 = vunpack.c.l.b16 %v3386
    %v4603 = vunpack.c.h.b16 %v3386
    %v4604 = vunpack.c.l.b16 %v3387
    %v4605 = vunpack.c.h.b16 %v3387
    %v4606 = vunpack.c.l.b16 %v3388
    %v4607 = vunpack.c.h.b16 %v3388
    %v4608 = vunpack.c.l.b16 %v3389
    %v4609 = vunpack.c.h.b16 %v3389
    %v4610 = vunpack.c.l.b16 %v3390
    %v4611 = vunpack.c.h.b16 %v3390
    %v4612 = vunpack.c.l.b16 %v3391
    %v4613 = vunpack.c.h.b16 %v3391
    %v4614 = vunpack.c.l.b16 %v3392
    %v4615 = vunpack.c.h.b16 %v3392
    %v4616 = vunpack.c.l.b16 %v3393
    %v4617 = vunpack.c.h.b16 %v3393
    %v4618 = vunpack.c.l.b16 %v3394
    %v4619 = vunpack.c.h.b16 %v3394
    %v4620 = vunpack.c.l.b16 %v3395
    %v4621 = vunpack.c.h.b16 %v3395
    %v4622 = vunpack.c.l.b16 %v3396
    %v4623 = vunpack.c.h.b16 %v3396
    %v4624 = vunpack.c.l.b16 %v3397
    %v4625 = vunpack.c.h.b16 %v3397
    %v4626 = vunpack.c.l.b16 %v3398
    %v4627 = vunpack.c.h.b16 %v3398
    %v4628 = vunpack.c.l.b16 %v3399
    %v4629 = vunpack.c.h.b16 %v3399
    %v4630 = vunpack.c.l.b16 %v3400
    %v4631 = vunpack.c.h.b16 %v3400
    %v4632 = vunpack.c.l.b16 %v3401
    %v4633 = vunpack.c.h.b16 %v3401
    %v4634 = vunpack.c.l.b16 %v3402
    %v4635 = vunpack.c.h.b16 %v3402
    %v4636 = vunpack.c.l.b16 %v3403
    %v4637 = vunpack.c.h.b16 %v3403
    %v4638 = vunpack.c.l.b16 %v3404
    %v4639 = vunpack.c.h.b16 %v3404
    %v4640 = vunpack.c.l.b16 %v3405
    %v4641 = vunpack.c.h.b16 %v3405
    %v4642 = vunpack.c.l.b16 %v3406
    %v4643 = vunpack.c.h.b16 %v3406
    %v4644 = vunpack.c.l.b16 %v3407
    %v4645 = vunpack.c.h.b16 %v3407
    %v4646 = vunpack.c.l.b16 %v3408
    %v4647 = vunpack.c.h.b16 %v3408
    %v4648 = vunpack.c.l.b16 %v3409
    %v4649 = vunpack.c.h.b16 %v3409
    %v4650 = vunpack.c.l.b16 %v3410
    %v4651 = vunpack.c.h.b16 %v3410
    %v4652 = vunpack.c.l.b16 %v3411
    %v4653 = vunpack.c.h.b16 %v3411
    %v4654 = vunpack.c.l.b16 %v3412
    %v4655 = vunpack.c.h.b16 %v3412
    %v4656 = vunpack.c.l.b16 %v3413
    %v4657 = vunpack.c.h.b16 %v3413
    %v4658 = vunpack.c.l.b16 %v3414
    %v4659 = vunpack.c.h.b16 %v3414
    %v4660 = vunpack.c.l.b16 %v3415
    %v4661 = vunpack.c.h.b16 %v3415
    %v4662 = vunpack.c.l.b16 %v3416
    %v4663 = vunpack.c.h.b16 %v3416
    %v4664 = vunpack.c.l.b16 %v3417
    %v4665 = vunpack.c.h.b16 %v3417
    %v4666 = vunpack.c.l.b16 %v3418
    %v4667 = vunpack.c.h.b16 %v3418
    %v4668 = vunpack.c.l.b16 %v3419
    %v4669 = vunpack.c.h.b16 %v3419
    %v4670 = vunpack.c.l.b16 %v3420
    %v4671 = vunpack.c.h.b16 %v3420
    %v4672 = vunpack.c.l.b16 %v3421
    %v4673 = vunpack.c.h.b16 %v3421
    %v4674 = vunpack.c.l.b16 %v3422
    %v4675 = vunpack.c.h.b16 %v3422
    %v4676 = vunpack.c.l.b16 %v3423
    %v4677 = vunpack.c.h.b16 %v3423
    %v4678 = vunpack.c.l.b16 %v3424
    %v4679 = vunpack.c.h.b16 %v3424
    %v4680 = vunpack.c.l.b16 %v3425
    %v4681 = vunpack.c.h.b16 %v3425
    %v4682 = vunpack.c.l.b16 %v3426
    %v4683 = vunpack.c.h.b16 %v3426
    %v4684 = vunpack.c.l.b16 %v3427
    %v4685 = vunpack.c.h.b16 %v3427
    %v4686 = vunpack.c.l.b16 %v3428
    %v4687 = vunpack.c.h.b16 %v3428
    %v4688 = vunpack.c.l.b16 %v3429
    %v4689 = vunpack.c.h.b16 %v3429
    %v4690 = vunpack.c.l.b16 %v3430
    %v4691 = vunpack.c.h.b16 %v3430
    %v4692 = vunpack.c.l.b16 %v3431
    %v4693 = vunpack.c.h.b16 %v3431
    %v4694 = vunpack.c.l.b16 %v3432
    %v4695 = vunpack.c.h.b16 %v3432
    %v4696 = vunpack.c.l.b16 %v3433
    %v4697 = vunpack.c.h.b16 %v3433
    %v4698 = vunpack.c.l.b16 %v3434
    %v4699 = vunpack.c.h.b16 %v3434
    %v4700 = vunpack.c.l.b16 %v3435
    %v4701 = vunpack.c.h.b16 %v3435
    %v4702 = vunpack.c.l.b16 %v3436
    %v4703 = vunpack.c.h.b16 %v3436
    %v4704 = vunpack.c.l.b16 %v3437
    %v4705 = vunpack.c.h.b16 %v3437
    %v4706 = vunpack.c.l.b16 %v3438
    %v4707 = vunpack.c.h.b16 %v3438
    %v4708 = vunpack.c.l.b16 %v3439
    %v4709 = vunpack.c.h.b16 %v3439
    %v4710 = vunpack.c.l.b16 %v3440
    %v4711 = vunpack.c.h.b16 %v3440
    %v4712 = vunpack.c.l.b16 %v3441
    %v4713 = vunpack.c.h.b16 %v3441
    %v4714 = vunpack.c.l.b16 %v3442
    %v4715 = vunpack.c.h.b16 %v3442
    %v4716 = vunpack.c.l.b16 %v3443
    %v4717 = vunpack.c.h.b16 %v3443
    %v4718 = vunpack.c.l.b16 %v3444
    %v4719 = vunpack.c.h.b16 %v3444
    %v4720 = vunpack.c.l.b16 %v3445
    %v4721 = vunpack.c.h.b16 %v3445
    %v4722 = vunpack.c.l.b16 %v3446
    %v4723 = vunpack.c.h.b16 %v3446
    %v4724 = vunpack.c.l.b16 %v3447
    %v4725 = vunpack.c.h.b16 %v3447
    %v4726 = vunpack.c.l.b16 %v3448
    %v4727 = vunpack.c.h.b16 %v3448
    %v4728 = vunpack.c.l.b16 %v3449
    %v4729 = vunpack.c.h.b16 %v3449
    %v4730 = vunpack.c.l.b16 %v3450
    %v4731 = vunpack.c.h.b16 %v3450
    %v4732 = vunpack.c.l.b16 %v3451
    %v4733 = vunpack.c.h.b16 %v3451
    %v4734 = vunpack.c.l.b16 %v3452
    %v4735 = vunpack.c.h.b16 %v3452
    %v4736 = vunpack.c.l.b16 %v3453
    %v4737 = vunpack.c.h.b16 %v3453
    %v4738 = vunpack.c.l.b16 %v3454
    %v4739 = vunpack.c.h.b16 %v3454
    %v4740 = vunpack.c.l.b16 %v3455
    %v4741 = vunpack.c.h.b16 %v3455
    %v4742 = vunpack.c.l.b16 %v3456
    %v4743 = vunpack.c.h.b16 %v3456
    %v4744 = vunpack.c.l.b16 %v3457
    %v4745 = vunpack.c.h.b16 %v3457
    %v4746 = vunpack.c.l.b16 %v3458
    %v4747 = vunpack.c.h.b16 %v3458
    %v4748 = vunpack.c.l.b16 %v3459
    %v4749 = vunpack.c.h.b16 %v3459
    %v4750 = vunpack.c.l.b16 %v3460
    %v4751 = vunpack.c.h.b16 %v3460
    %v4752 = vunpack.c.l.b16 %v3461
    %v4753 = vunpack.c.h.b16 %v3461
    %v4754 = vunpack.c.l.b16 %v3462
    %v4755 = vunpack.c.h.b16 %v3462
    %v4756 = vunpack.c.l.b16 %v3463
    %v4757 = vunpack.c.h.b16 %v3463
    %v4758 = vunpack.c.l.b16 %v3464
    %v4759 = vunpack.c.h.b16 %v3464
    %v4760 = vunpack.c.l.b16 %v3465
    %v4761 = vunpack.c.h.b16 %v3465
    %v4762 = vunpack.c.l.b16 %v3466
    %v4763 = vunpack.c.h.b16 %v3466
    %v4764 = vunpack.c.l.b16 %v3467
    %v4765 = vunpack.c.h.b16 %v3467
    %v4766 = vunpack.c.l.b16 %v3468
    %v4767 = vunpack.c.h.b16 %v3468
    %v4768 = vunpack.c.l.b16 %v3469
    %v4769 = vunpack.c.h.b16 %v3469
    %v4770 = vunpack.c.l.b16 %v3470
    %v4771 = vunpack.c.h.b16 %v3470
    %v4772 = vunpack.c.l.b16 %v3471
    %v4773 = vunpack.c.h.b16 %v3471
    %v4774 = vunpack.c.l.b16 %v3472
    %v4775 = vunpack.c.h.b16 %v3472
    %v4776 = vunpack.c.l.b16 %v3473
    %v4777 = vunpack.c.h.b16 %v3473
    %v4778 = vunpack.c.l.b16 %v3474
    %v4779 = vunpack.c.h.b16 %v3474
    %v4780 = vunpack.c.l.b16 %v3475
    %v4781 = vunpack.c.h.b16 %v3475
    %v4782 = vunpack.c.l.b16 %v3476
    %v4783 = vunpack.c.h.b16 %v3476
    %v4784 = vunpack.c.l.b16 %v3477
    %v4785 = vunpack.c.h.b16 %v3477
    %v4786 = vunpack.c.l.b16 %v3478
    %v4787 = vunpack.c.h.b16 %v3478
    %v4788 = vunpack.c.l.b16 %v3479
    %v4789 = vunpack.c.h.b16 %v3479
    %v4790 = vunpack.c.l.b16 %v3480
    %v4791 = vunpack.c.h.b16 %v3480
    %v4792 = vunpack.c.l.b16 %v3481
    %v4793 = vunpack.c.h.b16 %v3481
    %v4794 = vunpack.c.l.b16 %v3482
    %v4795 = vunpack.c.h.b16 %v3482
    %v4796 = vunpack.c.l.b16 %v3483
    %v4797 = vunpack.c.h.b16 %v3483
    %v4798 = vunpack.c.l.b16 %v3484
    %v4799 = vunpack.c.h.b16 %v3484
    %v4800 = vunpack.c.l.b16 %v3485
    %v4801 = vunpack.c.h.b16 %v3485
    %v4802 = vunpack.c.l.b16 %v3486
    %v4803 = vunpack.c.h.b16 %v3486
    %v4804 = vunpack.c.l.b16 %v3487
    %v4805 = vunpack.c.h.b16 %v3487
    %v4806 = vunpack.c.l.b16 %v3488
    %v4807 = vunpack.c.h.b16 %v3488
    %v4808 = vunpack.c.l.b16 %v3489
    %v4809 = vunpack.c.h.b16 %v3489
    %v4810 = vunpack.c.l.b16 %v3490
    %v4811 = vunpack.c.h.b16 %v3490
    %v4812 = vunpack.c.l.b16 %v3491
    %v4813 = vunpack.c.h.b16 %v3491
    %v4814 = vunpack.c.l.b16 %v3492
    %v4815 = vunpack.c.h.b16 %v3492
    %v4816 = vunpack.c.l.b16 %v3493
    %v4817 = vunpack.c.h.b16 %v3493
    %v4818 = vunpack.c.l.b16 %v3494
    %v4819 = vunpack.c.h.b16 %v3494
    %v4820 = vunpack.c.l.b16 %v3495
    %v4821 = vunpack.c.h.b16 %v3495
    %v4822 = vunpack.c.l.b16 %v3496
    %v4823 = vunpack.c.h.b16 %v3496
    %v4824 = vunpack.c.l.b16 %v3497
    %v4825 = vunpack.c.h.b16 %v3497
    %v4826 = vunpack.c.l.b16 %v3498
    %v4827 = vunpack.c.h.b16 %v3498
    %v4828 = vunpack.c.l.b16 %v3499
    %v4829 = vunpack.c.h.b16 %v3499
    %v4830 = vunpack.c.l.b16 %v3500
    %v4831 = vunpack.c.h.b16 %v3500
    %v4832 = vunpack.c.l.b16 %v3501
    %v4833 = vunpack.c.h.b16 %v3501
    %v4834 = vunpack.c.l.b16 %v3502
    %v4835 = vunpack.c.h.b16 %v3502
    %v4836 = vunpack.c.l.b16 %v3503
    %v4837 = vunpack.c.h.b16 %v3503
    %v4838 = vunpack.c.l.b16 %v3504
    %v4839 = vunpack.c.h.b16 %v3504
    %v4840 = vunpack.c.l.b16 %v3505
    %v4841 = vunpack.c.h.b16 %v3505
    %v4842 = vunpack.c.l.b16 %v3506
    %v4843 = vunpack.c.h.b16 %v3506
    %v4844 = vunpack.c.l.b16 %v3507
    %v4845 = vunpack.c.h.b16 %v3507
    %v4846 = vunpack.c.l.b16 %v3508
    %v4847 = vunpack.c.h.b16 %v3508
    %v4848 = vunpack.c.l.b16 %v3509
    %v4849 = vunpack.c.h.b16 %v3509
    %v4850 = vunpack.c.l.b16 %v3510
    %v4851 = vunpack.c.h.b16 %v3510
    %v4852 = vunpack.c.l.b16 %v3511
    %v4853 = vunpack.c.h.b16 %v3511
    %v4854 = vunpack.c.l.b16 %v3512
    %v4855 = vunpack.c.h.b16 %v3512
    %v4856 = vunpack.c.l.b16 %v3513
    %v4857 = vunpack.c.h.b16 %v3513
    %v4858 = vunpack.c.l.b16 %v3514
    %v4859 = vunpack.c.h.b16 %v3514
    %v4860 = vunpack.c.l.b16 %v3515
    %v4861 = vunpack.c.h.b16 %v3515
    %v4862 = vunpack.c.l.b16 %v3516
    %v4863 = vunpack.c.h.b16 %v3516
    %v4864 = vunpack.c.l.b16 %v3517
    %v4865 = vunpack.c.h.b16 %v3517
    %v4866 = vunpack.c.l.b16 %v3518
    %v4867 = vunpack.c.h.b16 %v3518
    %v4868 = vunpack.c.l.b16 %v3519
    %v4869 = vunpack.c.h.b16 %v3519
    %v4870 = vunpack.c.l.b16 %v3520
    %v4871 = vunpack.c.h.b16 %v3520
    %v4872 = vunpack.c.l.b16 %v3521
    %v4873 = vunpack.c.h.b16 %v3521
    %v4874 = vunpack.c.l.b16 %v3522
    %v4875 = vunpack.c.h.b16 %v3522
    %v4876 = vunpack.c.l.b16 %v3523
    %v4877 = vunpack.c.h.b16 %v3523
    %v4878 = vunpack.c.l.b16 %v3524
    %v4879 = vunpack.c.h.b16 %v3524
    %v4880 = vunpack.c.l.b16 %v3525
    %v4881 = vunpack.c.h.b16 %v3525
    %v4882 = vunpack.c.l.b16 %v3526
    %v4883 = vunpack.c.h.b16 %v3526
    %v4884 = vunpack.c.l.b16 %v3527
    %v4885 = vunpack.c.h.b16 %v3527
    %v4886 = vunpack.c.l.b16 %v3528
    %v4887 = vunpack.c.h.b16 %v3528
    %v4888 = vunpack.c.l.b16 %v3529
    %v4889 = vunpack.c.h.b16 %v3529
    %v4890 = vunpack.c.l.b16 %v3530
    %v4891 = vunpack.c.h.b16 %v3530
    %v4892 = vunpack.c.l.b16 %v3531
    %v4893 = vunpack.c.h.b16 %v3531
    %v4894 = vunpack.c.l.b16 %v3532
    %v4895 = vunpack.c.h.b16 %v3532
    %v4896 = vunpack.c.l.b16 %v3533
    %v4897 = vunpack.c.h.b16 %v3533
    %v4898 = vunpack.c.l.b16 %v3534
    %v4899 = vunpack.c.h.b16 %v3534
    %v4900 = vunpack.c.l.b16 %v3535
    %v4901 = vunpack.c.h.b16 %v3535
    %v4902 = vunpack.c.l.b16 %v3536
    %v4903 = vunpack.c.h.b16 %v3536
    %v4904 = vunpack.c.l.b16 %v3537
    %v4905 = vunpack.c.h.b16 %v3537
    %v4906 = vunpack.c.l.b16 %v3538
    %v4907 = vunpack.c.h.b16 %v3538
    %v4908 = vunpack.c.l.b16 %v3539
    %v4909 = vunpack.c.h.b16 %v3539
    %v4910 = vunpack.c.l.b16 %v3540
    %v4911 = vunpack.c.h.b16 %v3540
    %v4912 = vunpack.c.l.b16 %v3541
    %v4913 = vunpack.c.h.b16 %v3541
    %v4914 = vunpack.c.l.b16 %v3542
    %v4915 = vunpack.c.h.b16 %v3542
    %v4916 = vunpack.c.l.b16 %v3543
    %v4917 = vunpack.c.h.b16 %v3543
    %v4918 = vunpack.c.l.b16 %v3544
    %v4919 = vunpack.c.h.b16 %v3544
    %v4920 = vunpack.c.l.b16 %v3545
    %v4921 = vunpack.c.h.b16 %v3545
    %v4922 = vunpack.c.l.b16 %v3546
    %v4923 = vunpack.c.h.b16 %v3546
    %v4924 = vunpack.c.l.b16 %v3547
    %v4925 = vunpack.c.h.b16 %v3547
    %v4926 = vunpack.c.l.b16 %v3548
    %v4927 = vunpack.c.h.b16 %v3548
    %v4928 = vunpack.c.l.b16 %v3549
    %v4929 = vunpack.c.h.b16 %v3549
    %v4930 = vunpack.c.l.b16 %v3550
    %v4931 = vunpack.c.h.b16 %v3550
    %v4932 = vunpack.c.l.b16 %v3551
    %v4933 = vunpack.c.h.b16 %v3551
    %v4934 = vunpack.c.l.b16 %v3552
    %v4935 = vunpack.c.h.b16 %v3552
    %v4936 = vunpack.c.l.b16 %v3553
    %v4937 = vunpack.c.h.b16 %v3553
    %v4938 = vunpack.c.l.b16 %v3554
    %v4939 = vunpack.c.h.b16 %v3554
    %v4940 = vunpack.c.l.b16 %v3555
    %v4941 = vunpack.c.h.b16 %v3555
    %v4942 = vunpack.c.l.b16 %v3556
    %v4943 = vunpack.c.h.b16 %v3556
    %v4944 = vunpack.c.l.b16 %v3557
    %v4945 = vunpack.c.h.b16 %v3557
    %v4946 = vunpack.c.l.b16 %v3558
    %v4947 = vunpack.c.h.b16 %v3558
    %v4948 = vunpack.c.l.b16 %v3559
    %v4949 = vunpack.c.h.b16 %v3559
    %v4950 = vunpack.c.l.b16 %v3560
    %v4951 = vunpack.c.h.b16 %v3560
    %v4952 = vunpack.c.l.b16 %v3561
    %v4953 = vunpack.c.h.b16 %v3561
    %v4954 = vunpack.c.l.b16 %v3562
    %v4955 = vunpack.c.h.b16 %v3562
    %v4956 = vunpack.c.l.b16 %v3563
    %v4957 = vunpack.c.h.b16 %v3563
    %v4958 = vunpack.c.l.b16 %v3564
    %v4959 = vunpack.c.h.b16 %v3564
    %v4960 = vunpack.c.l.b16 %v3565
    %v4961 = vunpack.c.h.b16 %v3565
    %v4962 = vunpack.c.l.b16 %v3566
    %v4963 = vunpack.c.h.b16 %v3566
    %v4964 = vunpack.c.l.b16 %v3567
    %v4965 = vunpack.c.h.b16 %v3567
    %v4966 = vunpack.c.l.b16 %v3568
    %v4967 = vunpack.c.h.b16 %v3568
    %v4968 = vunpack.c.l.b16 %v3569
    %v4969 = vunpack.c.h.b16 %v3569
    %v4970 = vunpack.c.l.b16 %v3570
    %v4971 = vunpack.c.h.b16 %v3570
    %v4972 = vunpack.c.l.b16 %v3571
    %v4973 = vunpack.c.h.b16 %v3571
    %v4974 = vunpack.c.l.b16 %v3572
    %v4975 = vunpack.c.h.b16 %v3572
    %v4976 = vunpack.c.l.b16 %v3573
    %v4977 = vunpack.c.h.b16 %v3573
    %v4978 = vunpack.c.l.b16 %v3574
    %v4979 = vunpack.c.h.b16 %v3574
    %v4980 = vunpack.c.l.b16 %v3575
    %v4981 = vunpack.c.h.b16 %v3575
    %v4982 = vunpack.c.l.b16 %v3576
    %v4983 = vunpack.c.h.b16 %v3576
    %v4984 = vunpack.c.l.b16 %v3577
    %v4985 = vunpack.c.h.b16 %v3577
    %v4986 = vunpack.c.l.b16 %v3578
    %v4987 = vunpack.c.h.b16 %v3578
    %v4988 = vunpack.c.l.b16 %v3579
    %v4989 = vunpack.c.h.b16 %v3579
    %v4990 = vunpack.c.l.b16 %v3580
    %v4991 = vunpack.c.h.b16 %v3580
    %v4992 = vunpack.c.l.b16 %v3581
    %v4993 = vunpack.c.h.b16 %v3581
    %v4994 = vunpack.c.l.b16 %v3582
    %v4995 = vunpack.c.h.b16 %v3582
    %v4996 = vunpack.c.l.b16 %v3583
    %v4997 = vunpack.c.h.b16 %v3583
    %v4998 = vunpack.c.l.b16 %v3584
    %v4999 = vunpack.c.h.b16 %v3584
    %v5000 = vunpack.c.l.b16 %v3585
    %v5001 = vunpack.c.h.b16 %v3585
    %v5002 = vunpack.c.l.b16 %v3586
    %v5003 = vunpack.c.h.b16 %v3586
    %v5004 = vunpack.c.l.b16 %v3587
    %v5005 = vunpack.c.h.b16 %v3587
    %v5006 = vunpack.c.l.b16 %v3588
    %v5007 = vunpack.c.h.b16 %v3588
    %v5008 = vunpack.c.l.b16 %v3589
    %v5009 = vunpack.c.h.b16 %v3589
    %v5010 = vunpack.c.l.b16 %v3590
    %v5011 = vunpack.c.h.b16 %v3590
    %v5012 = vunpack.c.l.b16 %v3591
    %v5013 = vunpack.c.h.b16 %v3591
    %v5014 = vunpack.c.l.b16 %v3592
    %v5015 = vunpack.c.h.b16 %v3592
    %v5016 = vunpack.c.l.b16 %v3593
    %v5017 = vunpack.c.h.b16 %v3593
    %v5018 = vunpack.c.l.b16 %v3594
    %v5019 = vunpack.c.h.b16 %v3594
    %v5020 = vunpack.c.l.b16 %v3595
    %v5021 = vunpack.c.h.b16 %v3595
    %v5022 = vunpack.c.l.b16 %v3596
    %v5023 = vunpack.c.h.b16 %v3596
    %v5024 = vunpack.c.l.b16 %v3597
    %v5025 = vunpack.c.h.b16 %v3597
    %v5026 = vunpack.c.l.b16 %v3598
    %v5027 = vunpack.c.h.b16 %v3598
    %v5028 = vunpack.c.l.b16 %v3599
    %v5029 = vunpack.c.h.b16 %v3599
    %v5030 = vunpack.c.l.b16 %v3600
    %v5031 = vunpack.c.h.b16 %v3600
    %v5032 = vunpack.c.l.b16 %v3601
    %v5033 = vunpack.c.h.b16 %v3601
    %v5034 = vunpack.c.l.b16 %v3602
    %v5035 = vunpack.c.h.b16 %v3602
    %v5036 = vunpack.c.l.b16 %v3603
    %v5037 = vunpack.c.h.b16 %v3603
    %v5038 = vunpack.c.l.b16 %v3604
    %v5039 = vunpack.c.h.b16 %v3604
    %v5040 = vunpack.c.l.b16 %v3605
    %v5041 = vunpack.c.h.b16 %v3605
    %v5042 = vunpack.c.l.b16 %v3606
    %v5043 = vunpack.c.h.b16 %v3606
    %v5044 = vunpack.c.l.b16 %v3607
    %v5045 = vunpack.c.h.b16 %v3607
    %v5046 = vunpack.c.l.b16 %v3608
    %v5047 = vunpack.c.h.b16 %v3608
    %v5048 = vunpack.c.l.b16 %v3609
    %v5049 = vunpack.c.h.b16 %v3609
    %v5050 = vunpack.c.l.b16 %v3610
    %v5051 = vunpack.c.h.b16 %v3610
    %v5052 = vunpack.c.l.b16 %v3611
    %v5053 = vunpack.c.h.b16 %v3611
    %v5054 = vunpack.c.l.b16 %v3612
    %v5055 = vunpack.c.h.b16 %v3612
    %v5056 = vunpack.c.l.b16 %v3613
    %v5057 = vunpack.c.h.b16 %v3613
    %v5058 = vunpack.c.l.b16 %v3614
    %v5059 = vunpack.c.h.b16 %v3614
    %v5060 = vunpack.c.l.b16 %v3615
    %v5061 = vunpack.c.h.b16 %v3615
    %v5062 = vunpack.c.l.b16 %v3616
    %v5063 = vunpack.c.h.b16 %v3616
    %v5064 = vunpack.c.l.b16 %v3617
    %v5065 = vunpack.c.h.b16 %v3617
    %v5066 = vunpack.c.l.b16 %v3618
    %v5067 = vunpack.c.h.b16 %v3618
    %v5068 = vunpack.c.l.b16 %v3619
    %v5069 = vunpack.c.h.b16 %v3619
    %v5070 = vunpack.c.l.b16 %v3620
    %v5071 = vunpack.c.h.b16 %v3620
    %v5072 = vunpack.c.l.b16 %v3621
    %v5073 = vunpack.c.h.b16 %v3621
    %v5074 = vunpack.c.l.b16 %v3622
    %v5075 = vunpack.c.h.b16 %v3622
    %v5076 = vunpack.c.l.b16 %v3623
    %v5077 = vunpack.c.h.b16 %v3623
    %v5078 = vunpack.c.l.b16 %v3624
    %v5079 = vunpack.c.h.b16 %v3624
    %v5080 = vunpack.c.l.b16 %v3625
    %v5081 = vunpack.c.h.b16 %v3625
    %v5082 = vunpack.c.l.b16 %v3626
    %v5083 = vunpack.c.h.b16 %v3626
    %v5084 = vunpack.c.l.b16 %v3627
    %v5085 = vunpack.c.h.b16 %v3627
    %v5086 = vunpack.c.l.b16 %v3628
    %v5087 = vunpack.c.h.b16 %v3628
    %v5088 = vunpack.c.l.b16 %v3629
    %v5089 = vunpack.c.h.b16 %v3629
    %v5090 = vunpack.c.l.b16 %v3630
    %v5091 = vunpack.c.h.b16 %v3630
    %v5092 = vunpack.c.l.b16 %v3631
    %v5093 = vunpack.c.h.b16 %v3631
    %v5094 = vunpack.c.l.b16 %v3632
    %v5095 = vunpack.c.h.b16 %v3632
    %v5096 = vunpack.c.l.b16 %v3633
    %v5097 = vunpack.c.h.b16 %v3633
    %v5098 = vunpack.c.l.b16 %v3634
    %v5099 = vunpack.c.h.b16 %v3634
    %v5100 = vunpack.c.l.b16 %v3635
    %v5101 = vunpack.c.h.b16 %v3635
    %v5102 = vunpack.c.l.b16 %v3636
    %v5103 = vunpack.c.h.b16 %v3636
    %v5104 = vunpack.c.l.b16 %v3637
    %v5105 = vunpack.c.h.b16 %v3637
    %v5106 = vunpack.c.l.b16 %v3638
    %v5107 = vunpack.c.h.b16 %v3638
    %v5108 = vunpack.c.l.b16 %v3639
    %v5109 = vunpack.c.h.b16 %v3639
    %v5110 = vunpack.c.l.b16 %v3640
    %v5111 = vunpack.c.h.b16 %v3640
    %v5112 = vunpack.c.l.b16 %v3641
    %v5113 = vunpack.c.h.b16 %v3641
    %v5114 = vunpack.c.l.b16 %v3642
    %v5115 = vunpack.c.h.b16 %v3642
    %v5116 = vunpack.c.l.b16 %v3643
    %v5117 = vunpack.c.h.b16 %v3643
    %v5118 = vunpack.c.l.b16 %v3644
    %v5119 = vunpack.c.h.b16 %v3644
    %v5120 = vunpack.c.l.b16 %v3645
    %v5121 = vunpack.c.h.b16 %v3645
    %v5122 = vunpack.c.l.b16 %v3646
    %v5123 = vunpack.c.h.b16 %v3646
    %v5124 = vunpack.c.l.b16 %v3647
    %v5125 = vunpack.c.h.b16 %v3647
    %v5126 = vunpack.c.l.b16 %v3648
    %v5127 = vunpack.c.h.b16 %v3648
    %v5128 = vunpack.c.l.b16 %v3649
    %v5129 = vunpack.c.h.b16 %v3649
    %v5130 = vunpack.c.l.b16 %v3650
    %v5131 = vunpack.c.h.b16 %v3650
    %v5132 = vunpack.c.l.b16 %v3651
    %v5133 = vunpack.c.h.b16 %v3651
    %v5134 = vunpack.c.l.b16 %v3652
    %v5135 = vunpack.c.h.b16 %v3652
    %v5136 = vunpack.c.l.b16 %v3653
    %v5137 = vunpack.c.h.b16 %v3653
    %v5138 = vunpack.c.l.b16 %v3654
    %v5139 = vunpack.c.h.b16 %v3654
    %v5140 = vunpack.c.l.b16 %v3655
    %v5141 = vunpack.c.h.b16 %v3655
    %v5142 = vunpack.c.l.b16 %v3656
    %v5143 = vunpack.c.h.b16 %v3656
    %v5144 = vunpack.c.l.b16 %v3657
    %v5145 = vunpack.c.h.b16 %v3657
    %v5146 = vunpack.c.l.b16 %v3658
    %v5147 = vunpack.c.h.b16 %v3658
    %v5148 = vunpack.c.l.b16 %v3659
    %v5149 = vunpack.c.h.b16 %v3659
    %v5150 = vunpack.c.l.b16 %v3660
    %v5151 = vunpack.c.h.b16 %v3660
    %v5152 = vunpack.c.l.b16 %v3661
    %v5153 = vunpack.c.h.b16 %v3661
    %v5154 = vunpack.c.l.b16 %v3662
    %v5155 = vunpack.c.h.b16 %v3662
    %v5156 = vunpack.c.l.b16 %v3663
    %v5157 = vunpack.c.h.b16 %v3663
    %v5158 = vunpack.c.l.b16 %v3664
    %v5159 = vunpack.c.h.b16 %v3664
    %v5160 = vunpack.c.l.b16 %v3665
    %v5161 = vunpack.c.h.b16 %v3665
    %v5162 = vunpack.c.l.b16 %v3666
    %v5163 = vunpack.c.h.b16 %v3666
    %v5164 = vunpack.c.l.b16 %v3667
    %v5165 = vunpack.c.h.b16 %v3667
    %v5166 = vunpack.c.l.b16 %v3668
    %v5167 = vunpack.c.h.b16 %v3668
    %v5168 = vunpack.c.l.b16 %v3669
    %v5169 = vunpack.c.h.b16 %v3669
    %v5170 = vunpack.c.l.b16 %v3670
    %v5171 = vunpack.c.h.b16 %v3670
    %v5172 = vunpack.c.l.b16 %v3671
    %v5173 = vunpack.c.h.b16 %v3671
    %v5174 = vunpack.c.l.b16 %v3672
    %v5175 = vunpack.c.h.b16 %v3672
    %v5176 = vunpack.c.l.b16 %v3673
    %v5177 = vunpack.c.h.b16 %v3673
    %v5178 = vunpack.c.l.b16 %v3674
    %v5179 = vunpack.c.h.b16 %v3674
    %v5180 = vunpack.c.l.b16 %v3675
    %v5181 = vunpack.c.h.b16 %v3675
    %v5182 = vunpack.c.l.b16 %v3676
    %v5183 = vunpack.c.h.b16 %v3676
    %v5184 = vunpack.c.l.b16 %v3677
    %v5185 = vunpack.c.h.b16 %v3677
    %v5186 = vunpack.c.l.b16 %v3678
    %v5187 = vunpack.c.h.b16 %v3678
    %v5188 = vunpack.c.l.b16 %v3679
    %v5189 = vunpack.c.h.b16 %v3679
    %v5190 = vunpack.c.l.b16 %v3680
    %v5191 = vunpack.c.h.b16 %v3680
    %v5192 = vunpack.c.l.b16 %v3681
    %v5193 = vunpack.c.h.b16 %v3681
    %v5194 = vunpack.c.l.b16 %v3682
    %v5195 = vunpack.c.h.b16 %v3682
    %v5196 = vunpack.c.l.b16 %v3683
    %v5197 = vunpack.c.h.b16 %v3683
    %v5198 = vunpack.c.l.b16 %v3684
    %v5199 = vunpack.c.h.b16 %v3684
    %v5200 = vunpack.c.l.b16 %v3685
    %v5201 = vunpack.c.h.b16 %v3685
    %v5202 = vunpack.c.l.b16 %v3686
    %v5203 = vunpack.c.h.b16 %v3686
    %v5204 = vunpack.c.l.b16 %v3687
    %v5205 = vunpack.c.h.b16 %v3687
    %v5206 = vunpack.c.l.b16 %v3688
    %v5207 = vunpack.c.h.b16 %v3688
    %v5208 = vunpack.c.l.b16 %v3689
    %v5209 = vunpack.c.h.b16 %v3689
    %v5210 = vunpack.c.l.b16 %v3690
    %v5211 = vunpack.c.h.b16 %v3690
    %v5212 = vunpack.c.l.b16 %v3691
    %v5213 = vunpack.c.h.b16 %v3691
    %v5214 = vunpack.c.l.b16 %v3692
    %v5215 = vunpack.c.h.b16 %v3692
    %v5216 = vunpack.c.l.b16 %v3693
    %v5217 = vunpack.c.h.b16 %v3693
    %v5218 = vunpack.c.l.b16 %v3694
    %v5219 = vunpack.c.h.b16 %v3694
    %v5220 = vunpack.c.l.b16 %v3695
    %v5221 = vunpack.c.h.b16 %v3695
    %v5222 = vunpack.c.l.b16 %v3696
    %v5223 = vunpack.c.h.b16 %v3696
    %v5224 = vunpack.c.l.b16 %v3697
    %v5225 = vunpack.c.h.b16 %v3697
    %v5226 = vunpack.c.l.b16 %v3698
    %v5227 = vunpack.c.h.b16 %v3698
    %v5228 = vunpack.c.l.b16 %v3699
    %v5229 = vunpack.c.h.b16 %v3699
    %v5230 = vunpack.c.l.b16 %v3700
    %v5231 = vunpack.c.h.b16 %v3700
    %v5232 = vunpack.c.l.b16 %v3701
    %v5233 = vunpack.c.h.b16 %v3701
    %v5234 = vunpack.c.l.b16 %v3702
    %v5235 = vunpack.c.h.b16 %v3702
    %v5236 = vunpack.c.l.b16 %v3703
    %v5237 = vunpack.c.h.b16 %v3703
    %v5238 = vunpack.c.l.b16 %v3704
    %v5239 = vunpack.c.h.b16 %v3704
    %v5240 = vunpack.c.l.b16 %v3705
    %v5241 = vunpack.c.h.b16 %v3705
    %v5242 = vunpack.c.l.b16 %v3706
    %v5243 = vunpack.c.h.b16 %v3706
    %v5244 = vunpack.c.l.b16 %v3707
    %v5245 = vunpack.c.h.b16 %v3707
    %v5246 = vunpack.c.l.b16 %v3708
    %v5247 = vunpack.c.h.b16 %v3708
    %v5248 = vunpack.c.l.b16 %v3709
    %v5249 = vunpack.c.h.b16 %v3709
    %v5250 = vunpack.c.l.b16 %v3710
    %v5251 = vunpack.c.h.b16 %v3710
    %v5252 = vunpack.c.l.b16 %v3711
    %v5253 = vunpack.c.h.b16 %v3711
    %v5254 = vunpack.c.l.b16 %v3712
    %v5255 = vunpack.c.h.b16 %v3712
    %v5256 = vunpack.c.l.b16 %v3713
    %v5257 = vunpack.c.h.b16 %v3713
    %v5258 = vunpack.c.l.b16 %v3714
    %v5259 = vunpack.c.h.b16 %v3714
    %v5260 = vunpack.c.l.b16 %v3715
    %v5261 = vunpack.c.h.b16 %v3715
    %v5262 = vunpack.c.l.b16 %v3716
    %v5263 = vunpack.c.h.b16 %v3716
    %v5264 = vunpack.c.l.b16 %v3717
    %v5265 = vunpack.c.h.b16 %v3717
    %v5266 = vunpack.c.l.b16 %v3718
    %v5267 = vunpack.c.h.b16 %v3718
    %v5268 = vunpack.c.l.b16 %v3719
    %v5269 = vunpack.c.h.b16 %v3719
    %v5270 = vunpack.c.l.b16 %v3720
    %v5271 = vunpack.c.h.b16 %v3720
    %v5272 = vunpack.c.l.b16 %v3721
    %v5273 = vunpack.c.h.b16 %v3721
    %v5274 = vunpack.c.l.b16 %v3722
    %v5275 = vunpack.c.h.b16 %v3722
    %v5276 = vunpack.c.l.b16 %v3723
    %v5277 = vunpack.c.h.b16 %v3723
    %v5278 = vunpack.c.l.b16 %v3724
    %v5279 = vunpack.c.h.b16 %v3724
    %v5280 = vunpack.c.l.b16 %v3725
    %v5281 = vunpack.c.h.b16 %v3725
    %v5282 = vunpack.c.l.b16 %v3726
    %v5283 = vunpack.c.h.b16 %v3726
    %v5284 = vunpack.c.l.b16 %v3727
    %v5285 = vunpack.c.h.b16 %v3727
    %v5286 = vunpack.c.l.b16 %v3728
    %v5287 = vunpack.c.h.b16 %v3728
    %v5288 = vunpack.c.l.b16 %v3729
    %v5289 = vunpack.c.h.b16 %v3729
    %v5290 = vunpack.c.l.b16 %v3730
    %v5291 = vunpack.c.h.b16 %v3730
    %v5292 = vunpack.c.l.b16 %v3731
    %v5293 = vunpack.c.h.b16 %v3731
    %v5294 = vunpack.c.l.b16 %v3732
    %v5295 = vunpack.c.h.b16 %v3732
    %v5296 = vunpack.c.l.b16 %v3733
    %v5297 = vunpack.c.h.b16 %v3733
    %v5298 = vunpack.c.l.b16 %v3734
    %v5299 = vunpack.c.h.b16 %v3734
    %v5300 = vunpack.c.l.b16 %v3735
    %v5301 = vunpack.c.h.b16 %v3735
    %v5302 = vunpack.c.l.b16 %v3736
    %v5303 = vunpack.c.h.b16 %v3736
    %v5304 = vunpack.c.l.b16 %v3737
    %v5305 = vunpack.c.h.b16 %v3737
    %v5306 = vunpack.c.l.b16 %v3738
    %v5307 = vunpack.c.h.b16 %v3738
    %v5308 = vunpack.c.l.b16 %v3739
    %v5309 = vunpack.c.h.b16 %v3739
    %v5310 = vunpack.c.l.b16 %v3740
    %v5311 = vunpack.c.h.b16 %v3740
    %v5312 = vunpack.c.l.b16 %v3741
    %v5313 = vunpack.c.h.b16 %v3741
    %v5314 = vunpack.c.l.b16 %v3742
    %v5315 = vunpack.c.h.b16 %v3742
    %v5316 = vunpack.c.l.b16 %v3743
    %v5317 = vunpack.c.h.b16 %v3743
    %v5318 = vunpack.c.l.b16 %v3744
    %v5319 = vunpack.c.h.b16 %v3744
    %v5320 = vunpack.c.l.b16 %v3745
    %v5321 = vunpack.c.h.b16 %v3745
    %v5322 = vunpack.c.l.b16 %v3746
    %v5323 = vunpack.c.h.b16 %v3746
    %v5324 = vunpack.c.l.b16 %v3747
    %v5325 = vunpack.c.h.b16 %v3747
    %v5326 = vpack.c.b16 %v4310, %v4302
    %v5327 = vpack.c.b16 %v4311, %v4303
    %v5328 = vpack.c.b16 %v4312, %v4304
    %v5329 = vpack.c.b16 %v4313, %v4305
    %v5330 = vpack.c.b16 %v4314, %v4306
    %v5331 = vpack.c.b16 %v4315, %v4307
    %v5332 = vpack.c.b16 %v4316, %v4308
    %v5333 = vpack.c.b16 %v4317, %v4309
    %v5334 = vpack.c.b16 %v4326, %v4318
    %v5335 = vpack.c.b16 %v4327, %v4319
    %v5336 = vpack.c.b16 %v4328, %v4320
    %v5337 = vpack.c.b16 %v4329, %v4321
    %v5338 = vpack.c.b16 %v4330, %v4322
    %v5339 = vpack.c.b16 %v4331, %v4323
    %v5340 = vpack.c.b16 %v4332, %v4324
    %v5341 = vpack.c.b16 %v4333, %v4325
    %v5342 = vpack.c.b16 %v4342, %v4334
    %v5343 = vpack.c.b16 %v4343, %v4335
    %v5344 = vpack.c.b16 %v4344, %v4336
    %v5345 = vpack.c.b16 %v4345, %v4337
    %v5346 = vpack.c.b16 %v4346, %v4338
    %v5347 = vpack.c.b16 %v4347, %v4339
    %v5348 = vpack.c.b16 %v4348, %v4340
    %v5349 = vpack.c.b16 %v4349, %v4341
    %v5350 = vpack.c.b16 %v4358, %v4350
    %v5351 = vpack.c.b16 %v4359, %v4351
    %v5352 = vpack.c.b16 %v4360, %v4352
    %v5353 = vpack.c.b16 %v4361, %v4353
    %v5354 = vpack.c.b16 %v4362, %v4354
    %v5355 = vpack.c.b16 %v4363, %v4355
    %v5356 = vpack.c.b16 %v4364, %v4356
    %v5357 = vpack.c.b16 %v4365, %v4357
    %v5358 = vpack.c.b16 %v4374, %v4366
    %v5359 = vpack.c.b16 %v4375, %v4367
    %v5360 = vpack.c.b16 %v4376, %v4368
    %v5361 = vpack.c.b16 %v4377, %v4369
    %v5362 = vpack.c.b16 %v4378, %v4370
    %v5363 = vpack.c.b16 %v4379, %v4371
    %v5364 = vpack.c.b16 %v4380, %v4372
    %v5365 = vpack.c.b16 %v4381, %v4373
    %v5366 = vpack.c.b16 %v4390, %v4382
    %v5367 = vpack.c.b16 %v4391, %v4383
    %v5368 = vpack.c.b16 %v4392, %v4384
    %v5369 = vpack.c.b16 %v4393, %v4385
    %v5370 = vpack.c.b16 %v4394, %v4386
    %v5371 = vpack.c.b16 %v4395, %v4387
    %v5372 = vpack.c.b16 %v4396, %v4388
    %v5373 = vpack.c.b16 %v4397, %v4389
    %v5374 = vpack.c.b16 %v4406, %v4398
    %v5375 = vpack.c.b16 %v4407, %v4399
    %v5376 = vpack.c.b16 %v4408, %v4400
    %v5377 = vpack.c.b16 %v4409, %v4401
    %v5378 = vpack.c.b16 %v4410, %v4402
    %v5379 = vpack.c.b16 %v4411, %v4403
    %v5380 = vpack.c.b16 %v4412, %v4404
    %v5381 = vpack.c.b16 %v4413, %v4405
    %v5382 = vpack.c.b16 %v4422, %v4414
    %v5383 = vpack.c.b16 %v4423, %v4415
    %v5384 = vpack.c.b16 %v4424, %v4416
    %v5385 = vpack.c.b16 %v4425, %v4417
    %v5386 = vpack.c.b16 %v4426, %v4418
    %v5387 = vpack.c.b16 %v4427, %v4419
    %v5388 = vpack.c.b16 %v4428, %v4420
    %v5389 = vpack.c.b16 %v4429, %v4421
    %v5390 = vpack.c.b16 %v4438, %v4430
    %v5391 = vpack.c.b16 %v4439, %v4431
    %v5392 = vpack.c.b16 %v4440, %v4432
    %v5393 = vpack.c.b16 %v4441, %v4433
    %v5394 = vpack.c.b16 %v4442, %v4434
    %v5395 = vpack.c.b16 %v4443, %v4435
    %v5396 = vpack.c.b16 %v4444, %v4436
    %v5397 = vpack.c.b16 %v4445, %v4437
    %v5398 = vpack.c.b16 %v4454, %v4446
    %v5399 = vpack.c.b16 %v4455, %v4447
    %v5400 = vpack.c.b16 %v4456, %v4448
    %v5401 = vpack.c.b16 %v4457, %v4449
    %v5402 = vpack.c.b16 %v4458, %v4450
    %v5403 = vpack.c.b16 %v4459, %v4451
    %v5404 = vpack.c.b16 %v4460, %v4452
    %v5405 = vpack.c.b16 %v4461, %v4453
    %v5406 = vpack.c.b16 %v4470, %v4462
    %v5407 = vpack.c.b16 %v4471, %v4463
    %v5408 = vpack.c.b16 %v4472, %v4464
    %v5409 = vpack.c.b16 %v4473, %v4465
    %v5410 = vpack.c.b16 %v4474, %v4466
    %v5411 = vpack.c.b16 %v4475, %v4467
    %v5412 = vpack.c.b16 %v4476, %v4468
    %v5413 = vpack.c.b16 %v4477, %v4469
    %v5414 = vpack.c.b16 %v4486, %v4478
    %v5415 = vpack.c.b16 %v4487, %v4479
    %v5416 = vpack.c.b16 %v4488, %v4480
    %v5417 = vpack.c.b16 %v4489, %v4481
    %v5418 = vpack.c.b16 %v4490, %v4482
    %v5419 = vpack.c.b16 %v4491, %v4483
    %v5420 = vpack.c.b16 %v4492, %v4484
    %v5421 = vpack.c.b16 %v4493, %v4485
    %v5422 = vpack.c.b16 %v4502, %v4494
    %v5423 = vpack.c.b16 %v4503, %v4495
    %v5424 = vpack.c.b16 %v4504, %v4496
    %v5425 = vpack.c.b16 %v4505, %v4497
    %v5426 = vpack.c.b16 %v4506, %v4498
    %v5427 = vpack.c.b16 %v4507, %v4499
    %v5428 = vpack.c.b16 %v4508, %v4500
    %v5429 = vpack.c.b16 %v4509, %v4501
    %v5430 = vpack.c.b16 %v4518, %v4510
    %v5431 = vpack.c.b16 %v4519, %v4511
    %v5432 = vpack.c.b16 %v4520, %v4512
    %v5433 = vpack.c.b16 %v4521, %v4513
    %v5434 = vpack.c.b16 %v4522, %v4514
    %v5435 = vpack.c.b16 %v4523, %v4515
    %v5436 = vpack.c.b16 %v4524, %v4516
    %v5437 = vpack.c.b16 %v4525, %v4517
    %v5438 = vpack.c.b16 %v4534, %v4526
    %v5439 = vpack.c.b16 %v4535, %v4527
    %v5440 = vpack.c.b16 %v4536, %v4528
    %v5441 = vpack.c.b16 %v4537, %v4529
    %v5442 = vpack.c.b16 %v4538, %v4530
    %v5443 = vpack.c.b16 %v4539, %v4531
    %v5444 = vpack.c.b16 %v4540, %v4532
    %v5445 = vpack.c.b16 %v4541, %v4533
    %v5446 = vpack.c.b16 %v4550, %v4542
    %v5447 = vpack.c.b16 %v4551, %v4543
    %v5448 = vpack.c.b16 %v4552, %v4544
    %v5449 = vpack.c.b16 %v4553, %v4545
    %v5450 = vpack.c.b16 %v4554, %v4546
    %v5451 = vpack.c.b16 %v4555, %v4547
    %v5452 = vpack.c.b16 %v4556, %v4548
    %v5453 = vpack.c.b16 %v4557, %v4549
    %v5454 = vpack.c.b16 %v4566, %v4558
    %v5455 = vpack.c.b16 %v4567, %v4559
    %v5456 = vpack.c.b16 %v4568, %v4560
    %v5457 = vpack.c.b16 %v4569, %v4561
    %v5458 = vpack.c.b16 %v4570, %v4562
    %v5459 = vpack.c.b16 %v4571, %v4563
    %v5460 = vpack.c.b16 %v4572, %v4564
    %v5461 = vpack.c.b16 %v4573, %v4565
    %v5462 = vpack.c.b16 %v4582, %v4574
    %v5463 = vpack.c.b16 %v4583, %v4575
    %v5464 = vpack.c.b16 %v4584, %v4576
    %v5465 = vpack.c.b16 %v4585, %v4577
    %v5466 = vpack.c.b16 %v4586, %v4578
    %v5467 = vpack.c.b16 %v4587, %v4579
    %v5468 = vpack.c.b16 %v4588, %v4580
    %v5469 = vpack.c.b16 %v4589, %v4581
    %v5470 = vpack.c.b16 %v4598, %v4590
    %v5471 = vpack.c.b16 %v4599, %v4591
    %v5472 = vpack.c.b16 %v4600, %v4592
    %v5473 = vpack.c.b16 %v4601, %v4593
    %v5474 = vpack.c.b16 %v4602, %v4594
    %v5475 = vpack.c.b16 %v4603, %v4595
    %v5476 = vpack.c.b16 %v4604, %v4596
    %v5477 = vpack.c.b16 %v4605, %v4597
    %v5478 = vpack.c.b16 %v4614, %v4606
    %v5479 = vpack.c.b16 %v4615, %v4607
    %v5480 = vpack.c.b16 %v4616, %v4608
    %v5481 = vpack.c.b16 %v4617, %v4609
    %v5482 = vpack.c.b16 %v4618, %v4610
    %v5483 = vpack.c.b16 %v4619, %v4611
    %v5484 = vpack.c.b16 %v4620, %v4612
    %v5485 = vpack.c.b16 %v4621, %v4613
    %v5486 = vpack.c.b16 %v4630, %v4622
    %v5487 = vpack.c.b16 %v4631, %v4623
    %v5488 = vpack.c.b16 %v4632, %v4624
    %v5489 = vpack.c.b16 %v4633, %v4625
    %v5490 = vpack.c.b16 %v4634, %v4626
    %v5491 = vpack.c.b16 %v4635, %v4627
    %v5492 = vpack.c.b16 %v4636, %v4628
    %v5493 = vpack.c.b16 %v4637, %v4629
    %v5494 = vpack.c.b16 %v4646, %v4638
    %v5495 = vpack.c.b16 %v4647, %v4639
    %v5496 = vpack.c.b16 %v4648, %v4640
    %v5497 = vpack.c.b16 %v4649, %v4641
    %v5498 = vpack.c.b16 %v4650, %v4642
    %v5499 = vpack.c.b16 %v4651, %v4643
    %v5500 = vpack.c.b16 %v4652, %v4644
    %v5501 = vpack.c.b16 %v4653, %v4645
    %v5502 = vpack.c.b16 %v4662, %v4654
    %v5503 = vpack.c.b16 %v4663, %v4655
    %v5504 = vpack.c.b16 %v4664, %v4656
    %v5505 = vpack.c.b16 %v4665, %v4657
    %v5506 = vpack.c.b16 %v4666, %v4658
    %v5507 = vpack.c.b16 %v4667, %v4659
    %v5508 = vpack.c.b16 %v4668, %v4660
    %v5509 = vpack.c.b16 %v4669, %v4661
    %v5510 = vpack.c.b16 %v4678, %v4670
    %v5511 = vpack.c.b16 %v4679, %v4671
    %v5512 = vpack.c.b16 %v4680, %v4672
    %v5513 = vpack.c.b16 %v4681, %v4673
    %v5514 = vpack.c.b16 %v4682, %v4674
    %v5515 = vpack.c.b16 %v4683, %v4675
    %v5516 = vpack.c.b16 %v4684, %v4676
    %v5517 = vpack.c.b16 %v4685, %v4677
    %v5518 = vpack.c.b16 %v4694, %v4686
    %v5519 = vpack.c.b16 %v4695, %v4687
    %v5520 = vpack.c.b16 %v4696, %v4688
    %v5521 = vpack.c.b16 %v4697, %v4689
    %v5522 = vpack.c.b16 %v4698, %v4690
    %v5523 = vpack.c.b16 %v4699, %v4691
    %v5524 = vpack.c.b16 %v4700, %v4692
    %v5525 = vpack.c.b16 %v4701, %v4693
    %v5526 = vpack.c.b16 %v4710, %v4702
    %v5527 = vpack.c.b16 %v4711, %v4703
    %v5528 = vpack.c.b16 %v4712, %v4704
    %v5529 = vpack.c.b16 %v4713, %v4705
    %v5530 = vpack.c.b16 %v4714, %v4706
    %v5531 = vpack.c.b16 %v4715, %v4707
    %v5532 = vpack.c.b16 %v4716, %v4708
    %v5533 = vpack.c.b16 %v4717, %v4709
    %v5534 = vpack.c.b16 %v4726, %v4718
    %v5535 = vpack.c.b16 %v4727, %v4719
    %v5536 = vpack.c.b16 %v4728, %v4720
    %v5537 = vpack.c.b16 %v4729, %v4721
    %v5538 = vpack.c.b16 %v4730, %v4722
    %v5539 = vpack.c.b16 %v4731, %v4723
    %v5540 = vpack.c.b16 %v4732, %v4724
    %v5541 = vpack.c.b16 %v4733, %v4725
    %v5542 = vpack.c.b16 %v4742, %v4734
    %v5543 = vpack.c.b16 %v4743, %v4735
    %v5544 = vpack.c.b16 %v4744, %v4736
    %v5545 = vpack.c.b16 %v4745, %v4737
    %v5546 = vpack.c.b16 %v4746, %v4738
    %v5547 = vpack.c.b16 %v4747, %v4739
    %v5548 = vpack.c.b16 %v4748, %v4740
    %v5549 = vpack.c.b16 %v4749, %v4741
    %v5550 = vpack.c.b16 %v4758, %v4750
    %v5551 = vpack.c.b16 %v4759, %v4751
    %v5552 = vpack.c.b16 %v4760, %v4752
    %v5553 = vpack.c.b16 %v4761, %v4753
    %v5554 = vpack.c.b16 %v4762, %v4754
    %v5555 = vpack.c.b16 %v4763, %v4755
    %v5556 = vpack.c.b16 %v4764, %v4756
    %v5557 = vpack.c.b16 %v4765, %v4757
    %v5558 = vpack.c.b16 %v4774, %v4766
    %v5559 = vpack.c.b16 %v4775, %v4767
    %v5560 = vpack.c.b16 %v4776, %v4768
    %v5561 = vpack.c.b16 %v4777, %v4769
    %v5562 = vpack.c.b16 %v4778, %v4770
    %v5563 = vpack.c.b16 %v4779, %v4771
    %v5564 = vpack.c.b16 %v4780, %v4772
    %v5565 = vpack.c.b16 %v4781, %v4773
    %v5566 = vpack.c.b16 %v4790, %v4782
    %v5567 = vpack.c.b16 %v4791, %v4783
    %v5568 = vpack.c.b16 %v4792, %v4784
    %v5569 = vpack.c.b16 %v4793, %v4785
    %v5570 = vpack.c.b16 %v4794, %v4786
    %v5571 = vpack.c.b16 %v4795, %v4787
    %v5572 = vpack.c.b16 %v4796, %v4788
    %v5573 = vpack.c.b16 %v4797, %v4789
    %v5574 = vpack.c.b16 %v4806, %v4798
    %v5575 = vpack.c.b16 %v4807, %v4799
    %v5576 = vpack.c.b16 %v4808, %v4800
    %v5577 = vpack.c.b16 %v4809, %v4801
    %v5578 = vpack.c.b16 %v4810, %v4802
    %v5579 = vpack.c.b16 %v4811, %v4803
    %v5580 = vpack.c.b16 %v4812, %v4804
    %v5581 = vpack.c.b16 %v4813, %v4805
    %v5582 = vpack.c.b16 %v4822, %v4814
    %v5583 = vpack.c.b16 %v4823, %v4815
    %v5584 = vpack.c.b16 %v4824, %v4816
    %v5585 = vpack.c.b16 %v4825, %v4817
    %v5586 = vpack.c.b16 %v4826, %v4818
    %v5587 = vpack.c.b16 %v4827, %v4819
    %v5588 = vpack.c.b16 %v4828, %v4820
    %v5589 = vpack.c.b16 %v4829, %v4821
    %v5590 = vpack.c.b16 %v4838, %v4830
    %v5591 = vpack.c.b16 %v4839, %v4831
    %v5592 = vpack.c.b16 %v4840, %v4832
    %v5593 = vpack.c.b16 %v4841, %v4833
    %v5594 = vpack.c.b16 %v4842, %v4834
    %v5595 = vpack.c.b16 %v4843, %v4835
    %v5596 = vpack.c.b16 %v4844, %v4836
    %v5597 = vpack.c.b16 %v4845, %v4837
    %v5598 = vpack.c.b16 %v4854, %v4846
    %v5599 = vpack.c.b16 %v4855, %v4847
    %v5600 = vpack.c.b16 %v4856, %v4848
    %v5601 = vpack.c.b16 %v4857, %v4849
    %v5602 = vpack.c.b16 %v4858, %v4850
    %v5603 = vpack.c.b16 %v4859, %v4851
    %v5604 = vpack.c.b16 %v4860, %v4852
    %v5605 = vpack.c.b16 %v4861, %v4853
    %v5606 = vpack.c.b16 %v4870, %v4862
    %v5607 = vpack.c.b16 %v4871, %v4863
    %v5608 = vpack.c.b16 %v4872, %v4864
    %v5609 = vpack.c.b16 %v4873, %v4865
    %v5610 = vpack.c.b16 %v4874, %v4866
    %v5611 = vpack.c.b16 %v4875, %v4867
    %v5612 = vpack.c.b16 %v4876, %v4868
    %v5613 = vpack.c.b16 %v4877, %v4869
    %v5614 = vpack.c.b16 %v4886, %v4878
    %v5615 = vpack.c.b16 %v4887, %v4879
    %v5616 = vpack.c.b16 %v4888, %v4880
    %v5617 = vpack.c.b16 %v4889, %v4881
    %v5618 = vpack.c.b16 %v4890, %v4882
    %v5619 = vpack.c.b16 %v4891, %v4883
    %v5620 = vpack.c.b16 %v4892, %v4884
    %v5621 = vpack.c.b16 %v4893, %v4885
    %v5622 = vpack.c.b16 %v4902, %v4894
    %v5623 = vpack.c.b16 %v4903, %v4895
    %v5624 = vpack.c.b16 %v4904, %v4896
    %v5625 = vpack.c.b16 %v4905, %v4897
    %v5626 = vpack.c.b16 %v4906, %v4898
    %v5627 = vpack.c.b16 %v4907, %v4899
    %v5628 = vpack.c.b16 %v4908, %v4900
    %v5629 = vpack.c.b16 %v4909, %v4901
    %v5630 = vpack.c.b16 %v4918, %v4910
    %v5631 = vpack.c.b16 %v4919, %v4911
    %v5632 = vpack.c.b16 %v4920, %v4912
    %v5633 = vpack.c.b16 %v4921, %v4913
    %v5634 = vpack.c.b16 %v4922, %v4914
    %v5635 = vpack.c.b16 %v4923, %v4915
    %v5636 = vpack.c.b16 %v4924, %v4916
    %v5637 = vpack.c.b16 %v4925, %v4917
    %v5638 = vpack.c.b16 %v4934, %v4926
    %v5639 = vpack.c.b16 %v4935, %v4927
    %v5640 = vpack.c.b16 %v4936, %v4928
    %v5641 = vpack.c.b16 %v4937, %v4929
    %v5642 = vpack.c.b16 %v4938, %v4930
    %v5643 = vpack.c.b16 %v4939, %v4931
    %v5644 = vpack.c.b16 %v4940, %v4932
    %v5645 = vpack.c.b16 %v4941, %v4933
    %v5646 = vpack.c.b16 %v4950, %v4942
    %v5647 = vpack.c.b16 %v4951, %v4943
    %v5648 = vpack.c.b16 %v4952, %v4944
    %v5649 = vpack.c.b16 %v4953, %v4945
    %v5650 = vpack.c.b16 %v4954, %v4946
    %v5651 = vpack.c.b16 %v4955, %v4947
    %v5652 = vpack.c.b16 %v4956, %v4948
    %v5653 = vpack.c.b16 %v4957, %v4949
    %v5654 = vpack.c.b16 %v4966, %v4958
    %v5655 = vpack.c.b16 %v4967, %v4959
    %v5656 = vpack.c.b16 %v4968, %v4960
    %v5657 = vpack.c.b16 %v4969, %v4961
    %v5658 = vpack.c.b16 %v4970, %v4962
    %v5659 = vpack.c.b16 %v4971, %v4963
    %v5660 = vpack.c.b16 %v4972, %v4964
    %v5661 = vpack.c.b16 %v4973, %v4965
    %v5662 = vpack.c.b16 %v4982, %v4974
    %v5663 = vpack.c.b16 %v4983, %v4975
    %v5664 = vpack.c.b16 %v4984, %v4976
    %v5665 = vpack.c.b16 %v4985, %v4977
    %v5666 = vpack.c.b16 %v4986, %v4978
    %v5667 = vpack.c.b16 %v4987, %v4979
    %v5668 = vpack.c.b16 %v4988, %v4980
    %v5669 = vpack.c.b16 %v4989, %v4981
    %v5670 = vpack.c.b16 %v4998, %v4990
    %v5671 = vpack.c.b16 %v4999, %v4991
    %v5672 = vpack.c.b16 %v5000, %v4992
    %v5673 = vpack.c.b16 %v5001, %v4993
    %v5674 = vpack.c.b16 %v5002, %v4994
    %v5675 = vpack.c.b16 %v5003, %v4995
    %v5676 = vpack.c.b16 %v5004, %v4996
    %v5677 = vpack.c.b16 %v5005, %v4997
    %v5678 = vpack.c.b16 %v5014, %v5006
    %v5679 = vpack.c.b16 %v5015, %v5007
    %v5680 = vpack.c.b16 %v5016, %v5008
    %v5681 = vpack.c.b16 %v5017, %v5009
    %v5682 = vpack.c.b16 %v5018, %v5010
    %v5683 = vpack.c.b16 %v5019, %v5011
    %v5684 = vpack.c.b16 %v5020, %v5012
    %v5685 = vpack.c.b16 %v5021, %v5013
    %v5686 = vpack.c.b16 %v5030, %v5022
    %v5687 = vpack.c.b16 %v5031, %v5023
    %v5688 = vpack.c.b16 %v5032, %v5024
    %v5689 = vpack.c.b16 %v5033, %v5025
    %v5690 = vpack.c.b16 %v5034, %v5026
    %v5691 = vpack.c.b16 %v5035, %v5027
    %v5692 = vpack.c.b16 %v5036, %v5028
    %v5693 = vpack.c.b16 %v5037, %v5029
    %v5694 = vpack.c.b16 %v5046, %v5038
    %v5695 = vpack.c.b16 %v5047, %v5039
    %v5696 = vpack.c.b16 %v5048, %v5040
    %v5697 = vpack.c.b16 %v5049, %v5041
    %v5698 = vpack.c.b16 %v5050, %v5042
    %v5699 = vpack.c.b16 %v5051, %v5043
    %v5700 = vpack.c.b16 %v5052, %v5044
    %v5701 = vpack.c.b16 %v5053, %v5045
    %v5702 = vpack.c.b16 %v5062, %v5054
    %v5703 = vpack.c.b16 %v5063, %v5055
    %v5704 = vpack.c.b16 %v5064, %v5056
    %v5705 = vpack.c.b16 %v5065, %v5057
    %v5706 = vpack.c.b16 %v5066, %v5058
    %v5707 = vpack.c.b16 %v5067, %v5059
    %v5708 = vpack.c.b16 %v5068, %v5060
    %v5709 = vpack.c.b16 %v5069, %v5061
    %v5710 = vpack.c.b16 %v5078, %v5070
    %v5711 = vpack.c.b16 %v5079, %v5071
    %v5712 = vpack.c.b16 %v5080, %v5072
    %v5713 = vpack.c.b16 %v5081, %v5073
    %v5714 = vpack.c.b16 %v5082, %v5074
    %v5715 = vpack.c.b16 %v5083, %v5075
    %v5716 = vpack.c.b16 %v5084, %v5076
    %v5717 = vpack.c.b16 %v5085, %v5077
    %v5718 = vpack.c.b16 %v5094, %v5086
    %v5719 = vpack.c.b16 %v5095, %v5087
    %v5720 = vpack.c.b16 %v5096, %v5088
    %v5721 = vpack.c.b16 %v5097, %v5089
    %v5722 = vpack.c.b16 %v5098, %v5090
    %v5723 = vpack.c.b16 %v5099, %v5091
    %v5724 = vpack.c.b16 %v5100, %v5092
    %v5725 = vpack.c.b16 %v5101, %v5093
    %v5726 = vpack.c.b16 %v5110, %v5102
    %v5727 = vpack.c.b16 %v5111, %v5103
    %v5728 = vpack.c.b16 %v5112, %v5104
    %v5729 = vpack.c.b16 %v5113, %v5105
    %v5730 = vpack.c.b16 %v5114, %v5106
    %v5731 = vpack.c.b16 %v5115, %v5107
    %v5732 = vpack.c.b16 %v5116, %v5108
    %v5733 = vpack.c.b16 %v5117, %v5109
    %v5734 = vpack.c.b16 %v5126, %v5118
    %v5735 = vpack.c.b16 %v5127, %v5119
    %v5736 = vpack.c.b16 %v5128, %v5120
    %v5737 = vpack.c.b16 %v5129, %v5121
    %v5738 = vpack.c.b16 %v5130, %v5122
    %v5739 = vpack.c.b16 %v5131, %v5123
    %v5740 = vpack.c.b16 %v5132, %v5124
    %v5741 = vpack.c.b16 %v5133, %v5125
    %v5742 = vpack.c.b16 %v5142, %v5134
    %v5743 = vpack.c.b16 %v5143, %v5135
    %v5744 = vpack.c.b16 %v5144, %v5136
    %v5745 = vpack.c.b16 %v5145, %v5137
    %v5746 = vpack.c.b16 %v5146, %v5138
    %v5747 = vpack.c.b16 %v5147, %v5139
    %v5748 = vpack.c.b16 %v5148, %v5140
    %v5749 = vpack.c.b16 %v5149, %v5141
    %v5750 = vpack.c.b16 %v5158, %v5150
    %v5751 = vpack.c.b16 %v5159, %v5151
    %v5752 = vpack.c.b16 %v5160, %v5152
    %v5753 = vpack.c.b16 %v5161, %v5153
    %v5754 = vpack.c.b16 %v5162, %v5154
    %v5755 = vpack.c.b16 %v5163, %v5155
    %v5756 = vpack.c.b16 %v5164, %v5156
    %v5757 = vpack.c.b16 %v5165, %v5157
    %v5758 = vpack.c.b16 %v5174, %v5166
    %v5759 = vpack.c.b16 %v5175, %v5167
    %v5760 = vpack.c.b16 %v5176, %v5168
    %v5761 = vpack.c.b16 %v5177, %v5169
    %v5762 = vpack.c.b16 %v5178, %v5170
    %v5763 = vpack.c.b16 %v5179, %v5171
    %v5764 = vpack.c.b16 %v5180, %v5172
    %v5765 = vpack.c.b16 %v5181, %v5173
    %v5766 = vpack.c.b16 %v5190, %v5182
    %v5767 = vpack.c.b16 %v5191, %v5183
    %v5768 = vpack.c.b16 %v5192, %v5184
    %v5769 = vpack.c.b16 %v5193, %v5185
    %v5770 = vpack.c.b16 %v5194, %v5186
    %v5771 = vpack.c.b16 %v5195, %v5187
    %v5772 = vpack.c.b16 %v5196, %v5188
    %v5773 = vpack.c.b16 %v5197, %v5189
    %v5774 = vpack.c.b16 %v5206, %v5198
    %v5775 = vpack.c.b16 %v5207, %v5199
    %v5776 = vpack.c.b16 %v5208, %v5200
    %v5777 = vpack.c.b16 %v5209, %v5201
    %v5778 = vpack.c.b16 %v5210, %v5202
    %v5779 = vpack.c.b16 %v5211, %v5203
    %v5780 = vpack.c.b16 %v5212, %v5204
    %v5781 = vpack.c.b16 %v5213, %v5205
    %v5782 = vpack.c.b16 %v5222, %v5214
    %v5783 = vpack.c.b16 %v5223, %v5215
    %v5784 = vpack.c.b16 %v5224, %v5216
    %v5785 = vpack.c.b16 %v5225, %v5217
    %v5786 = vpack.c.b16 %v5226, %v5218
    %v5787 = vpack.c.b16 %v5227, %v5219
    %v5788 = vpack.c.b16 %v5228, %v5220
    %v5789 = vpack.c.b16 %v5229, %v5221
    %v5790 = vpack.c.b16 %v5238, %v5230
    %v5791 = vpack.c.b16 %v5239, %v5231
    %v5792 = vpack.c.b16 %v5240, %v5232
    %v5793 = vpack.c.b16 %v5241, %v5233
    %v5794 = vpack.c.b16 %v5242, %v5234
    %v5795 = vpack.c.b16 %v5243, %v5235
    %v5796 = vpack.c.b16 %v5244, %v5236
    %v5797 = vpack.c.b16 %v5245, %v5237
    %v5798 = vpack.c.b16 %v5254, %v5246
    %v5799 = vpack.c.b16 %v5255, %v5247
    %v5800 = vpack.c.b16 %v5256, %v5248
    %v5801 = vpack.c.b16 %v5257, %v5249
    %v5802 = vpack.c.b16 %v5258, %v5250
    %v5803 = vpack.c.b16 %v5259, %v5251
    %v5804 = vpack.c.b16 %v5260, %v5252
    %v5805 = vpack.c.b16 %v5261, %v5253
    %v5806 = vpack.c.b16 %v5270, %v5262
    %v5807 = vpack.c.b16 %v5271, %v5263
    %v5808 = vpack.c.b16 %v5272, %v5264
    %v5809 = vpack.c.b16 %v5273, %v5265
    %v5810 = vpack.c.b16 %v5274, %v5266
    %v5811 = vpack.c.b16 %v5275, %v5267
    %v5812 = vpack.c.b16 %v5276, %v5268
    %v5813 = vpack.c.b16 %v5277, %v5269
    %v5814 = vpack.c.b16 %v5286, %v5278
    %v5815 = vpack.c.b16 %v5287, %v5279
    %v5816 = vpack.c.b16 %v5288, %v5280
    %v5817 = vpack.c.b16 %v5289, %v5281
    %v5818 = vpack.c.b16 %v5290, %v5282
    %v5819 = vpack.c.b16 %v5291, %v5283
    %v5820 = vpack.c.b16 %v5292, %v5284
    %v5821 = vpack.c.b16 %v5293, %v5285
    %v5822 = vpack.c.b16 %v5302, %v5294
    %v5823 = vpack.c.b16 %v5303, %v5295
    %v5824 = vpack.c.b16 %v5304, %v5296
    %v5825 = vpack.c.b16 %v5305, %v5297
    %v5826 = vpack.c.b16 %v5306, %v5298
    %v5827 = vpack.c.b16 %v5307, %v5299
    %v5828 = vpack.c.b16 %v5308, %v5300
    %v5829 = vpack.c.b16 %v5309, %v5301
    %v5830 = vpack.c.b16 %v5318, %v5310
    %v5831 = vpack.c.b16 %v5319, %v5311
    %v5832 = vpack.c.b16 %v5320, %v5312
    %v5833 = vpack.c.b16 %v5321, %v5313
    %v5834 = vpack.c.b16 %v5322, %v5314
    %v5835 = vpack.c.b16 %v5323, %v5315
    %v5836 = vpack.c.b16 %v5324, %v5316
    %v5837 = vpack.c.b16 %v5325, %v5317
    %6350 = vmatprep.subr.bf16.mxu0 %v5327
    %6351 = vmatpush1.bf16.msra.mxu0 %v5326
    %6352 = vmatprep.subr.bf16.mxu0 %v5335
    %6353 = vmatpush1.bf16.msra.mxu0 %v5334
    %6354 = vmatprep.subr.bf16.mxu0 %v5343
    %6355 = vmatpush1.bf16.msra.mxu0 %v5342
    %6356 = vmatprep.subr.bf16.mxu0 %v5351
    %6357 = vmatpush1.bf16.msra.mxu0 %v5350
    %6358 = vmatprep.subr.bf16.mxu0 %v5359
    %6359 = vmatpush1.bf16.msra.mxu0 %v5358
    %6360 = vmatprep.subr.bf16.mxu0 %v5367
    %6361 = vmatpush1.bf16.msra.mxu0 %v5366
    %6362 = vmatprep.subr.bf16.mxu0 %v5375
    %6363 = vmatpush1.bf16.msra.mxu0 %v5374
    %6364 = vmatprep.subr.bf16.mxu0 %v5383
    %6365 = vmatpush1.bf16.msra.mxu0 %v5382
    %6366 = vmatprep.subr.bf16.mxu0 %v5391
    %6367 = vmatpush1.bf16.msra.mxu0 %v5390
    %6368 = vmatprep.subr.bf16.mxu0 %v5399
    %6369 = vmatpush1.bf16.msra.mxu0 %v5398
    %6370 = vmatprep.subr.bf16.mxu0 %v5407
    %6371 = vmatpush1.bf16.msra.mxu0 %v5406
    %6372 = vmatprep.subr.bf16.mxu0 %v5415
    %6373 = vmatpush1.bf16.msra.mxu0 %v5414
    %6374 = vmatprep.subr.bf16.mxu0 %v5423
    %6375 = vmatpush1.bf16.msra.mxu0 %v5422
    %6376 = vmatprep.subr.bf16.mxu0 %v5431
    %6377 = vmatpush1.bf16.msra.mxu0 %v5430
    %6378 = vmatprep.subr.bf16.mxu0 %v5439
    %6379 = vmatpush1.bf16.msra.mxu0 %v5438
    %6380 = vmatprep.subr.bf16.mxu0 %v5447
    %6381 = vmatpush1.bf16.msra.mxu0 %v5446
    %6382 = vmatprep.mubr.bf16.mxu0 %v3229
    %6383 = vmatmul.mubr.bf16.gmra.mrb[0].mxu0 %v3228
    %v6384 = vpop.f32.mrb[0].mxu0
    %v6385 = vadd.f32 %v3753, %v6384
    %v6386 = vpop.f32.mrb[0].mxu0
    %v6387 = vadd.f32 %v3757, %v6386
    %v6388 = vpop.f32.mrb[0].mxu0
    %v6389 = vpop.f32.mrb[0].mxu0
    %6390 = vdwg.mxu0
    %6391 = vmatprep.subr.bf16.mxu0 %v5455
    %6392 = vmatpush1.bf16.msra.mxu0 %v5454
    %6393 = vmatprep.subr.bf16.mxu0 %v5463
    %6394 = vmatpush1.bf16.msra.mxu0 %v5462
    %6395 = vmatprep.subr.bf16.mxu0 %v5471
    %6396 = vmatpush1.bf16.msra.mxu0 %v5470
    %6397 = vmatprep.subr.bf16.mxu0 %v5479
    %6398 = vmatpush1.bf16.msra.mxu0 %v5478
    %6399 = vmatprep.subr.bf16.mxu0 %v5487
    %6400 = vmatpush1.bf16.msra.mxu0 %v5486
    %6401 = vmatprep.subr.bf16.mxu0 %v5495
    %6402 = vmatpush1.bf16.msra.mxu0 %v5494
    %6403 = vmatprep.subr.bf16.mxu0 %v5503
    %6404 = vmatpush1.bf16.msra.mxu0 %v5502
    %6405 = vmatprep.subr.bf16.mxu0 %v5511
    %6406 = vmatpush1.bf16.msra.mxu0 %v5510
    %6407 = vmatprep.subr.bf16.mxu0 %v5519
    %6408 = vmatpush1.bf16.msra.mxu0 %v5518
    %6409 = vmatprep.subr.bf16.mxu0 %v5527
    %6410 = vmatpush1.bf16.msra.mxu0 %v5526
    %6411 = vmatprep.subr.bf16.mxu0 %v5535
    %6412 = vmatpush1.bf16.msra.mxu0 %v5534
    %6413 = vmatprep.subr.bf16.mxu0 %v5543
    %6414 = vmatpush1.bf16.msra.mxu0 %v5542
    %6415 = vmatprep.subr.bf16.mxu0 %v5551
    %6416 = vmatpush1.bf16.msra.mxu0 %v5550
    %6417 = vmatprep.subr.bf16.mxu0 %v5559
    %6418 = vmatpush1.bf16.msra.mxu0 %v5558
    %6419 = vmatprep.subr.bf16.mxu0 %v5567
    %6420 = vmatpush1.bf16.msra.mxu0 %v5566
    %6421 = vmatprep.subr.bf16.mxu0 %v5575
    %6422 = vmatpush1.bf16.msra.mxu0 %v5574
    %6423 = vmatprep.mubr.bf16.mxu0 %v3231
    %6424 = vmatmul.mubr.bf16.gmra.mrb[0].mxu0 %v3230
    %v6425 = vpop.f32.mrb[0].mxu0
    %v6426 = vadd.f32 %v6385, %v6425
    %v6427 = vpop.f32.mrb[0].mxu0
    %v6428 = vadd.f32 %v6387, %v6427
    %v6429 = vpop.f32.mrb[0].mxu0
    %v6430 = vpop.f32.mrb[0].mxu0
    %6431 = vdwg.mxu0
    %6432 = vmatprep.subr.bf16.mxu0 %v5583
    %6433 = vmatpush1.bf16.msra.mxu0 %v5582
    %6434 = vmatprep.subr.bf16.mxu0 %v5591
    %6435 = vmatpush1.bf16.msra.mxu0 %v5590
    %6436 = vmatprep.subr.bf16.mxu0 %v5599
    %6437 = vmatpush1.bf16.msra.mxu0 %v5598
    %6438 = vmatprep.subr.bf16.mxu0 %v5607
    %6439 = vmatpush1.bf16.msra.mxu0 %v5606
    %6440 = vmatprep.subr.bf16.mxu0 %v5615
    %6441 = vmatpush1.bf16.msra.mxu0 %v5614
    %6442 = vmatprep.subr.bf16.mxu0 %v5623
    %6443 = vmatpush1.bf16.msra.mxu0 %v5622
    %6444 = vmatprep.subr.bf16.mxu0 %v5631
    %6445 = vmatpush1.bf16.msra.mxu0 %v5630
    %6446 = vmatprep.subr.bf16.mxu0 %v5639
    %6447 = vmatpush1.bf16.msra.mxu0 %v5638
    %6448 = vmatprep.subr.bf16.mxu0 %v5647
    %6449 = vmatpush1.bf16.msra.mxu0 %v5646
    %6450 = vmatprep.subr.bf16.mxu0 %v5655
    %6451 = vmatpush1.bf16.msra.mxu0 %v5654
    %6452 = vmatprep.subr.bf16.mxu0 %v5663
    %6453 = vmatpush1.bf16.msra.mxu0 %v5662
    %6454 = vmatprep.subr.bf16.mxu0 %v5671
    %6455 = vmatpush1.bf16.msra.mxu0 %v5670
    %6456 = vmatprep.subr.bf16.mxu0 %v5679
    %6457 = vmatpush1.bf16.msra.mxu0 %v5678
    %6458 = vmatprep.subr.bf16.mxu0 %v5687
    %6459 = vmatpush1.bf16.msra.mxu0 %v5686
    %6460 = vmatprep.subr.bf16.mxu0 %v5695
    %6461 = vmatpush1.bf16.msra.mxu0 %v5694
    %6462 = vmatprep.subr.bf16.mxu0 %v5703
    %6463 = vmatpush1.bf16.msra.mxu0 %v5702
    %6464 = vmatprep.mubr.bf16.mxu0 %v3233
    %6465 = vmatmul.mubr.bf16.gmra.mrb[0].mxu0 %v3232
    %v6466 = vpop.f32.mrb[0].mxu0
    %v6467 = vadd.f32 %v6426, %v6466
    %v6468 = vpop.f32.mrb[0].mxu0
    %v6469 = vadd.f32 %v6428, %v6468
    %v6470 = vpop.f32.mrb[0].mxu0
    %v6471 = vpop.f32.mrb[0].mxu0
    %6472 = vdwg.mxu0
    %6473 = vmatprep.subr.bf16.mxu0 %v5711
    %6474 = vmatpush1.bf16.msra.mxu0 %v5710
    %6475 = vmatprep.subr.bf16.mxu0 %v5719
    %6476 = vmatpush1.bf16.msra.mxu0 %v5718
    %6477 = vmatprep.subr.bf16.mxu0 %v5727
    %6478 = vmatpush1.bf16.msra.mxu0 %v5726
    %6479 = vmatprep.subr.bf16.mxu0 %v5735
    %6480 = vmatpush1.bf16.msra.mxu0 %v5734
    %6481 = vmatprep.subr.bf16.mxu0 %v5743
    %6482 = vmatpush1.bf16.msra.mxu0 %v5742
    %6483 = vmatprep.subr.bf16.mxu0 %v5751
    %6484 = vmatpush1.bf16.msra.mxu0 %v5750
    %6485 = vmatprep.subr.bf16.mxu0 %v5759
    %6486 = vmatpush1.bf16.msra.mxu0 %v5758
    %6487 = vmatprep.subr.bf16.mxu0 %v5767
    %6488 = vmatpush1.bf16.msra.mxu0 %v5766
    %6489 = vmatprep.subr.bf16.mxu0 %v5775
    %6490 = vmatpush1.bf16.msra.mxu0 %v5774
    %6491 = vmatprep.subr.bf16.mxu0 %v5783
    %6492 = vmatpush1.bf16.msra.mxu0 %v5782
    %6493 = vmatprep.subr.bf16.mxu0 %v5791
    %6494 = vmatpush1.bf16.msra.mxu0 %v5790
    %6495 = vmatprep.subr.bf16.mxu0 %v5799
    %6496 = vmatpush1.bf16.msra.mxu0 %v5798
    %6497 = vmatprep.subr.bf16.mxu0 %v5807
    %6498 = vmatpush1.bf16.msra.mxu0 %v5806
    %6499 = vmatprep.subr.bf16.mxu0 %v5815
    %6500 = vmatpush1.bf16.msra.mxu0 %v5814
    %6501 = vmatprep.subr.bf16.mxu0 %v5823
    %6502 = vmatpush1.bf16.msra.mxu0 %v5822
    %6503 = vmatprep.subr.bf16.mxu0 %v5831
    %6504 = vmatpush1.bf16.msra.mxu0 %v5830
    %6505 = vmatprep.mubr.bf16.mxu0 %v3235
    %6506 = vmatmul.mubr.bf16.gmra.mrb[0].mxu0 %v3234
    %v6507 = vpop.f32.mrb[0].mxu0
    %v6508 = vadd.f32 %v6467, %v6507
    %v6509 = vpop.f32.mrb[0].mxu0
    %v6510 = vadd.f32 %v6469, %v6509
    %v6511 = vpop.f32.mrb[0].mxu0
    %v6512 = vpop.f32.mrb[0].mxu0
    %6513 = vdwg.mxu0
    %6514 = vmatprep.subr.bf16.mxu0 %v5329
    %6515 = vmatpush1.bf16.msra.mxu0 %v5328
    %6516 = vmatprep.subr.bf16.mxu0 %v5337
    %6517 = vmatpush1.bf16.msra.mxu0 %v5336
    %6518 = vmatprep.subr.bf16.mxu0 %v5345
    %6519 = vmatpush1.bf16.msra.mxu0 %v5344
    %6520 = vmatprep.subr.bf16.mxu0 %v5353
    %6521 = vmatpush1.bf16.msra.mxu0 %v5352
    %6522 = vmatprep.subr.bf16.mxu0 %v5361
    %6523 = vmatpush1.bf16.msra.mxu0 %v5360
    %6524 = vmatprep.subr.bf16.mxu0 %v5369
    %6525 = vmatpush1.bf16.msra.mxu0 %v5368
    %6526 = vmatprep.subr.bf16.mxu0 %v5377
    %6527 = vmatpush1.bf16.msra.mxu0 %v5376
    %6528 = vmatprep.subr.bf16.mxu0 %v5385
    %6529 = vmatpush1.bf16.msra.mxu0 %v5384
    %6530 = vmatprep.subr.bf16.mxu0 %v5393
    %6531 = vmatpush1.bf16.msra.mxu0 %v5392
    %6532 = vmatprep.subr.bf16.mxu0 %v5401
    %6533 = vmatpush1.bf16.msra.mxu0 %v5400
    %6534 = vmatprep.subr.bf16.mxu0 %v5409
    %6535 = vmatpush1.bf16.msra.mxu0 %v5408
    %6536 = vmatprep.subr.bf16.mxu0 %v5417
    %6537 = vmatpush1.bf16.msra.mxu0 %v5416
    %6538 = vmatprep.subr.bf16.mxu0 %v5425
    %6539 = vmatpush1.bf16.msra.mxu0 %v5424
    %6540 = vmatprep.subr.bf16.mxu0 %v5433
    %6541 = vmatpush1.bf16.msra.mxu0 %v5432
    %6542 = vmatprep.subr.bf16.mxu0 %v5441
    %6543 = vmatpush1.bf16.msra.mxu0 %v5440
    %6544 = vmatprep.subr.bf16.mxu0 %v5449
    %6545 = vmatpush1.bf16.msra.mxu0 %v5448
    %6546 = vmatprep.mubr.bf16.mxu0 %v3229
    %6547 = vmatmul.mubr.bf16.gmra.mrb[0].mxu0 %v3228
    %v6548 = vpop.f32.mrb[0].mxu0
    %v6549 = vadd.f32 %v3761, %v6548
    %v6550 = vpop.f32.mrb[0].mxu0
    %v6551 = vadd.f32 %v3765, %v6550
    %v6552 = vpop.f32.mrb[0].mxu0
    %v6553 = vpop.f32.mrb[0].mxu0
    %6554 = vdwg.mxu0
    %6555 = vmatprep.subr.bf16.mxu0 %v5457
    %6556 = vmatpush1.bf16.msra.mxu0 %v5456
    %6557 = vmatprep.subr.bf16.mxu0 %v5465
    %6558 = vmatpush1.bf16.msra.mxu0 %v5464
    %6559 = vmatprep.subr.bf16.mxu0 %v5473
    %6560 = vmatpush1.bf16.msra.mxu0 %v5472
    %6561 = vmatprep.subr.bf16.mxu0 %v5481
    %6562 = vmatpush1.bf16.msra.mxu0 %v5480
    %6563 = vmatprep.subr.bf16.mxu0 %v5489
    %6564 = vmatpush1.bf16.msra.mxu0 %v5488
    %6565 = vmatprep.subr.bf16.mxu0 %v5497
    %6566 = vmatpush1.bf16.msra.mxu0 %v5496
    %6567 = vmatprep.subr.bf16.mxu0 %v5505
    %6568 = vmatpush1.bf16.msra.mxu0 %v5504
    %6569 = vmatprep.subr.bf16.mxu0 %v5513
    %6570 = vmatpush1.bf16.msra.mxu0 %v5512
    %6571 = vmatprep.subr.bf16.mxu0 %v5521
    %6572 = vmatpush1.bf16.msra.mxu0 %v5520
    %6573 = vmatprep.subr.bf16.mxu0 %v5529
    %6574 = vmatpush1.bf16.msra.mxu0 %v5528
    %6575 = vmatprep.subr.bf16.mxu0 %v5537
    %6576 = vmatpush1.bf16.msra.mxu0 %v5536
    %6577 = vmatprep.subr.bf16.mxu0 %v5545
    %6578 = vmatpush1.bf16.msra.mxu0 %v5544
    %6579 = vmatprep.subr.bf16.mxu0 %v5553
    %6580 = vmatpush1.bf16.msra.mxu0 %v5552
    %6581 = vmatprep.subr.bf16.mxu0 %v5561
    %6582 = vmatpush1.bf16.msra.mxu0 %v5560
    %6583 = vmatprep.subr.bf16.mxu0 %v5569
    %6584 = vmatpush1.bf16.msra.mxu0 %v5568
    %6585 = vmatprep.subr.bf16.mxu0 %v5577
    %6586 = vmatpush1.bf16.msra.mxu0 %v5576
    %6587 = vmatprep.mubr.bf16.mxu0 %v3231
    %6588 = vmatmul.mubr.bf16.gmra.mrb[0].mxu0 %v3230
    %v6589 = vpop.f32.mrb[0].mxu0
    %v6590 = vadd.f32 %v6549, %v6589
    %v6591 = vpop.f32.mrb[0].mxu0
    %v6592 = vadd.f32 %v6551, %v6591
    %v6593 = vpop.f32.mrb[0].mxu0
    %v6594 = vpop.f32.mrb[0].mxu0
    %6595 = vdwg.mxu0
    %6596 = vmatprep.subr.bf16.mxu0 %v5585
    %6597 = vmatpush1.bf16.msra.mxu0 %v5584
    %6598 = vmatprep.subr.bf16.mxu0 %v5593
    %6599 = vmatpush1.bf16.msra.mxu0 %v5592
    %6600 = vmatprep.subr.bf16.mxu0 %v5601
    %6601 = vmatpush1.bf16.msra.mxu0 %v5600
    %6602 = vmatprep.subr.bf16.mxu0 %v5609
    %6603 = vmatpush1.bf16.msra.mxu0 %v5608
    %6604 = vmatprep.subr.bf16.mxu0 %v5617
    %6605 = vmatpush1.bf16.msra.mxu0 %v5616
    %6606 = vmatprep.subr.bf16.mxu0 %v5625
    %6607 = vmatpush1.bf16.msra.mxu0 %v5624
    %6608 = vmatprep.subr.bf16.mxu0 %v5633
    %6609 = vmatpush1.bf16.msra.mxu0 %v5632
    %6610 = vmatprep.subr.bf16.mxu0 %v5641
    %6611 = vmatpush1.bf16.msra.mxu0 %v5640
    %6612 = vmatprep.subr.bf16.mxu0 %v5649
    %6613 = vmatpush1.bf16.msra.mxu0 %v5648
    %6614 = vmatprep.subr.bf16.mxu0 %v5657
    %6615 = vmatpush1.bf16.msra.mxu0 %v5656
    %6616 = vmatprep.subr.bf16.mxu0 %v5665
    %6617 = vmatpush1.bf16.msra.mxu0 %v5664
    %6618 = vmatprep.subr.bf16.mxu0 %v5673
    %6619 = vmatpush1.bf16.msra.mxu0 %v5672
    %6620 = vmatprep.subr.bf16.mxu0 %v5681
    %6621 = vmatpush1.bf16.msra.mxu0 %v5680
    %6622 = vmatprep.subr.bf16.mxu0 %v5689
    %6623 = vmatpush1.bf16.msra.mxu0 %v5688
    %6624 = vmatprep.subr.bf16.mxu0 %v5697
    %6625 = vmatpush1.bf16.msra.mxu0 %v5696
    %6626 = vmatprep.subr.bf16.mxu0 %v5705
    %6627 = vmatpush1.bf16.msra.mxu0 %v5704
    %6628 = vmatprep.mubr.bf16.mxu0 %v3233
    %6629 = vmatmul.mubr.bf16.gmra.mrb[0].mxu0 %v3232
    %v6630 = vpop.f32.mrb[0].mxu0
    %v6631 = vadd.f32 %v6590, %v6630
    %v6632 = vpop.f32.mrb[0].mxu0
    %v6633 = vadd.f32 %v6592, %v6632
    %v6634 = vpop.f32.mrb[0].mxu0
    %v6635 = vpop.f32.mrb[0].mxu0
    %6636 = vdwg.mxu0
    %6637 = vmatprep.subr.bf16.mxu0 %v5713
    %6638 = vmatpush1.bf16.msra.mxu0 %v5712
    %6639 = vmatprep.subr.bf16.mxu0 %v5721
    %6640 = vmatpush1.bf16.msra.mxu0 %v5720
    %6641 = vmatprep.subr.bf16.mxu0 %v5729
    %6642 = vmatpush1.bf16.msra.mxu0 %v5728
    %6643 = vmatprep.subr.bf16.mxu0 %v5737
    %6644 = vmatpush1.bf16.msra.mxu0 %v5736
    %6645 = vmatprep.subr.bf16.mxu0 %v5745
    %6646 = vmatpush1.bf16.msra.mxu0 %v5744
    %6647 = vmatprep.subr.bf16.mxu0 %v5753
    %6648 = vmatpush1.bf16.msra.mxu0 %v5752
    %6649 = vmatprep.subr.bf16.mxu0 %v5761
    %6650 = vmatpush1.bf16.msra.mxu0 %v5760
    %6651 = vmatprep.subr.bf16.mxu0 %v5769
    %6652 = vmatpush1.bf16.msra.mxu0 %v5768
    %6653 = vmatprep.subr.bf16.mxu0 %v5777
    %6654 = vmatpush1.bf16.msra.mxu0 %v5776
    %6655 = vmatprep.subr.bf16.mxu0 %v5785
    %6656 = vmatpush1.bf16.msra.mxu0 %v5784
    %6657 = vmatprep.subr.bf16.mxu0 %v5793
    %6658 = vmatpush1.bf16.msra.mxu0 %v5792
    %6659 = vmatprep.subr.bf16.mxu0 %v5801
    %6660 = vmatpush1.bf16.msra.mxu0 %v5800
    %6661 = vmatprep.subr.bf16.mxu0 %v5809
    %6662 = vmatpush1.bf16.msra.mxu0 %v5808
    %6663 = vmatprep.subr.bf16.mxu0 %v5817
    %6664 = vmatpush1.bf16.msra.mxu0 %v5816
    %6665 = vmatprep.subr.bf16.mxu0 %v5825
    %6666 = vmatpush1.bf16.msra.mxu0 %v5824
    %6667 = vmatprep.subr.bf16.mxu0 %v5833
    %6668 = vmatpush1.bf16.msra.mxu0 %v5832
    %6669 = vmatprep.mubr.bf16.mxu0 %v3235
    %6670 = vmatmul.mubr.bf16.gmra.mrb[0].mxu0 %v3234
    %v6671 = vpop.f32.mrb[0].mxu0
    %v6672 = vadd.f32 %v6631, %v6671
    %v6673 = vpop.f32.mrb[0].mxu0
    %v6674 = vadd.f32 %v6633, %v6673
    %v6675 = vpop.f32.mrb[0].mxu0
    %v6676 = vpop.f32.mrb[0].mxu0
    %6677 = vdwg.mxu0
    %6678 = vmatprep.subr.bf16.mxu0 %v5331
    %6679 = vmatpush1.bf16.msra.mxu0 %v5330
    %6680 = vmatprep.subr.bf16.mxu0 %v5339
    %6681 = vmatpush1.bf16.msra.mxu0 %v5338
    %6682 = vmatprep.subr.bf16.mxu0 %v5347
    %6683 = vmatpush1.bf16.msra.mxu0 %v5346
    %6684 = vmatprep.subr.bf16.mxu0 %v5355
    %6685 = vmatpush1.bf16.msra.mxu0 %v5354
    %6686 = vmatprep.subr.bf16.mxu0 %v5363
    %6687 = vmatpush1.bf16.msra.mxu0 %v5362
    %6688 = vmatprep.subr.bf16.mxu0 %v5371
    %6689 = vmatpush1.bf16.msra.mxu0 %v5370
    %6690 = vmatprep.subr.bf16.mxu0 %v5379
    %6691 = vmatpush1.bf16.msra.mxu0 %v5378
    %6692 = vmatprep.subr.bf16.mxu0 %v5387
    %6693 = vmatpush1.bf16.msra.mxu0 %v5386
    %6694 = vmatprep.subr.bf16.mxu0 %v5395
    %6695 = vmatpush1.bf16.msra.mxu0 %v5394
    %6696 = vmatprep.subr.bf16.mxu0 %v5403
    %6697 = vmatpush1.bf16.msra.mxu0 %v5402
    %6698 = vmatprep.subr.bf16.mxu0 %v5411
    %6699 = vmatpush1.bf16.msra.mxu0 %v5410
    %6700 = vmatprep.subr.bf16.mxu0 %v5419
    %6701 = vmatpush1.bf16.msra.mxu0 %v5418
    %6702 = vmatprep.subr.bf16.mxu0 %v5427
    %6703 = vmatpush1.bf16.msra.mxu0 %v5426
    %6704 = vmatprep.subr.bf16.mxu0 %v5435
    %6705 = vmatpush1.bf16.msra.mxu0 %v5434
    %6706 = vmatprep.subr.bf16.mxu0 %v5443
    %6707 = vmatpush1.bf16.msra.mxu0 %v5442
    %6708 = vmatprep.subr.bf16.mxu0 %v5451
    %6709 = vmatpush1.bf16.msra.mxu0 %v5450
    %6710 = vmatprep.mubr.bf16.mxu0 %v3229
    %6711 = vmatmul.mubr.bf16.gmra.mrb[0].mxu0 %v3228
    %v6712 = vpop.f32.mrb[0].mxu0
    %v6713 = vadd.f32 %v3769, %v6712
    %v6714 = vpop.f32.mrb[0].mxu0
    %v6715 = vadd.f32 %v3773, %v6714
    %v6716 = vpop.f32.mrb[0].mxu0
    %v6717 = vpop.f32.mrb[0].mxu0
    %6718 = vdwg.mxu0
    %6719 = vmatprep.subr.bf16.mxu0 %v5459
    %6720 = vmatpush1.bf16.msra.mxu0 %v5458
    %6721 = vmatprep.subr.bf16.mxu0 %v5467
    %6722 = vmatpush1.bf16.msra.mxu0 %v5466
    %6723 = vmatprep.subr.bf16.mxu0 %v5475
    %6724 = vmatpush1.bf16.msra.mxu0 %v5474
    %6725 = vmatprep.subr.bf16.mxu0 %v5483
    %6726 = vmatpush1.bf16.msra.mxu0 %v5482
    %6727 = vmatprep.subr.bf16.mxu0 %v5491
    %6728 = vmatpush1.bf16.msra.mxu0 %v5490
    %6729 = vmatprep.subr.bf16.mxu0 %v5499
    %6730 = vmatpush1.bf16.msra.mxu0 %v5498
    %6731 = vmatprep.subr.bf16.mxu0 %v5507
    %6732 = vmatpush1.bf16.msra.mxu0 %v5506
    %6733 = vmatprep.subr.bf16.mxu0 %v5515
    %6734 = vmatpush1.bf16.msra.mxu0 %v5514
    %6735 = vmatprep.subr.bf16.mxu0 %v5523
    %6736 = vmatpush1.bf16.msra.mxu0 %v5522
    %6737 = vmatprep.subr.bf16.mxu0 %v5531
    %6738 = vmatpush1.bf16.msra.mxu0 %v5530
    %6739 = vmatprep.subr.bf16.mxu0 %v5539
    %6740 = vmatpush1.bf16.msra.mxu0 %v5538
    %6741 = vmatprep.subr.bf16.mxu0 %v5547
    %6742 = vmatpush1.bf16.msra.mxu0 %v5546
    %6743 = vmatprep.subr.bf16.mxu0 %v5555
    %6744 = vmatpush1.bf16.msra.mxu0 %v5554
    %6745 = vmatprep.subr.bf16.mxu0 %v5563
    %6746 = vmatpush1.bf16.msra.mxu0 %v5562
    %6747 = vmatprep.subr.bf16.mxu0 %v5571
    %6748 = vmatpush1.bf16.msra.mxu0 %v5570
    %6749 = vmatprep.subr.bf16.mxu0 %v5579
    %6750 = vmatpush1.bf16.msra.mxu0 %v5578
    %6751 = vmatprep.mubr.bf16.mxu0 %v3231
    %6752 = vmatmul.mubr.bf16.gmra.mrb[0].mxu0 %v3230
    %v6753 = vpop.f32.mrb[0].mxu0
    %v6754 = vadd.f32 %v6713, %v6753
    %v6755 = vpop.f32.mrb[0].mxu0
    %v6756 = vadd.f32 %v6715, %v6755
    %v6757 = vpop.f32.mrb[0].mxu0
    %v6758 = vpop.f32.mrb[0].mxu0
    %6759 = vdwg.mxu0
    %6760 = vmatprep.subr.bf16.mxu0 %v5587
    %6761 = vmatpush1.bf16.msra.mxu0 %v5586
    %6762 = vmatprep.subr.bf16.mxu0 %v5595
    %6763 = vmatpush1.bf16.msra.mxu0 %v5594
    %6764 = vmatprep.subr.bf16.mxu0 %v5603
    %6765 = vmatpush1.bf16.msra.mxu0 %v5602
    %6766 = vmatprep.subr.bf16.mxu0 %v5611
    %6767 = vmatpush1.bf16.msra.mxu0 %v5610
    %6768 = vmatprep.subr.bf16.mxu0 %v5619
    %6769 = vmatpush1.bf16.msra.mxu0 %v5618
    %6770 = vmatprep.subr.bf16.mxu0 %v5627
    %6771 = vmatpush1.bf16.msra.mxu0 %v5626
    %6772 = vmatprep.subr.bf16.mxu0 %v5635
    %6773 = vmatpush1.bf16.msra.mxu0 %v5634
    %6774 = vmatprep.subr.bf16.mxu0 %v5643
    %6775 = vmatpush1.bf16.msra.mxu0 %v5642
    %6776 = vmatprep.subr.bf16.mxu0 %v5651
    %6777 = vmatpush1.bf16.msra.mxu0 %v5650
    %6778 = vmatprep.subr.bf16.mxu0 %v5659
    %6779 = vmatpush1.bf16.msra.mxu0 %v5658
    %6780 = vmatprep.subr.bf16.mxu0 %v5667
    %6781 = vmatpush1.bf16.msra.mxu0 %v5666
    %6782 = vmatprep.subr.bf16.mxu0 %v5675
    %6783 = vmatpush1.bf16.msra.mxu0 %v5674
    %6784 = vmatprep.subr.bf16.mxu0 %v5683
    %6785 = vmatpush1.bf16.msra.mxu0 %v5682
    %6786 = vmatprep.subr.bf16.mxu0 %v5691
    %6787 = vmatpush1.bf16.msra.mxu0 %v5690
    %6788 = vmatprep.subr.bf16.mxu0 %v5699
    %6789 = vmatpush1.bf16.msra.mxu0 %v5698
    %6790 = vmatprep.subr.bf16.mxu0 %v5707
    %6791 = vmatpush1.bf16.msra.mxu0 %v5706
    %6792 = vmatprep.mubr.bf16.mxu0 %v3233
    %6793 = vmatmul.mubr.bf16.gmra.mrb[0].mxu0 %v3232
    %v6794 = vpop.f32.mrb[0].mxu0
    %v6795 = vadd.f32 %v6754, %v6794
    %v6796 = vpop.f32.mrb[0].mxu0
    %v6797 = vadd.f32 %v6756, %v6796
    %v6798 = vpop.f32.mrb[0].mxu0
    %v6799 = vpop.f32.mrb[0].mxu0
    %6800 = vdwg.mxu0
    %6801 = vmatprep.subr.bf16.mxu0 %v5715
    %6802 = vmatpush1.bf16.msra.mxu0 %v5714
    %6803 = vmatprep.subr.bf16.mxu0 %v5723
    %6804 = vmatpush1.bf16.msra.mxu0 %v5722
    %6805 = vmatprep.subr.bf16.mxu0 %v5731
    %6806 = vmatpush1.bf16.msra.mxu0 %v5730
    %6807 = vmatprep.subr.bf16.mxu0 %v5739
    %6808 = vmatpush1.bf16.msra.mxu0 %v5738
    %6809 = vmatprep.subr.bf16.mxu0 %v5747
    %6810 = vmatpush1.bf16.msra.mxu0 %v5746
    %6811 = vmatprep.subr.bf16.mxu0 %v5755
    %6812 = vmatpush1.bf16.msra.mxu0 %v5754
    %6813 = vmatprep.subr.bf16.mxu0 %v5763
    %6814 = vmatpush1.bf16.msra.mxu0 %v5762
    %6815 = vmatprep.subr.bf16.mxu0 %v5771
    %6816 = vmatpush1.bf16.msra.mxu0 %v5770
    %6817 = vmatprep.subr.bf16.mxu0 %v5779
    %6818 = vmatpush1.bf16.msra.mxu0 %v5778
    %6819 = vmatprep.subr.bf16.mxu0 %v5787
    %6820 = vmatpush1.bf16.msra.mxu0 %v5786
    %6821 = vmatprep.subr.bf16.mxu0 %v5795
    %6822 = vmatpush1.bf16.msra.mxu0 %v5794
    %6823 = vmatprep.subr.bf16.mxu0 %v5803
    %6824 = vmatpush1.bf16.msra.mxu0 %v5802
    %6825 = vmatprep.subr.bf16.mxu0 %v5811
    %6826 = vmatpush1.bf16.msra.mxu0 %v5810
    %6827 = vmatprep.subr.bf16.mxu0 %v5819
    %6828 = vmatpush1.bf16.msra.mxu0 %v5818
    %6829 = vmatprep.subr.bf16.mxu0 %v5827
    %6830 = vmatpush1.bf16.msra.mxu0 %v5826
    %6831 = vmatprep.subr.bf16.mxu0 %v5835
    %6832 = vmatpush1.bf16.msra.mxu0 %v5834
    %6833 = vmatprep.mubr.bf16.mxu0 %v3235
    %6834 = vmatmul.mubr.bf16.gmra.mrb[0].mxu0 %v3234
    %v6835 = vpop.f32.mrb[0].mxu0
    %v6836 = vadd.f32 %v6795, %v6835
    %v6837 = vpop.f32.mrb[0].mxu0
    %v6838 = vadd.f32 %v6797, %v6837
    %v6839 = vpop.f32.mrb[0].mxu0
    %v6840 = vpop.f32.mrb[0].mxu0
    %6841 = vdwg.mxu0
    %6842 = vmatprep.subr.bf16.mxu0 %v5333
    %6843 = vmatpush1.bf16.msra.mxu0 %v5332
    %6844 = vmatprep.subr.bf16.mxu0 %v5341
    %6845 = vmatpush1.bf16.msra.mxu0 %v5340
    %6846 = vmatprep.subr.bf16.mxu0 %v5349
    %6847 = vmatpush1.bf16.msra.mxu0 %v5348
    %6848 = vmatprep.subr.bf16.mxu0 %v5357
    %6849 = vmatpush1.bf16.msra.mxu0 %v5356
    %6850 = vmatprep.subr.bf16.mxu0 %v5365
    %6851 = vmatpush1.bf16.msra.mxu0 %v5364
    %6852 = vmatprep.subr.bf16.mxu0 %v5373
    %6853 = vmatpush1.bf16.msra.mxu0 %v5372
    %6854 = vmatprep.subr.bf16.mxu0 %v5381
    %6855 = vmatpush1.bf16.msra.mxu0 %v5380
    %6856 = vmatprep.subr.bf16.mxu0 %v5389
    %6857 = vmatpush1.bf16.msra.mxu0 %v5388
    %6858 = vmatprep.subr.bf16.mxu0 %v5397
    %6859 = vmatpush1.bf16.msra.mxu0 %v5396
    %6860 = vmatprep.subr.bf16.mxu0 %v5405
    %6861 = vmatpush1.bf16.msra.mxu0 %v5404
    %6862 = vmatprep.subr.bf16.mxu0 %v5413
    %6863 = vmatpush1.bf16.msra.mxu0 %v5412
    %6864 = vmatprep.subr.bf16.mxu0 %v5421
    %6865 = vmatpush1.bf16.msra.mxu0 %v5420
    %6866 = vmatprep.subr.bf16.mxu0 %v5429
    %6867 = vmatpush1.bf16.msra.mxu0 %v5428
    %6868 = vmatprep.subr.bf16.mxu0 %v5437
    %6869 = vmatpush1.bf16.msra.mxu0 %v5436
    %6870 = vmatprep.subr.bf16.mxu0 %v5445
    %6871 = vmatpush1.bf16.msra.mxu0 %v5444
    %6872 = vmatprep.subr.bf16.mxu0 %v5453
    %6873 = vmatpush1.bf16.msra.mxu0 %v5452
    %6874 = vmatprep.mubr.bf16.mxu0 %v3229
    %6875 = vmatmul.mubr.bf16.gmra.mrb[0].mxu0 %v3228
    %v6876 = vpop.f32.mrb[0].mxu0
    %v6877 = vadd.f32 %v3777, %v6876
    %v6878 = vpop.f32.mrb[0].mxu0
    %v6879 = vadd.f32 %v3781, %v6878
    %v6880 = vpop.f32.mrb[0].mxu0
    %v6881 = vpop.f32.mrb[0].mxu0
    %6882 = vdwg.mxu0
    %6883 = vmatprep.subr.bf16.mxu0 %v5461
    %6884 = vmatpush1.bf16.msra.mxu0 %v5460
    %6885 = vmatprep.subr.bf16.mxu0 %v5469
    %6886 = vmatpush1.bf16.msra.mxu0 %v5468
    %6887 = vmatprep.subr.bf16.mxu0 %v5477
    %6888 = vmatpush1.bf16.msra.mxu0 %v5476
    %6889 = vmatprep.subr.bf16.mxu0 %v5485
    %6890 = vmatpush1.bf16.msra.mxu0 %v5484
    %6891 = vmatprep.subr.bf16.mxu0 %v5493
    %6892 = vmatpush1.bf16.msra.mxu0 %v5492
    %6893 = vmatprep.subr.bf16.mxu0 %v5501
    %6894 = vmatpush1.bf16.msra.mxu0 %v5500
    %6895 = vmatprep.subr.bf16.mxu0 %v5509
    %6896 = vmatpush1.bf16.msra.mxu0 %v5508
    %6897 = vmatprep.subr.bf16.mxu0 %v5517
    %6898 = vmatpush1.bf16.msra.mxu0 %v5516
    %6899 = vmatprep.subr.bf16.mxu0 %v5525
    %6900 = vmatpush1.bf16.msra.mxu0 %v5524
    %6901 = vmatprep.subr.bf16.mxu0 %v5533
    %6902 = vmatpush1.bf16.msra.mxu0 %v5532
    %6903 = vmatprep.subr.bf16.mxu0 %v5541
    %6904 = vmatpush1.bf16.msra.mxu0 %v5540
    %6905 = vmatprep.subr.bf16.mxu0 %v5549
    %6906 = vmatpush1.bf16.msra.mxu0 %v5548
    %6907 = vmatprep.subr.bf16.mxu0 %v5557
    %6908 = vmatpush1.bf16.msra.mxu0 %v5556
    %6909 = vmatprep.subr.bf16.mxu0 %v5565
    %6910 = vmatpush1.bf16.msra.mxu0 %v5564
    %6911 = vmatprep.subr.bf16.mxu0 %v5573
    %6912 = vmatpush1.bf16.msra.mxu0 %v5572
    %6913 = vmatprep.subr.bf16.mxu0 %v5581
    %6914 = vmatpush1.bf16.msra.mxu0 %v5580
    %6915 = vmatprep.mubr.bf16.mxu0 %v3231
    %6916 = vmatmul.mubr.bf16.gmra.mrb[0].mxu0 %v3230
    %v6917 = vpop.f32.mrb[0].mxu0
    %v6918 = vadd.f32 %v6877, %v6917
    %v6919 = vpop.f32.mrb[0].mxu0
    %v6920 = vadd.f32 %v6879, %v6919
    %v6921 = vpop.f32.mrb[0].mxu0
    %v6922 = vpop.f32.mrb[0].mxu0
    %6923 = vdwg.mxu0
    %6924 = vmatprep.subr.bf16.mxu0 %v5589
    %6925 = vmatpush1.bf16.msra.mxu0 %v5588
    %6926 = vmatprep.subr.bf16.mxu0 %v5597
    %6927 = vmatpush1.bf16.msra.mxu0 %v5596
    %6928 = vmatprep.subr.bf16.mxu0 %v5605
    %6929 = vmatpush1.bf16.msra.mxu0 %v5604
    %6930 = vmatprep.subr.bf16.mxu0 %v5613
    %6931 = vmatpush1.bf16.msra.mxu0 %v5612
    %6932 = vmatprep.subr.bf16.mxu0 %v5621
    %6933 = vmatpush1.bf16.msra.mxu0 %v5620
    %6934 = vmatprep.subr.bf16.mxu0 %v5629
    %6935 = vmatpush1.bf16.msra.mxu0 %v5628
    %6936 = vmatprep.subr.bf16.mxu0 %v5637
    %6937 = vmatpush1.bf16.msra.mxu0 %v5636
    %6938 = vmatprep.subr.bf16.mxu0 %v5645
    %6939 = vmatpush1.bf16.msra.mxu0 %v5644
    %6940 = vmatprep.subr.bf16.mxu0 %v5653
    %6941 = vmatpush1.bf16.msra.mxu0 %v5652
    %6942 = vmatprep.subr.bf16.mxu0 %v5661
    %6943 = vmatpush1.bf16.msra.mxu0 %v5660
    %6944 = vmatprep.subr.bf16.mxu0 %v5669
    %6945 = vmatpush1.bf16.msra.mxu0 %v5668
    %6946 = vmatprep.subr.bf16.mxu0 %v5677
    %6947 = vmatpush1.bf16.msra.mxu0 %v5676
    %6948 = vmatprep.subr.bf16.mxu0 %v5685
    %6949 = vmatpush1.bf16.msra.mxu0 %v5684
    %6950 = vmatprep.subr.bf16.mxu0 %v5693
    %6951 = vmatpush1.bf16.msra.mxu0 %v5692
    %6952 = vmatprep.subr.bf16.mxu0 %v5701
    %6953 = vmatpush1.bf16.msra.mxu0 %v5700
    %6954 = vmatprep.subr.bf16.mxu0 %v5709
    %6955 = vmatpush1.bf16.msra.mxu0 %v5708
    %6956 = vmatprep.mubr.bf16.mxu0 %v3233
    %6957 = vmatmul.mubr.bf16.gmra.mrb[0].mxu0 %v3232
    %v6958 = vpop.f32.mrb[0].mxu0
    %v6959 = vadd.f32 %v6918, %v6958
    %v6960 = vpop.f32.mrb[0].mxu0
    %v6961 = vadd.f32 %v6920, %v6960
    %v6962 = vpop.f32.mrb[0].mxu0
    %v6963 = vpop.f32.mrb[0].mxu0
    %6964 = vdwg.mxu0
    %6965 = vmatprep.subr.bf16.mxu0 %v5717
    %6966 = vmatpush1.bf16.msra.mxu0 %v5716
    %6967 = vmatprep.subr.bf16.mxu0 %v5725
    %6968 = vmatpush1.bf16.msra.mxu0 %v5724
    %6969 = vmatprep.subr.bf16.mxu0 %v5733
    %6970 = vmatpush1.bf16.msra.mxu0 %v5732
    %6971 = vmatprep.subr.bf16.mxu0 %v5741
    %6972 = vmatpush1.bf16.msra.mxu0 %v5740
    %6973 = vmatprep.subr.bf16.mxu0 %v5749
    %6974 = vmatpush1.bf16.msra.mxu0 %v5748
    %6975 = vmatprep.subr.bf16.mxu0 %v5757
    %6976 = vmatpush1.bf16.msra.mxu0 %v5756
    %6977 = vmatprep.subr.bf16.mxu0 %v5765
    %6978 = vmatpush1.bf16.msra.mxu0 %v5764
    %6979 = vmatprep.subr.bf16.mxu0 %v5773
    %6980 = vmatpush1.bf16.msra.mxu0 %v5772
    %6981 = vmatprep.subr.bf16.mxu0 %v5781
    %6982 = vmatpush1.bf16.msra.mxu0 %v5780
    %6983 = vmatprep.subr.bf16.mxu0 %v5789
    %6984 = vmatpush1.bf16.msra.mxu0 %v5788
    %6985 = vmatprep.subr.bf16.mxu0 %v5797
    %6986 = vmatpush1.bf16.msra.mxu0 %v5796
    %6987 = vmatprep.subr.bf16.mxu0 %v5805
    %6988 = vmatpush1.bf16.msra.mxu0 %v5804
    %6989 = vmatprep.subr.bf16.mxu0 %v5813
    %6990 = vmatpush1.bf16.msra.mxu0 %v5812
    %6991 = vmatprep.subr.bf16.mxu0 %v5821
    %6992 = vmatpush1.bf16.msra.mxu0 %v5820
    %6993 = vmatprep.subr.bf16.mxu0 %v5829
    %6994 = vmatpush1.bf16.msra.mxu0 %v5828
    %6995 = vmatprep.subr.bf16.mxu0 %v5837
    %6996 = vmatpush1.bf16.msra.mxu0 %v5836
    %6997 = vmatprep.mubr.bf16.mxu0 %v3235
    %6998 = vmatmul.mubr.bf16.gmra.mrb[0].mxu0 %v3234
    %v6999 = vpop.f32.mrb[0].mxu0
    %v7000 = vadd.f32 %v6959, %v6999
    %v7001 = vpop.f32.mrb[0].mxu0
    %v7002 = vadd.f32 %v6961, %v7001
    %v7003 = vpop.f32.mrb[0].mxu0
    %v7004 = vpop.f32.mrb[0].mxu0
    %7005 = vdwg.mxu0
    %v7006 = vtanh.pop %v6508
    %v7007 = vtanh.pop %v6510
    %v7008 = vtanh.pop %v6672
    %v7009 = vtanh.pop %v6674
    %v7010 = vtanh.pop %v6836
    %v7011 = vtanh.pop %v6838
    %v7012 = vtanh.pop %v7000
    %v7013 = vtanh.pop %v7002
    %7014 = vst [vmem:[#allocation14] sm:$0xff] %v7006
    %7015 = vst [vmem:[#allocation14 + $0x8] sm:$0xff] %v7007
    %7016 = vst [vmem:[#allocation14 + $0x10] sm:$0xff] %v7008
    %7017 = vst [vmem:[#allocation14 + $0x18] sm:$0xff] %v7009
    %7018 = vst [vmem:[#allocation14 + $0x20] sm:$0xff] %v7010
    %7019 = vst [vmem:[#allocation14 + $0x28] sm:$0xff] %v7011
    %7020 = vst [vmem:[#allocation14 + $0x30] sm:$0xff] %v7012
    %7021 = vst [vmem:[#allocation14 + $0x38] sm:$0xff] %v7013
    // Predicated region
    $region58: #{tpu_custom_call.1} parent=1 // pred_check
      _
    $region59: #{tpu_custom_call.1} parent=1 // pred_check_branch
      %7023 = sbr.rel (0) target = $region61
    $region60: #{tpu_custom_call.1} parent=1 // pred_region
      %s7025 = ssub.s32 1024, 1024
      %7026 = vsyncadd [#allocation4], %s7025
      %s7028 = sshll.u32 [#allocation14], 4
      %s7029 = int_to_ptr.vmem [resolvable:$true] %s7028
      %7031 = dma.vmem_to_hbm [thread:$0]  %s7029, 1024, %s7, [#allocation4]
    $region61: #{tpu_custom_call.1} parent=1 // pred_fallthru
      _
    // Predicated region
    $region62: #{tpu_custom_call.1} parent=1 // pred_check
      _
    $region63: #{tpu_custom_call.1} parent=1 // pred_check_branch
      %7033 = sbr.rel (0) target = $region65
    $region64: #{tpu_custom_call.1} parent=1 // pred_region
      %7034 = dma.done [#allocation4], 1024
    $region65: #{tpu_custom_call.1} parent=1 // pred_fallthru
      _
    %7035 = vsyncpa [#allocation3], 1
    %7036 = vsyncpa [#allocation6], 1
    %7037 = vsyncpa [#allocation9], 1
    %7038 = vsyncpa [#allocation12], 1
    %7039 = vsyncpa [#allocation4], 1

</llo_original>
